<compile_context>
chip_gen: v6e
topology: v6e:2x2x1
jax: 0.10.0
libtpu: 0.0.40
codegen_flags: <defaults>
</compile_context>

<pallas_src>
import math
from functools import partial

import jax
import jax.numpy as jnp
from jax import lax
from jax.experimental import pallas as pl
from jax.experimental.pallas import tpu as pltpu


# ---------------------------------------------------------------------------
# Fused forward kernel (one program per batch element)
# ---------------------------------------------------------------------------

def _layer_norm(x, g, b, eps):
    mean = jnp.mean(x, axis=-1, keepdims=True)
    c = x - mean
    var = jnp.mean(c * c, axis=-1, keepdims=True)
    return c * lax.rsqrt(var + eps) * g + b


def _dt_forward_kernel(
    # per-batch inputs
    x_ref, act_ref, rtg_ref, pos_ref, mask_ref,
    # embedding weights
    enc_w, enc_b, actw, actb, rtgw, rtgb,
    eln_g, eln_b,
    # stacked per-layer GPT2 block weights
    ln1_g, ln1_b, qkv_w, qkv_b, proj_w, proj_b,
    ln2_g, ln2_b, fc1_w, fc1_b, fc2_w, fc2_b,
    # final LN + padded output head
    fln_g, fln_b, out_w, out_b,
    # output
    o_ref,
    *, num_heads, ln_eps, embed_ln_eps,
):
    f32 = jnp.float32

    def mm(a, w):
        return jnp.dot(a, w, preferred_element_type=f32)

    pos = pos_ref[...]                                   # (C, F)
    Cn, F = pos.shape

    # --- token embeddings (encoder = Linear+ReLU), fused with +positional embedding ---
    state_e = jnp.maximum(mm(x_ref[...], enc_w[...]) + enc_b[...], 0.0) + pos
    act_e = mm(act_ref[...], actw[...]) + actb[...] + pos
    rtg_e = mm(rtg_ref[...], rtgw[...]) + rtgb[...] + pos

    # Grouped token layout: rows [0:C)=rtg, [C:2C)=state, [2C:3C)=action.
    # Row g*C + t sits at interleaved position 3*t + g; the causal mask (mask_ref)
    # is built on those positions, so no physical interleave/transpose is needed.
    h = jnp.concatenate([rtg_e, state_e, act_e], axis=0)  # (T, F), T = 3C
    h = _layer_norm(h, eln_g[...], eln_b[...], embed_ln_eps)

    causal = mask_ref[...] > 0.0                          # (T, T) bool, grouped layout

    n_layers = qkv_w.shape[0]
    D = F // num_heads
    scale = 1.0 / math.sqrt(D)

    for l in range(n_layers):
        # --- causal self-attention (fused QKV matmul, heads sliced in-kernel) ---
        nx = _layer_norm(h, ln1_g[l], ln1_b[l], ln_eps)
        qkv = mm(nx, qkv_w[l]) + qkv_b[l]                 # (T, 3F)
        heads = []
        for hh in range(num_heads):
            qh = qkv[:, hh * D:(hh + 1) * D] * scale      # scale folded into q
            kh = qkv[:, F + hh * D:F + (hh + 1) * D]
            vh = qkv[:, 2 * F + hh * D:2 * F + (hh + 1) * D]
            s = jnp.dot(qh, kh.T, preferred_element_type=f32)
            s = jnp.where(causal, s, -1e30)               # finite mask value (no inf-inf NaN)
            s = s - jnp.max(s, axis=-1, keepdims=True)
            p = jnp.exp(s)
            p = p * pl.reciprocal(jnp.sum(p, axis=-1, keepdims=True), approx=True)
            heads.append(jnp.dot(p, vh, preferred_element_type=f32))
        attn = jnp.concatenate(heads, axis=-1)            # (T, F)
        h = h + mm(attn, proj_w[l]) + proj_b[l]

        # --- MLP ---
        nx = _layer_norm(h, ln2_g[l], ln2_b[l], ln_eps)
        # TODO(synk): torch nn.GELU() default is the exact erf form; tanh-approx used here.
        m = jax.nn.gelu(mm(nx, fc1_w[l]) + fc1_b[l], approximate=True)
        h = h + mm(m, fc2_w[l]) + fc2_b[l]

    h = _layer_norm(h, fln_g[...], fln_b[...], ln_eps)

    # State-token stream is a contiguous slice in the grouped layout.
    state_h = h[Cn:2 * Cn, :]                             # (C, F)
    # Lane-dense (128-wide) output store; wrapper slices back to action_size.
    o_ref[...] = jnp.tanh(mm(state_h, out_w[...]) + out_b[...])


# ---------------------------------------------------------------------------
# Wrapper (glue: positional-embedding gather, mask build, pallas_call plumbing)
# ---------------------------------------------------------------------------

_WEIGHT_ORDER = (
    "enc_w", "enc_b", "act_w", "act_b", "rtg_w", "rtg_b",
    "embed_ln_g", "embed_ln_b",
    "ln1_g", "ln1_b", "qkv_w", "qkv_b", "proj_w", "proj_b",
    "ln2_g", "ln2_b", "fc1_w", "fc1_b", "fc2_w", "fc2_b",
    "final_ln_g", "final_ln_b", "out_w", "out_b",
)


def decision_transformer_forward(params, x, action, rtg, timesteps, *, num_heads, action_size):
    B, C, S = x.shape
    A_in = action.shape[-1]
    F = params["enc_w"].shape[1]
    N_pad = params["out_w"].shape[1]
    T = 3 * C

    # SimplePositionEncoding: embedding-table lookup (data-dependent gather; plain JAX glue).
    pos = jnp.take(params["pos_table"], timesteps, axis=0)          # (B, C, F)

    # Causal mask over interleaved positions, expressed in the grouped token layout
    # (equivalent to create_attention_mask + the rtg/state/action interleave).
    idx = jnp.arange(T, dtype=jnp.int32)
    pos_id = 3 * (idx % C) + idx // C
    mask = (pos_id[:, None] >= pos_id[None, :]).astype(jnp.float32)  # (T, T)

    def batch_spec(shape):
        return pl.BlockSpec((None,) + shape, lambda b: (b,) + (0,) * len(shape))

    def full_spec(arr):
        return pl.BlockSpec(arr.shape, lambda b, idx=(0,) * arr.ndim: idx)

    weights = [params[name] for name in _WEIGHT_ORDER]

    in_specs = [
        batch_spec((C, S)),        # x
        batch_spec((C, A_in)),     # action
        batch_spec((C, 1)),        # return_to_go
        batch_spec((C, F)),        # positional embedding
        full_spec(mask),           # causal mask (shared across batch)
    ] + [full_spec(w) for w in weights]

    out = pl.pallas_call(
        partial(_dt_forward_kernel, num_heads=num_heads, ln_eps=0.003, embed_ln_eps=1e-5),
        grid=(B,),
        in_specs=in_specs,
        out_specs=pl.BlockSpec((None, C, N_pad), lambda b: (b, 0, 0)),
        out_shape=jax.ShapeDtypeStruct((B, C, N_pad), jnp.float32),
        compiler_params=pltpu.CompilerParams(dimension_semantics=("parallel",)),
    )(x, action, rtg, pos, mask, *weights)

    return out[:, :, :action_size]


# ---------------------------------------------------------------------------
# Deterministic parameter initialization (packed layout: fused QKV, stacked layers,
# 128-lane-padded output head)
# ---------------------------------------------------------------------------

def init_params(key, *, state_size, action_size, feature_size, num_layers,
                max_timestep, out_pad=128):
    F = feature_size
    keys = jax.random.split(key, 5 + 4 * num_layers)

    def nrm(k, shape, scale=0.02):
        return (scale * jax.random.normal(k, shape)).astype(jnp.float32)

    def zeros(*s):
        return jnp.zeros(s, jnp.float32)

    def ones(*s):
        return jnp.ones(s, jnp.float32)

    out_w = jnp.zeros((F, out_pad), jnp.float32)
    out_w = out_w.at[:, :action_size].set(nrm(keys[4], (F, action_size)))

    params = {
        "pos_table": nrm(keys[0], (max_timestep, F)),
        "enc_w": nrm(keys[1], (state_size, F)), "enc_b": zeros(1, F),
        "act_w": nrm(keys[2], (action_size, F)), "act_b": zeros(1, F),
        "rtg_w": nrm(keys[3], (1, F)), "rtg_b": zeros(1, F),
        "embed_ln_g": ones(1, F), "embed_ln_b": zeros(1, F),
        "final_ln_g": ones(1, F), "final_ln_b": zeros(1, F),
        "out_w": out_w, "out_b": zeros(1, out_pad),
        # stacked per-layer GPT2 block weights
        "ln1_g": ones(num_layers, 1, F), "ln1_b": zeros(num_layers, 1, F),
        "qkv_w": jnp.stack([nrm(keys[5 + 4 * l + 0], (F, 3 * F)) for l in range(num_layers)]),
        "qkv_b": zeros(num_layers, 1, 3 * F),
        "proj_w": jnp.stack([nrm(keys[5 + 4 * l + 1], (F, F)) for l in range(num_layers)]),
        "proj_b": zeros(num_layers, 1, F),
        "ln2_g": ones(num_layers, 1, F), "ln2_b": zeros(num_layers, 1, F),
        "fc1_w": jnp.stack([nrm(keys[5 + 4 * l + 2], (F, 4 * F)) for l in range(num_layers)]),
        "fc1_b": zeros(num_layers, 1, 4 * F),
        "fc2_w": jnp.stack([nrm(keys[5 + 4 * l + 3], (4 * F, F)) for l in range(num_layers)]),
        "fc2_b": zeros(num_layers, 1, F),
    }
    return params


# ---------------------------------------------------------------------------
# Main
# ---------------------------------------------------------------------------

if __name__ == "__main__":
    B, C, S, A = 2, 4, 8, 3          # batch, context, state dim, action dim
    F, H, L = 32, 2, 2               # feature (hidden), heads, layers
    MAX_T = 20

    key = jax.random.PRNGKey(0)
    kp, kx, ka, kr = jax.random.split(key, 4)

    params = init_params(kp, state_size=S, action_size=A, feature_size=F,
                         num_layers=L, max_timestep=MAX_T, out_pad=128)

    x = jax.random.normal(kx, (B, C, S), dtype=jnp.float32)
    action = jax.random.normal(ka, (B, C, A), dtype=jnp.float32)
    rtg = jax.random.normal(kr, (B, C, 1), dtype=jnp.float32)
    timesteps = jnp.tile(jnp.arange(C, dtype=jnp.int32), (B, 1))

    fwd = jax.jit(partial(decision_transformer_forward, num_heads=H, action_size=A))
    out = jax.block_until_ready(fwd(params, x, action, rtg, timesteps))

    assert out.shape == (B, C, A), out.shape
    assert bool(jnp.all(jnp.isfinite(out)))
    # TODO(synk): dropout layers (attn/resid/embed) are identity (eval mode).
    print("KERNEL_OK")
</pallas_src>

<mosaic_0001>
module attributes {stable_mosaic.version = 11 : i64} {
  func.func @_dt_forward_kernel(%arg0: i32, %arg1: memref<1x4x8xf32, #tpu.memory_space<vmem>>, %arg2: memref<1x4x3xf32, #tpu.memory_space<vmem>>, %arg3: memref<1x4x1xf32, #tpu.memory_space<vmem>>, %arg4: memref<1x4x32xf32, #tpu.memory_space<vmem>>, %arg5: memref<12x12xf32, #tpu.memory_space<vmem>>, %arg6: memref<8x32xf32, #tpu.memory_space<vmem>>, %arg7: memref<1x32xf32, #tpu.memory_space<vmem>>, %arg8: memref<3x32xf32, #tpu.memory_space<vmem>>, %arg9: memref<1x32xf32, #tpu.memory_space<vmem>>, %arg10: memref<1x32xf32, #tpu.memory_space<vmem>>, %arg11: memref<1x32xf32, #tpu.memory_space<vmem>>, %arg12: memref<1x32xf32, #tpu.memory_space<vmem>>, %arg13: memref<1x32xf32, #tpu.memory_space<vmem>>, %arg14: memref<2x1x32xf32, #tpu.memory_space<vmem>>, %arg15: memref<2x1x32xf32, #tpu.memory_space<vmem>>, %arg16: memref<2x32x96xf32, #tpu.memory_space<vmem>>, %arg17: memref<2x1x96xf32, #tpu.memory_space<vmem>>, %arg18: memref<2x32x32xf32, #tpu.memory_space<vmem>>, %arg19: memref<2x1x32xf32, #tpu.memory_space<vmem>>, %arg20: memref<2x1x32xf32, #tpu.memory_space<vmem>>, %arg21: memref<2x1x32xf32, #tpu.memory_space<vmem>>, %arg22: memref<2x32x128xf32, #tpu.memory_space<vmem>>, %arg23: memref<2x1x128xf32, #tpu.memory_space<vmem>>, %arg24: memref<2x128x32xf32, #tpu.memory_space<vmem>>, %arg25: memref<2x1x32xf32, #tpu.memory_space<vmem>>, %arg26: memref<1x32xf32, #tpu.memory_space<vmem>>, %arg27: memref<1x32xf32, #tpu.memory_space<vmem>>, %arg28: memref<32x128xf32, #tpu.memory_space<vmem>>, %arg29: memref<1x128xf32, #tpu.memory_space<vmem>>, %arg30: memref<1x4x128xf32, #tpu.memory_space<vmem>>) attributes {dimension_semantics = [#tpu.dimension_semantics<parallel>], iteration_bounds = array<i64: 2>, scalar_prefetch = 0 : i64, scratch_operands = 0 : i64, tpu.core_type = #tpu.core_type<tc>, window_params = [{transform_indices = @transform_0, window_bounds = array<i64: 1, 4, 8>}, {transform_indices = @transform_1, window_bounds = array<i64: 1, 4, 3>}, {transform_indices = @transform_2, window_bounds = array<i64: 1, 4, 1>}, {transform_indices = @transform_3, window_bounds = array<i64: 1, 4, 32>}, {pipeline_mode = #tpu.pipeline_mode<synchronous>, transform_indices = @transform_4, window_bounds = array<i64: 12, 12>}, {pipeline_mode = #tpu.pipeline_mode<synchronous>, transform_indices = @transform_5, window_bounds = array<i64: 8, 32>}, {pipeline_mode = #tpu.pipeline_mode<synchronous>, transform_indices = @transform_6, window_bounds = array<i64: 1, 32>}, {pipeline_mode = #tpu.pipeline_mode<synchronous>, transform_indices = @transform_7, window_bounds = array<i64: 3, 32>}, {pipeline_mode = #tpu.pipeline_mode<synchronous>, transform_indices = @transform_8, window_bounds = array<i64: 1, 32>}, {pipeline_mode = #tpu.pipeline_mode<synchronous>, transform_indices = @transform_9, window_bounds = array<i64: 1, 32>}, {pipeline_mode = #tpu.pipeline_mode<synchronous>, transform_indices = @transform_10, window_bounds = array<i64: 1, 32>}, {pipeline_mode = #tpu.pipeline_mode<synchronous>, transform_indices = @transform_11, window_bounds = array<i64: 1, 32>}, {pipeline_mode = #tpu.pipeline_mode<synchronous>, transform_indices = @transform_12, window_bounds = array<i64: 1, 32>}, {pipeline_mode = #tpu.pipeline_mode<synchronous>, transform_indices = @transform_13, window_bounds = array<i64: 2, 1, 32>}, {pipeline_mode = #tpu.pipeline_mode<synchronous>, transform_indices = @transform_14, window_bounds = array<i64: 2, 1, 32>}, {pipeline_mode = #tpu.pipeline_mode<synchronous>, transform_indices = @transform_15, window_bounds = array<i64: 2, 32, 96>}, {pipeline_mode = #tpu.pipeline_mode<synchronous>, transform_indices = @transform_16, window_bounds = array<i64: 2, 1, 96>}, {pipeline_mode = #tpu.pipeline_mode<synchronous>, transform_indices = @transform_17, window_bounds = array<i64: 2, 32, 32>}, {pipeline_mode = #tpu.pipeline_mode<synchronous>, transform_indices = @transform_18, window_bounds = array<i64: 2, 1, 32>}, {pipeline_mode = #tpu.pipeline_mode<synchronous>, transform_indices = @transform_19, window_bounds = array<i64: 2, 1, 32>}, {pipeline_mode = #tpu.pipeline_mode<synchronous>, transform_indices = @transform_20, window_bounds = array<i64: 2, 1, 32>}, {pipeline_mode = #tpu.pipeline_mode<synchronous>, transform_indices = @transform_21, window_bounds = array<i64: 2, 32, 128>}, {pipeline_mode = #tpu.pipeline_mode<synchronous>, transform_indices = @transform_22, window_bounds = array<i64: 2, 1, 128>}, {pipeline_mode = #tpu.pipeline_mode<synchronous>, transform_indices = @transform_23, window_bounds = array<i64: 2, 128, 32>}, {pipeline_mode = #tpu.pipeline_mode<synchronous>, transform_indices = @transform_24, window_bounds = array<i64: 2, 1, 32>}, {pipeline_mode = #tpu.pipeline_mode<synchronous>, transform_indices = @transform_25, window_bounds = array<i64: 1, 32>}, {pipeline_mode = #tpu.pipeline_mode<synchronous>, transform_indices = @transform_26, window_bounds = array<i64: 1, 32>}, {pipeline_mode = #tpu.pipeline_mode<synchronous>, transform_indices = @transform_27, window_bounds = array<i64: 32, 128>}, {pipeline_mode = #tpu.pipeline_mode<synchronous>, transform_indices = @transform_28, window_bounds = array<i64: 1, 128>}, {transform_indices = @transform_29, window_bounds = array<i64: 1, 4, 128>}]} {
    %c0 = arith.constant 0 : index
    %c0_0 = arith.constant 0 : index
    %c0_1 = arith.constant 0 : index
    %0 = vector.load %arg4[%c0, %c0_0, %c0_1] : memref<1x4x32xf32, #tpu.memory_space<vmem>>, vector<1x4x32xf32>
    %1 = vector.shape_cast %0 : vector<1x4x32xf32> to vector<4x32xf32>
    %c0_2 = arith.constant 0 : index
    %c0_3 = arith.constant 0 : index
    %c0_4 = arith.constant 0 : index
    %2 = vector.load %arg1[%c0_2, %c0_3, %c0_4] : memref<1x4x8xf32, #tpu.memory_space<vmem>>, vector<1x4x8xf32>
    %3 = vector.shape_cast %2 : vector<1x4x8xf32> to vector<4x8xf32>
    %c0_5 = arith.constant 0 : index
    %c0_6 = arith.constant 0 : index
    %4 = vector.load %arg6[%c0_5, %c0_6] : memref<8x32xf32, #tpu.memory_space<vmem>>, vector<8x32xf32>
    %cst = arith.constant dense<0.000000e+00> : vector<4x32xf32>
    %5 = tpu.matmul %3, %4, %cst {dimension_numbers = #tpu.dot_dimension_numbers<[1], [0], [0], [1], [0, 0, 1, 1], [], []>} : vector<4x8xf32>, vector<8x32xf32>, vector<4x32xf32> -> vector<4x32xf32>
    %c0_7 = arith.constant 0 : index
    %c0_8 = arith.constant 0 : index
    %6 = vector.load %arg7[%c0_7, %c0_8] : memref<1x32xf32, #tpu.memory_space<vmem>>, vector<1x32xf32>
    %7 = vector.broadcast %6 : vector<1x32xf32> to vector<4x32xf32>
    %8 = arith.addf %5, %7 : vector<4x32xf32>
    %cst_9 = arith.constant 0.000000e+00 : f32
    %9 = vector.broadcast %cst_9 : f32 to vector<4x32xf32>
    %10 = arith.maximumf %8, %9 : vector<4x32xf32>
    %11 = arith.addf %10, %1 : vector<4x32xf32>
    %c0_10 = arith.constant 0 : index
    %c0_11 = arith.constant 0 : index
    %c0_12 = arith.constant 0 : index
    %12 = vector.load %arg2[%c0_10, %c0_11, %c0_12] : memref<1x4x3xf32, #tpu.memory_space<vmem>>, vector<1x4x3xf32>
    %13 = vector.shape_cast %12 : vector<1x4x3xf32> to vector<4x3xf32>
    %c0_13 = arith.constant 0 : index
    %c0_14 = arith.constant 0 : index
    %14 = vector.load %arg8[%c0_13, %c0_14] : memref<3x32xf32, #tpu.memory_space<vmem>>, vector<3x32xf32>
    %cst_15 = arith.constant dense<0.000000e+00> : vector<4x32xf32>
    %15 = tpu.matmul %13, %14, %cst_15 {dimension_numbers = #tpu.dot_dimension_numbers<[1], [0], [0], [1], [0, 0, 1, 1], [], []>} : vector<4x3xf32>, vector<3x32xf32>, vector<4x32xf32> -> vector<4x32xf32>
    %c0_16 = arith.constant 0 : index
    %c0_17 = arith.constant 0 : index
    %16 = vector.load %arg9[%c0_16, %c0_17] : memref<1x32xf32, #tpu.memory_space<vmem>>, vector<1x32xf32>
    %17 = vector.broadcast %16 : vector<1x32xf32> to vector<4x32xf32>
    %18 = arith.addf %15, %17 : vector<4x32xf32>
    %19 = arith.addf %18, %1 : vector<4x32xf32>
    %c0_18 = arith.constant 0 : index
    %c0_19 = arith.constant 0 : index
    %c0_20 = arith.constant 0 : index
    %20 = vector.load %arg3[%c0_18, %c0_19, %c0_20] : memref<1x4x1xf32, #tpu.memory_space<vmem>>, vector<1x4x1xf32>
    %21 = vector.shape_cast %20 : vector<1x4x1xf32> to vector<4x1xf32>
    %c0_21 = arith.constant 0 : index
    %c0_22 = arith.constant 0 : index
    %22 = vector.load %arg10[%c0_21, %c0_22] : memref<1x32xf32, #tpu.memory_space<vmem>>, vector<1x32xf32>
    %cst_23 = arith.constant dense<0.000000e+00> : vector<4x32xf32>
    %23 = tpu.matmul %21, %22, %cst_23 {dimension_numbers = #tpu.dot_dimension_numbers<[1], [0], [0], [1], [0, 0, 1, 1], [], []>} : vector<4x1xf32>, vector<1x32xf32>, vector<4x32xf32> -> vector<4x32xf32>
    %c0_24 = arith.constant 0 : index
    %c0_25 = arith.constant 0 : index
    %24 = vector.load %arg11[%c0_24, %c0_25] : memref<1x32xf32, #tpu.memory_space<vmem>>, vector<1x32xf32>
    %25 = vector.broadcast %24 : vector<1x32xf32> to vector<4x32xf32>
    %26 = arith.addf %23, %25 : vector<4x32xf32>
    %27 = arith.addf %26, %1 : vector<4x32xf32>
    %28 = tpu.concatenate %27, %11, %19 in 0 : vector<4x32xf32>, vector<4x32xf32>, vector<4x32xf32> -> vector<12x32xf32>
    %c0_26 = arith.constant 0 : index
    %c0_27 = arith.constant 0 : index
    %29 = vector.load %arg12[%c0_26, %c0_27] : memref<1x32xf32, #tpu.memory_space<vmem>>, vector<1x32xf32>
    %c0_28 = arith.constant 0 : index
    %c0_29 = arith.constant 0 : index
    %30 = vector.load %arg13[%c0_28, %c0_29] : memref<1x32xf32, #tpu.memory_space<vmem>>, vector<1x32xf32>
    %cst_30 = arith.constant dense<0.000000e+00> : vector<12xf32>
    %31 = vector.multi_reduction <add>, %28, %cst_30 [1] : vector<12x32xf32> to vector<12xf32>
    %32 = vector.shape_cast %31 : vector<12xf32> to vector<12x1xf32>
    %cst_31 = arith.constant 3.200000e+01 : f32
    %33 = vector.broadcast %cst_31 : f32 to vector<12x1xf32>
    %34 = arith.divf %32, %33 : vector<12x1xf32>
    %35 = vector.broadcast %34 : vector<12x1xf32> to vector<12x32xf32>
    %36 = arith.subf %28, %35 : vector<12x32xf32>
    %37 = arith.mulf %36, %36 : vector<12x32xf32>
    %cst_32 = arith.constant dense<0.000000e+00> : vector<12xf32>
    %38 = vector.multi_reduction <add>, %37, %cst_32 [1] : vector<12x32xf32> to vector<12xf32>
    %39 = vector.shape_cast %38 : vector<12xf32> to vector<12x1xf32>
    %cst_33 = arith.constant 3.200000e+01 : f32
    %40 = vector.broadcast %cst_33 : f32 to vector<12x1xf32>
    %41 = arith.divf %39, %40 : vector<12x1xf32>
    %cst_34 = arith.constant 9.99999974E-6 : f32
    %42 = vector.broadcast %cst_34 : f32 to vector<12x1xf32>
    %43 = arith.addf %41, %42 : vector<12x1xf32>
    %44 = math.rsqrt %43 : vector<12x1xf32>
    %45 = vector.broadcast %44 : vector<12x1xf32> to vector<12x32xf32>
    %46 = arith.mulf %36, %45 : vector<12x32xf32>
    %47 = vector.broadcast %29 : vector<1x32xf32> to vector<12x32xf32>
    %48 = arith.mulf %46, %47 : vector<12x32xf32>
    %49 = vector.broadcast %30 : vector<1x32xf32> to vector<12x32xf32>
    %50 = arith.addf %48, %49 : vector<12x32xf32>
    %c0_35 = arith.constant 0 : index
    %c0_36 = arith.constant 0 : index
    %51 = vector.load %arg5[%c0_35, %c0_36] : memref<12x12xf32, #tpu.memory_space<vmem>>, vector<12x12xf32>
    %cst_37 = arith.constant 0.000000e+00 : f32
    %52 = vector.broadcast %cst_37 : f32 to vector<12x12xf32>
    %53 = arith.cmpf ogt, %51, %52 : vector<12x12xf32>
    %c0_38 = arith.constant 0 : index
    %c0_39 = arith.constant 0 : index
    %c0_40 = arith.constant 0 : index
    %54 = vector.load %arg14[%c0_38, %c0_39, %c0_40] : memref<2x1x32xf32, #tpu.memory_space<vmem>>, vector<1x1x32xf32>
    %55 = vector.shape_cast %54 : vector<1x1x32xf32> to vector<1x32xf32>
    %c0_41 = arith.constant 0 : index
    %c0_42 = arith.constant 0 : index
    %c0_43 = arith.constant 0 : index
    %56 = vector.load %arg15[%c0_41, %c0_42, %c0_43] : memref<2x1x32xf32, #tpu.memory_space<vmem>>, vector<1x1x32xf32>
    %57 = vector.shape_cast %56 : vector<1x1x32xf32> to vector<1x32xf32>
    %cst_44 = arith.constant dense<0.000000e+00> : vector<12xf32>
    %58 = vector.multi_reduction <add>, %50, %cst_44 [1] : vector<12x32xf32> to vector<12xf32>
    %59 = vector.shape_cast %58 : vector<12xf32> to vector<12x1xf32>
    %cst_45 = arith.constant 3.200000e+01 : f32
    %60 = vector.broadcast %cst_45 : f32 to vector<12x1xf32>
    %61 = arith.divf %59, %60 : vector<12x1xf32>
    %62 = vector.broadcast %61 : vector<12x1xf32> to vector<12x32xf32>
    %63 = arith.subf %50, %62 : vector<12x32xf32>
    %64 = arith.mulf %63, %63 : vector<12x32xf32>
    %cst_46 = arith.constant dense<0.000000e+00> : vector<12xf32>
    %65 = vector.multi_reduction <add>, %64, %cst_46 [1] : vector<12x32xf32> to vector<12xf32>
    %66 = vector.shape_cast %65 : vector<12xf32> to vector<12x1xf32>
    %cst_47 = arith.constant 3.200000e+01 : f32
    %67 = vector.broadcast %cst_47 : f32 to vector<12x1xf32>
    %68 = arith.divf %66, %67 : vector<12x1xf32>
    %cst_48 = arith.constant 3.000000e-03 : f32
    %69 = vector.broadcast %cst_48 : f32 to vector<12x1xf32>
    %70 = arith.addf %68, %69 : vector<12x1xf32>
    %71 = math.rsqrt %70 : vector<12x1xf32>
    %72 = vector.broadcast %71 : vector<12x1xf32> to vector<12x32xf32>
    %73 = arith.mulf %63, %72 : vector<12x32xf32>
    %74 = vector.broadcast %55 : vector<1x32xf32> to vector<12x32xf32>
    %75 = arith.mulf %73, %74 : vector<12x32xf32>
    %76 = vector.broadcast %57 : vector<1x32xf32> to vector<12x32xf32>
    %77 = arith.addf %75, %76 : vector<12x32xf32>
    %c0_49 = arith.constant 0 : index
    %c0_50 = arith.constant 0 : index
    %c0_51 = arith.constant 0 : index
    %78 = vector.load %arg16[%c0_49, %c0_50, %c0_51] : memref<2x32x96xf32, #tpu.memory_space<vmem>>, vector<1x32x96xf32>
    %79 = vector.shape_cast %78 : vector<1x32x96xf32> to vector<32x96xf32>
    %cst_52 = arith.constant dense<0.000000e+00> : vector<12x96xf32>
    %80 = tpu.matmul %77, %79, %cst_52 {dimension_numbers = #tpu.dot_dimension_numbers<[1], [0], [0], [1], [0, 0, 1, 1], [], []>} : vector<12x32xf32>, vector<32x96xf32>, vector<12x96xf32> -> vector<12x96xf32>
    %c0_53 = arith.constant 0 : index
    %c0_54 = arith.constant 0 : index
    %c0_55 = arith.constant 0 : index
    %81 = vector.load %arg17[%c0_53, %c0_54, %c0_55] : memref<2x1x96xf32, #tpu.memory_space<vmem>>, vector<1x1x96xf32>
    %82 = vector.shape_cast %81 : vector<1x1x96xf32> to vector<1x96xf32>
    %83 = vector.broadcast %82 : vector<1x96xf32> to vector<12x96xf32>
    %84 = arith.addf %80, %83 : vector<12x96xf32>
    %85 = vector.extract_strided_slice %84 {offsets = [0, 0], sizes = [12, 16], strides = [1, 1]} : vector<12x96xf32> to vector<12x16xf32>
    %cst_56 = arith.constant 2.500000e-01 : f32
    %86 = vector.broadcast %cst_56 : f32 to vector<12x16xf32>
    %87 = arith.mulf %85, %86 : vector<12x16xf32>
    %88 = vector.extract_strided_slice %84 {offsets = [0, 32], sizes = [12, 16], strides = [1, 1]} : vector<12x96xf32> to vector<12x16xf32>
    %89 = vector.extract_strided_slice %84 {offsets = [0, 64], sizes = [12, 16], strides = [1, 1]} : vector<12x96xf32> to vector<12x16xf32>
    %90 = tpu.transpose %88, [1, 0] : vector<12x16xf32> -> vector<16x12xf32>
    %cst_57 = arith.constant dense<0.000000e+00> : vector<12x12xf32>
    %91 = tpu.matmul %87, %90, %cst_57 {dimension_numbers = #tpu.dot_dimension_numbers<[1], [0], [0], [1], [0, 0, 1, 1], [], []>} : vector<12x16xf32>, vector<16x12xf32>, vector<12x12xf32> -> vector<12x12xf32>
    %cst_58 = arith.constant -1.000000e+30 : f32
    %92 = vector.broadcast %cst_58 : f32 to vector<12x12xf32>
    %93 = arith.select %53, %91, %92 : vector<12x12xi1>, vector<12x12xf32>
    %cst_59 = arith.constant dense<0xFF800000> : vector<12xf32>
    %94 = vector.multi_reduction <maximumf>, %93, %cst_59 [1] : vector<12x12xf32> to vector<12xf32>
    %95 = vector.shape_cast %94 : vector<12xf32> to vector<12x1xf32>
    %96 = vector.broadcast %95 : vector<12x1xf32> to vector<12x12xf32>
    %97 = arith.subf %93, %96 : vector<12x12xf32>
    %98 = math.exp %97 : vector<12x12xf32>
    %cst_60 = arith.constant dense<0.000000e+00> : vector<12xf32>
    %99 = vector.multi_reduction <add>, %98, %cst_60 [1] : vector<12x12xf32> to vector<12xf32>
    %100 = vector.shape_cast %99 : vector<12xf32> to vector<12x1xf32>
    %101 = tpu.reciprocal %100 {approx = true} : vector<12x1xf32> -> vector<12x1xf32>
    %102 = vector.broadcast %101 : vector<12x1xf32> to vector<12x12xf32>
    %103 = arith.mulf %98, %102 : vector<12x12xf32>
    %cst_61 = arith.constant dense<0.000000e+00> : vector<12x16xf32>
    %104 = tpu.matmul %103, %89, %cst_61 {dimension_numbers = #tpu.dot_dimension_numbers<[1], [0], [0], [1], [0, 0, 1, 1], [], []>} : vector<12x12xf32>, vector<12x16xf32>, vector<12x16xf32> -> vector<12x16xf32>
    %105 = vector.extract_strided_slice %84 {offsets = [0, 16], sizes = [12, 16], strides = [1, 1]} : vector<12x96xf32> to vector<12x16xf32>
    %cst_62 = arith.constant 2.500000e-01 : f32
    %106 = vector.broadcast %cst_62 : f32 to vector<12x16xf32>
    %107 = arith.mulf %105, %106 : vector<12x16xf32>
    %108 = vector.extract_strided_slice %84 {offsets = [0, 48], sizes = [12, 16], strides = [1, 1]} : vector<12x96xf32> to vector<12x16xf32>
    %109 = vector.extract_strided_slice %84 {offsets = [0, 80], sizes = [12, 16], strides = [1, 1]} : vector<12x96xf32> to vector<12x16xf32>
    %110 = tpu.transpose %108, [1, 0] : vector<12x16xf32> -> vector<16x12xf32>
    %cst_63 = arith.constant dense<0.000000e+00> : vector<12x12xf32>
    %111 = tpu.matmul %107, %110, %cst_63 {dimension_numbers = #tpu.dot_dimension_numbers<[1], [0], [0], [1], [0, 0, 1, 1], [], []>} : vector<12x16xf32>, vector<16x12xf32>, vector<12x12xf32> -> vector<12x12xf32>
    %cst_64 = arith.constant -1.000000e+30 : f32
    %112 = vector.broadcast %cst_64 : f32 to vector<12x12xf32>
    %113 = arith.select %53, %111, %112 : vector<12x12xi1>, vector<12x12xf32>
    %cst_65 = arith.constant dense<0xFF800000> : vector<12xf32>
    %114 = vector.multi_reduction <maximumf>, %113, %cst_65 [1] : vector<12x12xf32> to vector<12xf32>
    %115 = vector.shape_cast %114 : vector<12xf32> to vector<12x1xf32>
    %116 = vector.broadcast %115 : vector<12x1xf32> to vector<12x12xf32>
    %117 = arith.subf %113, %116 : vector<12x12xf32>
    %118 = math.exp %117 : vector<12x12xf32>
    %cst_66 = arith.constant dense<0.000000e+00> : vector<12xf32>
    %119 = vector.multi_reduction <add>, %118, %cst_66 [1] : vector<12x12xf32> to vector<12xf32>
    %120 = vector.shape_cast %119 : vector<12xf32> to vector<12x1xf32>
    %121 = tpu.reciprocal %120 {approx = true} : vector<12x1xf32> -> vector<12x1xf32>
    %122 = vector.broadcast %121 : vector<12x1xf32> to vector<12x12xf32>
    %123 = arith.mulf %118, %122 : vector<12x12xf32>
    %cst_67 = arith.constant dense<0.000000e+00> : vector<12x16xf32>
    %124 = tpu.matmul %123, %109, %cst_67 {dimension_numbers = #tpu.dot_dimension_numbers<[1], [0], [0], [1], [0, 0, 1, 1], [], []>} : vector<12x12xf32>, vector<12x16xf32>, vector<12x16xf32> -> vector<12x16xf32>
    %125 = tpu.concatenate %104, %124 in 1 : vector<12x16xf32>, vector<12x16xf32> -> vector<12x32xf32>
    %c0_68 = arith.constant 0 : index
    %c0_69 = arith.constant 0 : index
    %c0_70 = arith.constant 0 : index
    %126 = vector.load %arg18[%c0_68, %c0_69, %c0_70] : memref<2x32x32xf32, #tpu.memory_space<vmem>>, vector<1x32x32xf32>
    %127 = vector.shape_cast %126 : vector<1x32x32xf32> to vector<32x32xf32>
    %cst_71 = arith.constant dense<0.000000e+00> : vector<12x32xf32>
    %128 = tpu.matmul %125, %127, %cst_71 {dimension_numbers = #tpu.dot_dimension_numbers<[1], [0], [0], [1], [0, 0, 1, 1], [], []>} : vector<12x32xf32>, vector<32x32xf32>, vector<12x32xf32> -> vector<12x32xf32>
    %129 = arith.addf %50, %128 : vector<12x32xf32>
    %c0_72 = arith.constant 0 : index
    %c0_73 = arith.constant 0 : index
    %c0_74 = arith.constant 0 : index
    %130 = vector.load %arg19[%c0_72, %c0_73, %c0_74] : memref<2x1x32xf32, #tpu.memory_space<vmem>>, vector<1x1x32xf32>
    %131 = vector.shape_cast %130 : vector<1x1x32xf32> to vector<1x32xf32>
    %132 = vector.broadcast %131 : vector<1x32xf32> to vector<12x32xf32>
    %133 = arith.addf %129, %132 : vector<12x32xf32>
    %c0_75 = arith.constant 0 : index
    %c0_76 = arith.constant 0 : index
    %c0_77 = arith.constant 0 : index
    %134 = vector.load %arg20[%c0_75, %c0_76, %c0_77] : memref<2x1x32xf32, #tpu.memory_space<vmem>>, vector<1x1x32xf32>
    %135 = vector.shape_cast %134 : vector<1x1x32xf32> to vector<1x32xf32>
    %c0_78 = arith.constant 0 : index
    %c0_79 = arith.constant 0 : index
    %c0_80 = arith.constant 0 : index
    %136 = vector.load %arg21[%c0_78, %c0_79, %c0_80] : memref<2x1x32xf32, #tpu.memory_space<vmem>>, vector<1x1x32xf32>
    %137 = vector.shape_cast %136 : vector<1x1x32xf32> to vector<1x32xf32>
    %cst_81 = arith.constant dense<0.000000e+00> : vector<12xf32>
    %138 = vector.multi_reduction <add>, %133, %cst_81 [1] : vector<12x32xf32> to vector<12xf32>
    %139 = vector.shape_cast %138 : vector<12xf32> to vector<12x1xf32>
    %cst_82 = arith.constant 3.200000e+01 : f32
    %140 = vector.broadcast %cst_82 : f32 to vector<12x1xf32>
    %141 = arith.divf %139, %140 : vector<12x1xf32>
    %142 = vector.broadcast %141 : vector<12x1xf32> to vector<12x32xf32>
    %143 = arith.subf %133, %142 : vector<12x32xf32>
    %144 = arith.mulf %143, %143 : vector<12x32xf32>
    %cst_83 = arith.constant dense<0.000000e+00> : vector<12xf32>
    %145 = vector.multi_reduction <add>, %144, %cst_83 [1] : vector<12x32xf32> to vector<12xf32>
    %146 = vector.shape_cast %145 : vector<12xf32> to vector<12x1xf32>
    %cst_84 = arith.constant 3.200000e+01 : f32
    %147 = vector.broadcast %cst_84 : f32 to vector<12x1xf32>
    %148 = arith.divf %146, %147 : vector<12x1xf32>
    %cst_85 = arith.constant 3.000000e-03 : f32
    %149 = vector.broadcast %cst_85 : f32 to vector<12x1xf32>
    %150 = arith.addf %148, %149 : vector<12x1xf32>
    %151 = math.rsqrt %150 : vector<12x1xf32>
    %152 = vector.broadcast %151 : vector<12x1xf32> to vector<12x32xf32>
    %153 = arith.mulf %143, %152 : vector<12x32xf32>
    %154 = vector.broadcast %135 : vector<1x32xf32> to vector<12x32xf32>
    %155 = arith.mulf %153, %154 : vector<12x32xf32>
    %156 = vector.broadcast %137 : vector<1x32xf32> to vector<12x32xf32>
    %157 = arith.addf %155, %156 : vector<12x32xf32>
    %c0_86 = arith.constant 0 : index
    %c0_87 = arith.constant 0 : index
    %c0_88 = arith.constant 0 : index
    %158 = vector.load %arg22[%c0_86, %c0_87, %c0_88] : memref<2x32x128xf32, #tpu.memory_space<vmem>>, vector<1x32x128xf32>
    %159 = vector.shape_cast %158 : vector<1x32x128xf32> to vector<32x128xf32>
    %cst_89 = arith.constant dense<0.000000e+00> : vector<12x128xf32>
    %160 = tpu.matmul %157, %159, %cst_89 {dimension_numbers = #tpu.dot_dimension_numbers<[1], [0], [0], [1], [0, 0, 1, 1], [], []>} : vector<12x32xf32>, vector<32x128xf32>, vector<12x128xf32> -> vector<12x128xf32>
    %c0_90 = arith.constant 0 : index
    %c0_91 = arith.constant 0 : index
    %c0_92 = arith.constant 0 : index
    %161 = vector.load %arg23[%c0_90, %c0_91, %c0_92] : memref<2x1x128xf32, #tpu.memory_space<vmem>>, vector<1x1x128xf32>
    %162 = vector.shape_cast %161 : vector<1x1x128xf32> to vector<1x128xf32>
    %163 = vector.broadcast %162 : vector<1x128xf32> to vector<12x128xf32>
    %164 = arith.addf %160, %163 : vector<12x128xf32>
    %165 = arith.mulf %164, %164 : vector<12x128xf32>
    %166 = arith.mulf %164, %165 : vector<12x128xf32>
    %cst_93 = arith.constant 4.471500e-02 : f32
    %167 = vector.broadcast %cst_93 : f32 to vector<12x128xf32>
    %168 = arith.mulf %167, %166 : vector<12x128xf32>
    %169 = arith.addf %164, %168 : vector<12x128xf32>
    %cst_94 = arith.constant 0.797884583 : f32
    %170 = vector.broadcast %cst_94 : f32 to vector<12x128xf32>
    %171 = arith.mulf %170, %169 : vector<12x128xf32>
    %172 = math.tanh %171 : vector<12x128xf32>
    %cst_95 = arith.constant 1.000000e+00 : f32
    %173 = vector.broadcast %cst_95 : f32 to vector<12x128xf32>
    %174 = arith.addf %173, %172 : vector<12x128xf32>
    %cst_96 = arith.constant 5.000000e-01 : f32
    %175 = vector.broadcast %cst_96 : f32 to vector<12x128xf32>
    %176 = arith.mulf %175, %174 : vector<12x128xf32>
    %177 = arith.mulf %164, %176 : vector<12x128xf32>
    %c0_97 = arith.constant 0 : index
    %c0_98 = arith.constant 0 : index
    %c0_99 = arith.constant 0 : index
    %178 = vector.load %arg24[%c0_97, %c0_98, %c0_99] : memref<2x128x32xf32, #tpu.memory_space<vmem>>, vector<1x128x32xf32>
    %179 = vector.shape_cast %178 : vector<1x128x32xf32> to vector<128x32xf32>
    %cst_100 = arith.constant dense<0.000000e+00> : vector<12x32xf32>
    %180 = tpu.matmul %177, %179, %cst_100 {dimension_numbers = #tpu.dot_dimension_numbers<[1], [0], [0], [1], [0, 0, 1, 1], [], []>} : vector<12x128xf32>, vector<128x32xf32>, vector<12x32xf32> -> vector<12x32xf32>
    %181 = arith.addf %133, %180 : vector<12x32xf32>
    %c0_101 = arith.constant 0 : index
    %c0_102 = arith.constant 0 : index
    %c0_103 = arith.constant 0 : index
    %182 = vector.load %arg25[%c0_101, %c0_102, %c0_103] : memref<2x1x32xf32, #tpu.memory_space<vmem>>, vector<1x1x32xf32>
    %183 = vector.shape_cast %182 : vector<1x1x32xf32> to vector<1x32xf32>
    %184 = vector.broadcast %183 : vector<1x32xf32> to vector<12x32xf32>
    %185 = arith.addf %181, %184 : vector<12x32xf32>
    %c1 = arith.constant 1 : index
    %c0_104 = arith.constant 0 : index
    %c0_105 = arith.constant 0 : index
    %186 = vector.load %arg14[%c1, %c0_104, %c0_105] : memref<2x1x32xf32, #tpu.memory_space<vmem>>, vector<1x1x32xf32>
    %187 = vector.shape_cast %186 : vector<1x1x32xf32> to vector<1x32xf32>
    %c1_106 = arith.constant 1 : index
    %c0_107 = arith.constant 0 : index
    %c0_108 = arith.constant 0 : index
    %188 = vector.load %arg15[%c1_106, %c0_107, %c0_108] : memref<2x1x32xf32, #tpu.memory_space<vmem>>, vector<1x1x32xf32>
    %189 = vector.shape_cast %188 : vector<1x1x32xf32> to vector<1x32xf32>
    %cst_109 = arith.constant dense<0.000000e+00> : vector<12xf32>
    %190 = vector.multi_reduction <add>, %185, %cst_109 [1] : vector<12x32xf32> to vector<12xf32>
    %191 = vector.shape_cast %190 : vector<12xf32> to vector<12x1xf32>
    %cst_110 = arith.constant 3.200000e+01 : f32
    %192 = vector.broadcast %cst_110 : f32 to vector<12x1xf32>
    %193 = arith.divf %191, %192 : vector<12x1xf32>
    %194 = vector.broadcast %193 : vector<12x1xf32> to vector<12x32xf32>
    %195 = arith.subf %185, %194 : vector<12x32xf32>
    %196 = arith.mulf %195, %195 : vector<12x32xf32>
    %cst_111 = arith.constant dense<0.000000e+00> : vector<12xf32>
    %197 = vector.multi_reduction <add>, %196, %cst_111 [1] : vector<12x32xf32> to vector<12xf32>
    %198 = vector.shape_cast %197 : vector<12xf32> to vector<12x1xf32>
    %cst_112 = arith.constant 3.200000e+01 : f32
    %199 = vector.broadcast %cst_112 : f32 to vector<12x1xf32>
    %200 = arith.divf %198, %199 : vector<12x1xf32>
    %cst_113 = arith.constant 3.000000e-03 : f32
    %201 = vector.broadcast %cst_113 : f32 to vector<12x1xf32>
    %202 = arith.addf %200, %201 : vector<12x1xf32>
    %203 = math.rsqrt %202 : vector<12x1xf32>
    %204 = vector.broadcast %203 : vector<12x1xf32> to vector<12x32xf32>
    %205 = arith.mulf %195, %204 : vector<12x32xf32>
    %206 = vector.broadcast %187 : vector<1x32xf32> to vector<12x32xf32>
    %207 = arith.mulf %205, %206 : vector<12x32xf32>
    %208 = vector.broadcast %189 : vector<1x32xf32> to vector<12x32xf32>
    %209 = arith.addf %207, %208 : vector<12x32xf32>
    %c1_114 = arith.constant 1 : index
    %c0_115 = arith.constant 0 : index
    %c0_116 = arith.constant 0 : index
    %210 = vector.load %arg16[%c1_114, %c0_115, %c0_116] : memref<2x32x96xf32, #tpu.memory_space<vmem>>, vector<1x32x96xf32>
    %211 = vector.shape_cast %210 : vector<1x32x96xf32> to vector<32x96xf32>
    %cst_117 = arith.constant dense<0.000000e+00> : vector<12x96xf32>
    %212 = tpu.matmul %209, %211, %cst_117 {dimension_numbers = #tpu.dot_dimension_numbers<[1], [0], [0], [1], [0, 0, 1, 1], [], []>} : vector<12x32xf32>, vector<32x96xf32>, vector<12x96xf32> -> vector<12x96xf32>
    %c1_118 = arith.constant 1 : index
    %c0_119 = arith.constant 0 : index
    %c0_120 = arith.constant 0 : index
    %213 = vector.load %arg17[%c1_118, %c0_119, %c0_120] : memref<2x1x96xf32, #tpu.memory_space<vmem>>, vector<1x1x96xf32>
    %214 = vector.shape_cast %213 : vector<1x1x96xf32> to vector<1x96xf32>
    %215 = vector.broadcast %214 : vector<1x96xf32> to vector<12x96xf32>
    %216 = arith.addf %212, %215 : vector<12x96xf32>
    %217 = vector.extract_strided_slice %216 {offsets = [0, 0], sizes = [12, 16], strides = [1, 1]} : vector<12x96xf32> to vector<12x16xf32>
    %cst_121 = arith.constant 2.500000e-01 : f32
    %218 = vector.broadcast %cst_121 : f32 to vector<12x16xf32>
    %219 = arith.mulf %217, %218 : vector<12x16xf32>
    %220 = vector.extract_strided_slice %216 {offsets = [0, 32], sizes = [12, 16], strides = [1, 1]} : vector<12x96xf32> to vector<12x16xf32>
    %221 = vector.extract_strided_slice %216 {offsets = [0, 64], sizes = [12, 16], strides = [1, 1]} : vector<12x96xf32> to vector<12x16xf32>
    %222 = tpu.transpose %220, [1, 0] : vector<12x16xf32> -> vector<16x12xf32>
    %cst_122 = arith.constant dense<0.000000e+00> : vector<12x12xf32>
    %223 = tpu.matmul %219, %222, %cst_122 {dimension_numbers = #tpu.dot_dimension_numbers<[1], [0], [0], [1], [0, 0, 1, 1], [], []>} : vector<12x16xf32>, vector<16x12xf32>, vector<12x12xf32> -> vector<12x12xf32>
    %cst_123 = arith.constant -1.000000e+30 : f32
    %224 = vector.broadcast %cst_123 : f32 to vector<12x12xf32>
    %225 = arith.select %53, %223, %224 : vector<12x12xi1>, vector<12x12xf32>
    %cst_124 = arith.constant dense<0xFF800000> : vector<12xf32>
    %226 = vector.multi_reduction <maximumf>, %225, %cst_124 [1] : vector<12x12xf32> to vector<12xf32>
    %227 = vector.shape_cast %226 : vector<12xf32> to vector<12x1xf32>
    %228 = vector.broadcast %227 : vector<12x1xf32> to vector<12x12xf32>
    %229 = arith.subf %225, %228 : vector<12x12xf32>
    %230 = math.exp %229 : vector<12x12xf32>
    %cst_125 = arith.constant dense<0.000000e+00> : vector<12xf32>
    %231 = vector.multi_reduction <add>, %230, %cst_125 [1] : vector<12x12xf32> to vector<12xf32>
    %232 = vector.shape_cast %231 : vector<12xf32> to vector<12x1xf32>
    %233 = tpu.reciprocal %232 {approx = true} : vector<12x1xf32> -> vector<12x1xf32>
    %234 = vector.broadcast %233 : vector<12x1xf32> to vector<12x12xf32>
    %235 = arith.mulf %230, %234 : vector<12x12xf32>
    %cst_126 = arith.constant dense<0.000000e+00> : vector<12x16xf32>
    %236 = tpu.matmul %235, %221, %cst_126 {dimension_numbers = #tpu.dot_dimension_numbers<[1], [0], [0], [1], [0, 0, 1, 1], [], []>} : vector<12x12xf32>, vector<12x16xf32>, vector<12x16xf32> -> vector<12x16xf32>
    %237 = vector.extract_strided_slice %216 {offsets = [0, 16], sizes = [12, 16], strides = [1, 1]} : vector<12x96xf32> to vector<12x16xf32>
    %cst_127 = arith.constant 2.500000e-01 : f32
    %238 = vector.broadcast %cst_127 : f32 to vector<12x16xf32>
    %239 = arith.mulf %237, %238 : vector<12x16xf32>
    %240 = vector.extract_strided_slice %216 {offsets = [0, 48], sizes = [12, 16], strides = [1, 1]} : vector<12x96xf32> to vector<12x16xf32>
    %241 = vector.extract_strided_slice %216 {offsets = [0, 80], sizes = [12, 16], strides = [1, 1]} : vector<12x96xf32> to vector<12x16xf32>
    %242 = tpu.transpose %240, [1, 0] : vector<12x16xf32> -> vector<16x12xf32>
    %cst_128 = arith.constant dense<0.000000e+00> : vector<12x12xf32>
    %243 = tpu.matmul %239, %242, %cst_128 {dimension_numbers = #tpu.dot_dimension_numbers<[1], [0], [0], [1], [0, 0, 1, 1], [], []>} : vector<12x16xf32>, vector<16x12xf32>, vector<12x12xf32> -> vector<12x12xf32>
    %cst_129 = arith.constant -1.000000e+30 : f32
    %244 = vector.broadcast %cst_129 : f32 to vector<12x12xf32>
    %245 = arith.select %53, %243, %244 : vector<12x12xi1>, vector<12x12xf32>
    %cst_130 = arith.constant dense<0xFF800000> : vector<12xf32>
    %246 = vector.multi_reduction <maximumf>, %245, %cst_130 [1] : vector<12x12xf32> to vector<12xf32>
    %247 = vector.shape_cast %246 : vector<12xf32> to vector<12x1xf32>
    %248 = vector.broadcast %247 : vector<12x1xf32> to vector<12x12xf32>
    %249 = arith.subf %245, %248 : vector<12x12xf32>
    %250 = math.exp %249 : vector<12x12xf32>
    %cst_131 = arith.constant dense<0.000000e+00> : vector<12xf32>
    %251 = vector.multi_reduction <add>, %250, %cst_131 [1] : vector<12x12xf32> to vector<12xf32>
    %252 = vector.shape_cast %251 : vector<12xf32> to vector<12x1xf32>
    %253 = tpu.reciprocal %252 {approx = true} : vector<12x1xf32> -> vector<12x1xf32>
    %254 = vector.broadcast %253 : vector<12x1xf32> to vector<12x12xf32>
    %255 = arith.mulf %250, %254 : vector<12x12xf32>
    %cst_132 = arith.constant dense<0.000000e+00> : vector<12x16xf32>
    %256 = tpu.matmul %255, %241, %cst_132 {dimension_numbers = #tpu.dot_dimension_numbers<[1], [0], [0], [1], [0, 0, 1, 1], [], []>} : vector<12x12xf32>, vector<12x16xf32>, vector<12x16xf32> -> vector<12x16xf32>
    %257 = tpu.concatenate %236, %256 in 1 : vector<12x16xf32>, vector<12x16xf32> -> vector<12x32xf32>
    %c1_133 = arith.constant 1 : index
    %c0_134 = arith.constant 0 : index
    %c0_135 = arith.constant 0 : index
    %258 = vector.load %arg18[%c1_133, %c0_134, %c0_135] : memref<2x32x32xf32, #tpu.memory_space<vmem>>, vector<1x32x32xf32>
    %259 = vector.shape_cast %258 : vector<1x32x32xf32> to vector<32x32xf32>
    %cst_136 = arith.constant dense<0.000000e+00> : vector<12x32xf32>
    %260 = tpu.matmul %257, %259, %cst_136 {dimension_numbers = #tpu.dot_dimension_numbers<[1], [0], [0], [1], [0, 0, 1, 1], [], []>} : vector<12x32xf32>, vector<32x32xf32>, vector<12x32xf32> -> vector<12x32xf32>
    %261 = arith.addf %185, %260 : vector<12x32xf32>
    %c1_137 = arith.constant 1 : index
    %c0_138 = arith.constant 0 : index
    %c0_139 = arith.constant 0 : index
    %262 = vector.load %arg19[%c1_137, %c0_138, %c0_139] : memref<2x1x32xf32, #tpu.memory_space<vmem>>, vector<1x1x32xf32>
    %263 = vector.shape_cast %262 : vector<1x1x32xf32> to vector<1x32xf32>
    %264 = vector.broadcast %263 : vector<1x32xf32> to vector<12x32xf32>
    %265 = arith.addf %261, %264 : vector<12x32xf32>
    %c1_140 = arith.constant 1 : index
    %c0_141 = arith.constant 0 : index
    %c0_142 = arith.constant 0 : index
    %266 = vector.load %arg20[%c1_140, %c0_141, %c0_142] : memref<2x1x32xf32, #tpu.memory_space<vmem>>, vector<1x1x32xf32>
    %267 = vector.shape_cast %266 : vector<1x1x32xf32> to vector<1x32xf32>
    %c1_143 = arith.constant 1 : index
    %c0_144 = arith.constant 0 : index
    %c0_145 = arith.constant 0 : index
    %268 = vector.load %arg21[%c1_143, %c0_144, %c0_145] : memref<2x1x32xf32, #tpu.memory_space<vmem>>, vector<1x1x32xf32>
    %269 = vector.shape_cast %268 : vector<1x1x32xf32> to vector<1x32xf32>
    %cst_146 = arith.constant dense<0.000000e+00> : vector<12xf32>
    %270 = vector.multi_reduction <add>, %265, %cst_146 [1] : vector<12x32xf32> to vector<12xf32>
    %271 = vector.shape_cast %270 : vector<12xf32> to vector<12x1xf32>
    %cst_147 = arith.constant 3.200000e+01 : f32
    %272 = vector.broadcast %cst_147 : f32 to vector<12x1xf32>
    %273 = arith.divf %271, %272 : vector<12x1xf32>
    %274 = vector.broadcast %273 : vector<12x1xf32> to vector<12x32xf32>
    %275 = arith.subf %265, %274 : vector<12x32xf32>
    %276 = arith.mulf %275, %275 : vector<12x32xf32>
    %cst_148 = arith.constant dense<0.000000e+00> : vector<12xf32>
    %277 = vector.multi_reduction <add>, %276, %cst_148 [1] : vector<12x32xf32> to vector<12xf32>
    %278 = vector.shape_cast %277 : vector<12xf32> to vector<12x1xf32>
    %cst_149 = arith.constant 3.200000e+01 : f32
    %279 = vector.broadcast %cst_149 : f32 to vector<12x1xf32>
    %280 = arith.divf %278, %279 : vector<12x1xf32>
    %cst_150 = arith.constant 3.000000e-03 : f32
    %281 = vector.broadcast %cst_150 : f32 to vector<12x1xf32>
    %282 = arith.addf %280, %281 : vector<12x1xf32>
    %283 = math.rsqrt %282 : vector<12x1xf32>
    %284 = vector.broadcast %283 : vector<12x1xf32> to vector<12x32xf32>
    %285 = arith.mulf %275, %284 : vector<12x32xf32>
    %286 = vector.broadcast %267 : vector<1x32xf32> to vector<12x32xf32>
    %287 = arith.mulf %285, %286 : vector<12x32xf32>
    %288 = vector.broadcast %269 : vector<1x32xf32> to vector<12x32xf32>
    %289 = arith.addf %287, %288 : vector<12x32xf32>
    %c1_151 = arith.constant 1 : index
    %c0_152 = arith.constant 0 : index
    %c0_153 = arith.constant 0 : index
    %290 = vector.load %arg22[%c1_151, %c0_152, %c0_153] : memref<2x32x128xf32, #tpu.memory_space<vmem>>, vector<1x32x128xf32>
    %291 = vector.shape_cast %290 : vector<1x32x128xf32> to vector<32x128xf32>
    %cst_154 = arith.constant dense<0.000000e+00> : vector<12x128xf32>
    %292 = tpu.matmul %289, %291, %cst_154 {dimension_numbers = #tpu.dot_dimension_numbers<[1], [0], [0], [1], [0, 0, 1, 1], [], []>} : vector<12x32xf32>, vector<32x128xf32>, vector<12x128xf32> -> vector<12x128xf32>
    %c1_155 = arith.constant 1 : index
    %c0_156 = arith.constant 0 : index
    %c0_157 = arith.constant 0 : index
    %293 = vector.load %arg23[%c1_155, %c0_156, %c0_157] : memref<2x1x128xf32, #tpu.memory_space<vmem>>, vector<1x1x128xf32>
    %294 = vector.shape_cast %293 : vector<1x1x128xf32> to vector<1x128xf32>
    %295 = vector.broadcast %294 : vector<1x128xf32> to vector<12x128xf32>
    %296 = arith.addf %292, %295 : vector<12x128xf32>
    %297 = arith.mulf %296, %296 : vector<12x128xf32>
    %298 = arith.mulf %296, %297 : vector<12x128xf32>
    %cst_158 = arith.constant 4.471500e-02 : f32
    %299 = vector.broadcast %cst_158 : f32 to vector<12x128xf32>
    %300 = arith.mulf %299, %298 : vector<12x128xf32>
    %301 = arith.addf %296, %300 : vector<12x128xf32>
    %cst_159 = arith.constant 0.797884583 : f32
    %302 = vector.broadcast %cst_159 : f32 to vector<12x128xf32>
    %303 = arith.mulf %302, %301 : vector<12x128xf32>
    %304 = math.tanh %303 : vector<12x128xf32>
    %cst_160 = arith.constant 1.000000e+00 : f32
    %305 = vector.broadcast %cst_160 : f32 to vector<12x128xf32>
    %306 = arith.addf %305, %304 : vector<12x128xf32>
    %cst_161 = arith.constant 5.000000e-01 : f32
    %307 = vector.broadcast %cst_161 : f32 to vector<12x128xf32>
    %308 = arith.mulf %307, %306 : vector<12x128xf32>
    %309 = arith.mulf %296, %308 : vector<12x128xf32>
    %c1_162 = arith.constant 1 : index
    %c0_163 = arith.constant 0 : index
    %c0_164 = arith.constant 0 : index
    %310 = vector.load %arg24[%c1_162, %c0_163, %c0_164] : memref<2x128x32xf32, #tpu.memory_space<vmem>>, vector<1x128x32xf32>
    %311 = vector.shape_cast %310 : vector<1x128x32xf32> to vector<128x32xf32>
    %cst_165 = arith.constant dense<0.000000e+00> : vector<12x32xf32>
    %312 = tpu.matmul %309, %311, %cst_165 {dimension_numbers = #tpu.dot_dimension_numbers<[1], [0], [0], [1], [0, 0, 1, 1], [], []>} : vector<12x128xf32>, vector<128x32xf32>, vector<12x32xf32> -> vector<12x32xf32>
    %313 = arith.addf %265, %312 : vector<12x32xf32>
    %c1_166 = arith.constant 1 : index
    %c0_167 = arith.constant 0 : index
    %c0_168 = arith.constant 0 : index
    %314 = vector.load %arg25[%c1_166, %c0_167, %c0_168] : memref<2x1x32xf32, #tpu.memory_space<vmem>>, vector<1x1x32xf32>
    %315 = vector.shape_cast %314 : vector<1x1x32xf32> to vector<1x32xf32>
    %316 = vector.broadcast %315 : vector<1x32xf32> to vector<12x32xf32>
    %317 = arith.addf %313, %316 : vector<12x32xf32>
    %c0_169 = arith.constant 0 : index
    %c0_170 = arith.constant 0 : index
    %318 = vector.load %arg26[%c0_169, %c0_170] : memref<1x32xf32, #tpu.memory_space<vmem>>, vector<1x32xf32>
    %c0_171 = arith.constant 0 : index
    %c0_172 = arith.constant 0 : index
    %319 = vector.load %arg27[%c0_171, %c0_172] : memref<1x32xf32, #tpu.memory_space<vmem>>, vector<1x32xf32>
    %cst_173 = arith.constant dense<0.000000e+00> : vector<12xf32>
    %320 = vector.multi_reduction <add>, %317, %cst_173 [1] : vector<12x32xf32> to vector<12xf32>
    %321 = vector.shape_cast %320 : vector<12xf32> to vector<12x1xf32>
    %cst_174 = arith.constant 3.200000e+01 : f32
    %322 = vector.broadcast %cst_174 : f32 to vector<12x1xf32>
    %323 = arith.divf %321, %322 : vector<12x1xf32>
    %324 = vector.broadcast %323 : vector<12x1xf32> to vector<12x32xf32>
    %325 = arith.subf %317, %324 : vector<12x32xf32>
    %326 = arith.mulf %325, %325 : vector<12x32xf32>
    %cst_175 = arith.constant dense<0.000000e+00> : vector<12xf32>
    %327 = vector.multi_reduction <add>, %326, %cst_175 [1] : vector<12x32xf32> to vector<12xf32>
    %328 = vector.shape_cast %327 : vector<12xf32> to vector<12x1xf32>
    %cst_176 = arith.constant 3.200000e+01 : f32
    %329 = vector.broadcast %cst_176 : f32 to vector<12x1xf32>
    %330 = arith.divf %328, %329 : vector<12x1xf32>
    %cst_177 = arith.constant 3.000000e-03 : f32
    %331 = vector.broadcast %cst_177 : f32 to vector<12x1xf32>
    %332 = arith.addf %330, %331 : vector<12x1xf32>
    %333 = math.rsqrt %332 : vector<12x1xf32>
    %334 = vector.broadcast %333 : vector<12x1xf32> to vector<12x32xf32>
    %335 = arith.mulf %325, %334 : vector<12x32xf32>
    %336 = vector.broadcast %318 : vector<1x32xf32> to vector<12x32xf32>
    %337 = arith.mulf %335, %336 : vector<12x32xf32>
    %338 = vector.broadcast %319 : vector<1x32xf32> to vector<12x32xf32>
    %339 = arith.addf %337, %338 : vector<12x32xf32>
    %340 = vector.extract_strided_slice %339 {offsets = [4, 0], sizes = [4, 32], strides = [1, 1]} : vector<12x32xf32> to vector<4x32xf32>
    %c0_178 = arith.constant 0 : index
    %c0_179 = arith.constant 0 : index
    %341 = vector.load %arg28[%c0_178, %c0_179] : memref<32x128xf32, #tpu.memory_space<vmem>>, vector<32x128xf32>
    %cst_180 = arith.constant dense<0.000000e+00> : vector<4x128xf32>
    %342 = tpu.matmul %340, %341, %cst_180 {dimension_numbers = #tpu.dot_dimension_numbers<[1], [0], [0], [1], [0, 0, 1, 1], [], []>} : vector<4x32xf32>, vector<32x128xf32>, vector<4x128xf32> -> vector<4x128xf32>
    %c0_181 = arith.constant 0 : index
    %c0_182 = arith.constant 0 : index
    %343 = vector.load %arg29[%c0_181, %c0_182] : memref<1x128xf32, #tpu.memory_space<vmem>>, vector<1x128xf32>
    %344 = vector.broadcast %343 : vector<1x128xf32> to vector<4x128xf32>
    %345 = arith.addf %342, %344 : vector<4x128xf32>
    %346 = math.tanh %345 : vector<4x128xf32>
    %c0_183 = arith.constant 0 : index
    %c0_184 = arith.constant 0 : index
    %c0_185 = arith.constant 0 : index
    %347 = vector.load %arg30[%c0_183, %c0_184, %c0_185] : memref<1x4x128xf32, #tpu.memory_space<vmem>>, vector<1x4x128xf32>
    %348 = vector.shape_cast %347 : vector<1x4x128xf32> to vector<4x128xf32>
    %349 = vector.shape_cast %346 : vector<4x128xf32> to vector<1x4x128xf32>
    tpu.vector_store %arg30[%c0_183, %c0_184, %c0_185], %349 {strides = array<i32>} : memref<1x4x128xf32, #tpu.memory_space<vmem>>, vector<1x4x128xf32>,
    return
  }
  func.func @transform_0(%arg0: i32) -> (i32, i32, i32) {
    %c0_i32 = arith.constant 0 : i32
    %c0_i32_0 = arith.constant 0 : i32
    %c0_i32_1 = arith.constant 0 : i32
    return %arg0, %c0_i32, %c0_i32_0 : i32, i32, i32
  }
  func.func @transform_1(%arg0: i32) -> (i32, i32, i32) {
    %c0_i32 = arith.constant 0 : i32
    %c0_i32_0 = arith.constant 0 : i32
    %c0_i32_1 = arith.constant 0 : i32
    return %arg0, %c0_i32, %c0_i32_0 : i32, i32, i32
  }
  func.func @transform_2(%arg0: i32) -> (i32, i32, i32) {
    %c0_i32 = arith.constant 0 : i32
    %c0_i32_0 = arith.constant 0 : i32
    %c0_i32_1 = arith.constant 0 : i32
    return %arg0, %c0_i32, %c0_i32_0 : i32, i32, i32
  }
  func.func @transform_3(%arg0: i32) -> (i32, i32, i32) {
    %c0_i32 = arith.constant 0 : i32
    %c0_i32_0 = arith.constant 0 : i32
    %c0_i32_1 = arith.constant 0 : i32
    return %arg0, %c0_i32, %c0_i32_0 : i32, i32, i32
  }
  func.func @transform_4(%arg0: i32) -> (i32, i32) {
    %c0_i32 = arith.constant 0 : i32
    %c0_i32_0 = arith.constant 0 : i32
    %c0_i32_1 = arith.constant 0 : i32
    return %c0_i32, %c0_i32_0 : i32, i32
  }
  func.func @transform_5(%arg0: i32) -> (i32, i32) {
    %c0_i32 = arith.constant 0 : i32
    %c0_i32_0 = arith.constant 0 : i32
    %c0_i32_1 = arith.constant 0 : i32
    return %c0_i32, %c0_i32_0 : i32, i32
  }
  func.func @transform_6(%arg0: i32) -> (i32, i32) {
    %c0_i32 = arith.constant 0 : i32
    %c0_i32_0 = arith.constant 0 : i32
    %c0_i32_1 = arith.constant 0 : i32
    return %c0_i32, %c0_i32_0 : i32, i32
  }
  func.func @transform_7(%arg0: i32) -> (i32, i32) {
    %c0_i32 = arith.constant 0 : i32
    %c0_i32_0 = arith.constant 0 : i32
    %c0_i32_1 = arith.constant 0 : i32
    return %c0_i32, %c0_i32_0 : i32, i32
  }
  func.func @transform_8(%arg0: i32) -> (i32, i32) {
    %c0_i32 = arith.constant 0 : i32
    %c0_i32_0 = arith.constant 0 : i32
    %c0_i32_1 = arith.constant 0 : i32
    return %c0_i32, %c0_i32_0 : i32, i32
  }
  func.func @transform_9(%arg0: i32) -> (i32, i32) {
    %c0_i32 = arith.constant 0 : i32
    %c0_i32_0 = arith.constant 0 : i32
    %c0_i32_1 = arith.constant 0 : i32
    return %c0_i32, %c0_i32_0 : i32, i32
  }
  func.func @transform_10(%arg0: i32) -> (i32, i32) {
    %c0_i32 = arith.constant 0 : i32
    %c0_i32_0 = arith.constant 0 : i32
    %c0_i32_1 = arith.constant 0 : i32
    return %c0_i32, %c0_i32_0 : i32, i32
  }
  func.func @transform_11(%arg0: i32) -> (i32, i32) {
    %c0_i32 = arith.constant 0 : i32
    %c0_i32_0 = arith.constant 0 : i32
    %c0_i32_1 = arith.constant 0 : i32
    return %c0_i32, %c0_i32_0 : i32, i32
  }
  func.func @transform_12(%arg0: i32) -> (i32, i32) {
    %c0_i32 = arith.constant 0 : i32
    %c0_i32_0 = arith.constant 0 : i32
    %c0_i32_1 = arith.constant 0 : i32
    return %c0_i32, %c0_i32_0 : i32, i32
  }
  func.func @transform_13(%arg0: i32) -> (i32, i32, i32) {
    %c0_i32 = arith.constant 0 : i32
    %c0_i32_0 = arith.constant 0 : i32
    %c0_i32_1 = arith.constant 0 : i32
    %c0_i32_2 = arith.constant 0 : i32
    return %c0_i32, %c0_i32_0, %c0_i32_1 : i32, i32, i32
  }
  func.func @transform_14(%arg0: i32) -> (i32, i32, i32) {
    %c0_i32 = arith.constant 0 : i32
    %c0_i32_0 = arith.constant 0 : i32
    %c0_i32_1 = arith.constant 0 : i32
    %c0_i32_2 = arith.constant 0 : i32
    return %c0_i32, %c0_i32_0, %c0_i32_1 : i32, i32, i32
  }
  func.func @transform_15(%arg0: i32) -> (i32, i32, i32) {
    %c0_i32 = arith.constant 0 : i32
    %c0_i32_0 = arith.constant 0 : i32
    %c0_i32_1 = arith.constant 0 : i32
    %c0_i32_2 = arith.constant 0 : i32
    return %c0_i32, %c0_i32_0, %c0_i32_1 : i32, i32, i32
  }
  func.func @transform_16(%arg0: i32) -> (i32, i32, i32) {
    %c0_i32 = arith.constant 0 : i32
    %c0_i32_0 = arith.constant 0 : i32
    %c0_i32_1 = arith.constant 0 : i32
    %c0_i32_2 = arith.constant 0 : i32
    return %c0_i32, %c0_i32_0, %c0_i32_1 : i32, i32, i32
  }
  func.func @transform_17(%arg0: i32) -> (i32, i32, i32) {
    %c0_i32 = arith.constant 0 : i32
    %c0_i32_0 = arith.constant 0 : i32
    %c0_i32_1 = arith.constant 0 : i32
    %c0_i32_2 = arith.constant 0 : i32
    return %c0_i32, %c0_i32_0, %c0_i32_1 : i32, i32, i32
  }
  func.func @transform_18(%arg0: i32) -> (i32, i32, i32) {
    %c0_i32 = arith.constant 0 : i32
    %c0_i32_0 = arith.constant 0 : i32
    %c0_i32_1 = arith.constant 0 : i32
    %c0_i32_2 = arith.constant 0 : i32
    return %c0_i32, %c0_i32_0, %c0_i32_1 : i32, i32, i32
  }
  func.func @transform_19(%arg0: i32) -> (i32, i32, i32) {
    %c0_i32 = arith.constant 0 : i32
    %c0_i32_0 = arith.constant 0 : i32
    %c0_i32_1 = arith.constant 0 : i32
    %c0_i32_2 = arith.constant 0 : i32
    return %c0_i32, %c0_i32_0, %c0_i32_1 : i32, i32, i32
  }
  func.func @transform_20(%arg0: i32) -> (i32, i32, i32) {
    %c0_i32 = arith.constant 0 : i32
    %c0_i32_0 = arith.constant 0 : i32
    %c0_i32_1 = arith.constant 0 : i32
    %c0_i32_2 = arith.constant 0 : i32
    return %c0_i32, %c0_i32_0, %c0_i32_1 : i32, i32, i32
  }
  func.func @transform_21(%arg0: i32) -> (i32, i32, i32) {
    %c0_i32 = arith.constant 0 : i32
    %c0_i32_0 = arith.constant 0 : i32
    %c0_i32_1 = arith.constant 0 : i32
    %c0_i32_2 = arith.constant 0 : i32
    return %c0_i32, %c0_i32_0, %c0_i32_1 : i32, i32, i32
  }
  func.func @transform_22(%arg0: i32) -> (i32, i32, i32) {
    %c0_i32 = arith.constant 0 : i32
    %c0_i32_0 = arith.constant 0 : i32
    %c0_i32_1 = arith.constant 0 : i32
    %c0_i32_2 = arith.constant 0 : i32
    return %c0_i32, %c0_i32_0, %c0_i32_1 : i32, i32, i32
  }
  func.func @transform_23(%arg0: i32) -> (i32, i32, i32) {
    %c0_i32 = arith.constant 0 : i32
    %c0_i32_0 = arith.constant 0 : i32
    %c0_i32_1 = arith.constant 0 : i32
    %c0_i32_2 = arith.constant 0 : i32
    return %c0_i32, %c0_i32_0, %c0_i32_1 : i32, i32, i32
  }
  func.func @transform_24(%arg0: i32) -> (i32, i32, i32) {
    %c0_i32 = arith.constant 0 : i32
    %c0_i32_0 = arith.constant 0 : i32
    %c0_i32_1 = arith.constant 0 : i32
    %c0_i32_2 = arith.constant 0 : i32
    return %c0_i32, %c0_i32_0, %c0_i32_1 : i32, i32, i32
  }
  func.func @transform_25(%arg0: i32) -> (i32, i32) {
    %c0_i32 = arith.constant 0 : i32
    %c0_i32_0 = arith.constant 0 : i32
    %c0_i32_1 = arith.constant 0 : i32
    return %c0_i32, %c0_i32_0 : i32, i32
  }
  func.func @transform_26(%arg0: i32) -> (i32, i32) {
    %c0_i32 = arith.constant 0 : i32
    %c0_i32_0 = arith.constant 0 : i32
    %c0_i32_1 = arith.constant 0 : i32
    return %c0_i32, %c0_i32_0 : i32, i32
  }
  func.func @transform_27(%arg0: i32) -> (i32, i32) {
    %c0_i32 = arith.constant 0 : i32
    %c0_i32_0 = arith.constant 0 : i32
    %c0_i32_1 = arith.constant 0 : i32
    return %c0_i32, %c0_i32_0 : i32, i32
  }
  func.func @transform_28(%arg0: i32) -> (i32, i32) {
    %c0_i32 = arith.constant 0 : i32
    %c0_i32_0 = arith.constant 0 : i32
    %c0_i32_1 = arith.constant 0 : i32
    return %c0_i32, %c0_i32_0 : i32, i32
  }
  func.func @transform_29(%arg0: i32) -> (i32, i32, i32) {
    %c0_i32 = arith.constant 0 : i32
    %c0_i32_0 = arith.constant 0 : i32
    %c0_i32_1 = arith.constant 0 : i32
    return %arg0, %c0_i32, %c0_i32_0 : i32, i32, i32
  }
}

</mosaic_0001>

<llo_original>
// kernel: decision_transformer_forward.1
$region0: #{decision_transformer_forward.1}
  #allocation0 [shape = 'u32[]', space=smem, size = 0x4, offset = 0x4, fixed_abs, tag = 'smem constant byte address 0x4 - core index']
  #allocation1 [shape = 'u32[144,128]{1,0:T(1,128)}', space=vmem, size = 0x12000, scoped, tag = 'internal scratch']
  %s0 = inlined_call_operand.smem [shape: u32[30], index: -1, kind: input, shape index: {}]
  %s1 = sld [smem:[%s0]]
  %s2 = scalar_lea.smem %s0, 1
  %s3 = sld [smem:[%s2]]
  %s4 = scalar_lea.smem %s0, 2
  %s5 = sld [smem:[%s4]]
  %s6 = scalar_lea.smem %s0, 3
  %s7 = sld [smem:[%s6]]
  %s8 = scalar_lea.smem %s0, 4
  %s9 = sld [smem:[%s8]]
  %s10 = scalar_lea.smem %s0, 5
  %s11 = sld [smem:[%s10]]
  %s12 = scalar_lea.smem %s0, 6
  %s13 = sld [smem:[%s12]]
  %s14 = scalar_lea.smem %s0, 7
  %s15 = sld [smem:[%s14]]
  %s16 = scalar_lea.smem %s0, 8
  %s17 = sld [smem:[%s16]]
  %s18 = scalar_lea.smem %s0, 9
  %s19 = sld [smem:[%s18]]
  %s20 = scalar_lea.smem %s0, 10
  %s21 = sld [smem:[%s20]]
  %s22 = scalar_lea.smem %s0, 11
  %s23 = sld [smem:[%s22]]
  %s24 = scalar_lea.smem %s0, 12
  %s25 = sld [smem:[%s24]]
  %s26 = scalar_lea.smem %s0, 13
  %s27 = sld [smem:[%s26]]
  %s28 = scalar_lea.smem %s0, 14
  %s29 = sld [smem:[%s28]]
  %s30 = scalar_lea.smem %s0, 15
  %s31 = sld [smem:[%s30]]
  %s32 = scalar_lea.smem %s0, 16
  %s33 = sld [smem:[%s32]]
  %s34 = scalar_lea.smem %s0, 17
  %s35 = sld [smem:[%s34]]
  %s36 = scalar_lea.smem %s0, 18
  %s37 = sld [smem:[%s36]]
  %s38 = scalar_lea.smem %s0, 19
  %s39 = sld [smem:[%s38]]
  %s40 = scalar_lea.smem %s0, 20
  %s41 = sld [smem:[%s40]]
  %s42 = scalar_lea.smem %s0, 21
  %s43 = sld [smem:[%s42]]
  %s44 = scalar_lea.smem %s0, 22
  %s45 = sld [smem:[%s44]]
  %s46 = scalar_lea.smem %s0, 23
  %s47 = sld [smem:[%s46]]
  %s48 = scalar_lea.smem %s0, 24
  %s49 = sld [smem:[%s48]]
  %s50 = scalar_lea.smem %s0, 25
  %s51 = sld [smem:[%s50]]
  %s52 = scalar_lea.smem %s0, 26
  %s53 = sld [smem:[%s52]]
  %s54 = scalar_lea.smem %s0, 27
  %s55 = sld [smem:[%s54]]
  %s56 = scalar_lea.smem %s0, 28
  %s57 = sld [smem:[%s56]]
  %s58 = scalar_lea.smem %s0, 29
  %s59 = sld [smem:[%s58]]
  %s60 = sld [smem:[#allocation0]]
  $region149: #{decision_transformer_forward.1} parent=0
    _
  %s62 = ssub.s32 1, %s60
  %s63 = scalar_select 0, %s62, %s60
  loop: start=0, step=1, limit=4
  $region2: #{decision_transformer_forward.1} parent=0 // loop_pre_header
    _
  $region3: #{decision_transformer_forward.1} parent=0 // loop_header
    %s65 = sphi 0, %s69
    %p66 = scmp.ge.s32.totalorder %s65, 4
    %s75 = sphi 0, %s77
    %s78 = sphi 0, %s75
    %s79 = sphi 0, %s78
    %s95 = sphi 0, %s79
    %s101 = sphi 0, %s103
    %s104 = sphi 0, %s101
    %s105 = sphi 0, %s104
    %s121 = sphi 0, %s105
    %s127 = sphi 0, %s129
    %s130 = sphi 0, %s127
    %s131 = sphi 0, %s130
    %s147 = sphi 0, %s131
    %s153 = sphi 0, %s155
    %s156 = sphi 0, %s153
    %s157 = sphi 0, %s156
    %s173 = sphi 0, %s157
    %s177 = sphi 0, %s177
    %s179 = sphi 0, %s177
    %s180 = sphi 0, %s179
    %s194 = sphi 0, %s180
    %s198 = sphi 0, %s198
    %s200 = sphi 0, %s198
    %s201 = sphi 0, %s200
    %s215 = sphi 0, %s201
    %s219 = sphi 0, %s219
    %s221 = sphi 0, %s219
    %s222 = sphi 0, %s221
    %s236 = sphi 0, %s222
    %s240 = sphi 0, %s240
    %s242 = sphi 0, %s240
    %s243 = sphi 0, %s242
    %s257 = sphi 0, %s243
    %s261 = sphi 0, %s261
    %s263 = sphi 0, %s261
    %s264 = sphi 0, %s263
    %s278 = sphi 0, %s264
    %s282 = sphi 0, %s282
    %s284 = sphi 0, %s282
    %s285 = sphi 0, %s284
    %s299 = sphi 0, %s285
    %s303 = sphi 0, %s303
    %s305 = sphi 0, %s303
    %s306 = sphi 0, %s305
    %s320 = sphi 0, %s306
    %s324 = sphi 0, %s324
    %s326 = sphi 0, %s324
    %s327 = sphi 0, %s326
    %s341 = sphi 0, %s327
    %s345 = sphi 0, %s345
    %s347 = sphi 0, %s345
    %s348 = sphi 0, %s347
    %s362 = sphi 0, %s348
    %s366 = sphi 0, %s366
    %s368 = sphi 0, %s366
    %s369 = sphi 0, %s368
    %s383 = sphi 0, %s369
    %s387 = sphi 0, %s387
    %s389 = sphi 0, %s387
    %s390 = sphi 0, %s389
    %s404 = sphi 0, %s390
    %s408 = sphi 0, %s408
    %s410 = sphi 0, %s408
    %s411 = sphi 0, %s410
    %s425 = sphi 0, %s411
    %s429 = sphi 0, %s429
    %s431 = sphi 0, %s429
    %s432 = sphi 0, %s431
    %s446 = sphi 0, %s432
    %s450 = sphi 0, %s450
    %s452 = sphi 0, %s450
    %s453 = sphi 0, %s452
    %s467 = sphi 0, %s453
    %s471 = sphi 0, %s471
    %s473 = sphi 0, %s471
    %s474 = sphi 0, %s473
    %s488 = sphi 0, %s474
    %s492 = sphi 0, %s492
    %s494 = sphi 0, %s492
    %s495 = sphi 0, %s494
    %s509 = sphi 0, %s495
    %s513 = sphi 0, %s513
    %s515 = sphi 0, %s513
    %s516 = sphi 0, %s515
    %s530 = sphi 0, %s516
    %s534 = sphi 0, %s534
    %s536 = sphi 0, %s534
    %s537 = sphi 0, %s536
    %s551 = sphi 0, %s537
    %s555 = sphi 0, %s555
    %s557 = sphi 0, %s555
    %s558 = sphi 0, %s557
    %s572 = sphi 0, %s558
    %s576 = sphi 0, %s576
    %s578 = sphi 0, %s576
    %s579 = sphi 0, %s578
    %s593 = sphi 0, %s579
    %s597 = sphi 0, %s597
    %s599 = sphi 0, %s597
    %s600 = sphi 0, %s599
    %s614 = sphi 0, %s600
    %s618 = sphi 0, %s618
    %s620 = sphi 0, %s618
    %s621 = sphi 0, %s620
    %s635 = sphi 0, %s621
    %s639 = sphi 0, %s639
    %s641 = sphi 0, %s639
    %s642 = sphi 0, %s641
    %s656 = sphi 0, %s642
    %s660 = sphi 0, %s660
    %s662 = sphi 0, %s660
    %s663 = sphi 0, %s662
    %s677 = sphi 0, %s663
    %s681 = sphi 0, %s681
    %s683 = sphi 0, %s681
    %s684 = sphi 0, %s683
    %s698 = sphi 0, %s684
    %s704 = sphi 0, %s706
    %s707 = sphi 0, %s704
    %s708 = sphi 0, %s707
    %s724 = sphi 0, %s708
  $region4: #{decision_transformer_forward.1} parent=0 // loop_header_branch
    %68 = sbr.rel (%p66) target = $region8
  $region5: #{decision_transformer_forward.1} parent=0 // loop_body
    %s70 = ssub.s32 %s65, 1
    %s71 = ssub.s32 %s65, 2
    %s72 = sadd.s32 %s65, 1
    %s73 = ssub.s32 %s65, %s72
    %p74 = scmp.eq.s32.totalorder %s73, 0
    %s76 = sadd.s32 %s75, 1
    %s77 = scalar_select %p74, %s75, %s76
    %p80 = pneg %p74
    %p81 = scmp.eq.s32.totalorder %s65, 1
    %p82 = por %p80, %p81
    %p83 = scmp.ne.s32.totalorder %s75, %s78
    %p84 = scmp.eq.s32.totalorder %s65, 0
    %p85 = por %p83, %p84
    %p86 = scmp.ne.s32.totalorder %s75, %s78
    %p87 = scmp.eq.s32.totalorder %s70, 1
    %p88 = por %p86, %p87
    %p89 = scmp.ne.s32.totalorder %s78, %s79
    %p90 = scmp.eq.s32.totalorder %s70, 0
    %p91 = por %p89, %p90
    %p92 = scmp.ne.s32.totalorder %s78, %s79
    %p93 = scmp.eq.s32.totalorder %s71, 1
    %p94 = por %p92, %p93
    %p96 = scmp.ne.s32.totalorder %s79, %s95
    %p97 = scmp.eq.s32.totalorder %s71, 0
    %p98 = por %p96, %p97
    %s99 = ssub.s32 %s65, %s72
    %p100 = scmp.eq.s32.totalorder %s99, 0
    %s102 = sadd.s32 %s101, 1
    %s103 = scalar_select %p100, %s101, %s102
    %p106 = pneg %p100
    %p107 = scmp.eq.s32.totalorder %s65, 1
    %p108 = por %p106, %p107
    %p109 = scmp.ne.s32.totalorder %s101, %s104
    %p110 = scmp.eq.s32.totalorder %s65, 0
    %p111 = por %p109, %p110
    %p112 = scmp.ne.s32.totalorder %s101, %s104
    %p113 = scmp.eq.s32.totalorder %s70, 1
    %p114 = por %p112, %p113
    %p115 = scmp.ne.s32.totalorder %s104, %s105
    %p116 = scmp.eq.s32.totalorder %s70, 0
    %p117 = por %p115, %p116
    %p118 = scmp.ne.s32.totalorder %s104, %s105
    %p119 = scmp.eq.s32.totalorder %s71, 1
    %p120 = por %p118, %p119
    %p122 = scmp.ne.s32.totalorder %s105, %s121
    %p123 = scmp.eq.s32.totalorder %s71, 0
    %p124 = por %p122, %p123
    %s125 = ssub.s32 %s65, %s72
    %p126 = scmp.eq.s32.totalorder %s125, 0
    %s128 = sadd.s32 %s127, 1
    %s129 = scalar_select %p126, %s127, %s128
    %p132 = pneg %p126
    %p133 = scmp.eq.s32.totalorder %s65, 1
    %p134 = por %p132, %p133
    %p135 = scmp.ne.s32.totalorder %s127, %s130
    %p136 = scmp.eq.s32.totalorder %s65, 0
    %p137 = por %p135, %p136
    %p138 = scmp.ne.s32.totalorder %s127, %s130
    %p139 = scmp.eq.s32.totalorder %s70, 1
    %p140 = por %p138, %p139
    %p141 = scmp.ne.s32.totalorder %s130, %s131
    %p142 = scmp.eq.s32.totalorder %s70, 0
    %p143 = por %p141, %p142
    %p144 = scmp.ne.s32.totalorder %s130, %s131
    %p145 = scmp.eq.s32.totalorder %s71, 1
    %p146 = por %p144, %p145
    %p148 = scmp.ne.s32.totalorder %s131, %s147
    %p149 = scmp.eq.s32.totalorder %s71, 0
    %p150 = por %p148, %p149
    %s151 = ssub.s32 %s65, %s72
    %p152 = scmp.eq.s32.totalorder %s151, 0
    %s154 = sadd.s32 %s153, 1
    %s155 = scalar_select %p152, %s153, %s154
    %p158 = pneg %p152
    %p159 = scmp.eq.s32.totalorder %s65, 1
    %p160 = por %p158, %p159
    %p161 = scmp.ne.s32.totalorder %s153, %s156
    %p162 = scmp.eq.s32.totalorder %s65, 0
    %p163 = por %p161, %p162
    %p164 = scmp.ne.s32.totalorder %s153, %s156
    %p165 = scmp.eq.s32.totalorder %s70, 1
    %p166 = por %p164, %p165
    %p167 = scmp.ne.s32.totalorder %s156, %s157
    %p168 = scmp.eq.s32.totalorder %s70, 0
    %p169 = por %p167, %p168
    %p170 = scmp.ne.s32.totalorder %s156, %s157
    %p171 = scmp.eq.s32.totalorder %s71, 1
    %p172 = por %p170, %p171
    %p174 = scmp.ne.s32.totalorder %s157, %s173
    %p175 = scmp.eq.s32.totalorder %s71, 0
    %p176 = por %p174, %p175
    %s178 = sadd.s32 %s177, 1
    %p181 = scmp.eq.s32.totalorder %s65, 1
    %p182 = scmp.ne.s32.totalorder %s177, %s179
    %p183 = scmp.eq.s32.totalorder %s65, 0
    %p184 = por %p182, %p183
    %p185 = scmp.ne.s32.totalorder %s177, %s179
    %p186 = scmp.eq.s32.totalorder %s70, 1
    %p187 = por %p185, %p186
    %p188 = scmp.ne.s32.totalorder %s179, %s180
    %p189 = scmp.eq.s32.totalorder %s70, 0
    %p190 = por %p188, %p189
    %p191 = scmp.ne.s32.totalorder %s179, %s180
    %p192 = scmp.eq.s32.totalorder %s71, 1
    %p193 = por %p191, %p192
    %p195 = scmp.ne.s32.totalorder %s180, %s194
    %p196 = scmp.eq.s32.totalorder %s71, 0
    %p197 = por %p195, %p196
    %s199 = sadd.s32 %s198, 1
    %p202 = scmp.eq.s32.totalorder %s65, 1
    %p203 = scmp.ne.s32.totalorder %s198, %s200
    %p204 = scmp.eq.s32.totalorder %s65, 0
    %p205 = por %p203, %p204
    %p206 = scmp.ne.s32.totalorder %s198, %s200
    %p207 = scmp.eq.s32.totalorder %s70, 1
    %p208 = por %p206, %p207
    %p209 = scmp.ne.s32.totalorder %s200, %s201
    %p210 = scmp.eq.s32.totalorder %s70, 0
    %p211 = por %p209, %p210
    %p212 = scmp.ne.s32.totalorder %s200, %s201
    %p213 = scmp.eq.s32.totalorder %s71, 1
    %p214 = por %p212, %p213
    %p216 = scmp.ne.s32.totalorder %s201, %s215
    %p217 = scmp.eq.s32.totalorder %s71, 0
    %p218 = por %p216, %p217
    %s220 = sadd.s32 %s219, 1
    %p223 = scmp.eq.s32.totalorder %s65, 1
    %p224 = scmp.ne.s32.totalorder %s219, %s221
    %p225 = scmp.eq.s32.totalorder %s65, 0
    %p226 = por %p224, %p225
    %p227 = scmp.ne.s32.totalorder %s219, %s221
    %p228 = scmp.eq.s32.totalorder %s70, 1
    %p229 = por %p227, %p228
    %p230 = scmp.ne.s32.totalorder %s221, %s222
    %p231 = scmp.eq.s32.totalorder %s70, 0
    %p232 = por %p230, %p231
    %p233 = scmp.ne.s32.totalorder %s221, %s222
    %p234 = scmp.eq.s32.totalorder %s71, 1
    %p235 = por %p233, %p234
    %p237 = scmp.ne.s32.totalorder %s222, %s236
    %p238 = scmp.eq.s32.totalorder %s71, 0
    %p239 = por %p237, %p238
    %s241 = sadd.s32 %s240, 1
    %p244 = scmp.eq.s32.totalorder %s65, 1
    %p245 = scmp.ne.s32.totalorder %s240, %s242
    %p246 = scmp.eq.s32.totalorder %s65, 0
    %p247 = por %p245, %p246
    %p248 = scmp.ne.s32.totalorder %s240, %s242
    %p249 = scmp.eq.s32.totalorder %s70, 1
    %p250 = por %p248, %p249
    %p251 = scmp.ne.s32.totalorder %s242, %s243
    %p252 = scmp.eq.s32.totalorder %s70, 0
    %p253 = por %p251, %p252
    %p254 = scmp.ne.s32.totalorder %s242, %s243
    %p255 = scmp.eq.s32.totalorder %s71, 1
    %p256 = por %p254, %p255
    %p258 = scmp.ne.s32.totalorder %s243, %s257
    %p259 = scmp.eq.s32.totalorder %s71, 0
    %p260 = por %p258, %p259
    %s262 = sadd.s32 %s261, 1
    %p265 = scmp.eq.s32.totalorder %s65, 1
    %p266 = scmp.ne.s32.totalorder %s261, %s263
    %p267 = scmp.eq.s32.totalorder %s65, 0
    %p268 = por %p266, %p267
    %p269 = scmp.ne.s32.totalorder %s261, %s263
    %p270 = scmp.eq.s32.totalorder %s70, 1
    %p271 = por %p269, %p270
    %p272 = scmp.ne.s32.totalorder %s263, %s264
    %p273 = scmp.eq.s32.totalorder %s70, 0
    %p274 = por %p272, %p273
    %p275 = scmp.ne.s32.totalorder %s263, %s264
    %p276 = scmp.eq.s32.totalorder %s71, 1
    %p277 = por %p275, %p276
    %p279 = scmp.ne.s32.totalorder %s264, %s278
    %p280 = scmp.eq.s32.totalorder %s71, 0
    %p281 = por %p279, %p280
    %s283 = sadd.s32 %s282, 1
    %p286 = scmp.eq.s32.totalorder %s65, 1
    %p287 = scmp.ne.s32.totalorder %s282, %s284
    %p288 = scmp.eq.s32.totalorder %s65, 0
    %p289 = por %p287, %p288
    %p290 = scmp.ne.s32.totalorder %s282, %s284
    %p291 = scmp.eq.s32.totalorder %s70, 1
    %p292 = por %p290, %p291
    %p293 = scmp.ne.s32.totalorder %s284, %s285
    %p294 = scmp.eq.s32.totalorder %s70, 0
    %p295 = por %p293, %p294
    %p296 = scmp.ne.s32.totalorder %s284, %s285
    %p297 = scmp.eq.s32.totalorder %s71, 1
    %p298 = por %p296, %p297
    %p300 = scmp.ne.s32.totalorder %s285, %s299
    %p301 = scmp.eq.s32.totalorder %s71, 0
    %p302 = por %p300, %p301
    %s304 = sadd.s32 %s303, 1
    %p307 = scmp.eq.s32.totalorder %s65, 1
    %p308 = scmp.ne.s32.totalorder %s303, %s305
    %p309 = scmp.eq.s32.totalorder %s65, 0
    %p310 = por %p308, %p309
    %p311 = scmp.ne.s32.totalorder %s303, %s305
    %p312 = scmp.eq.s32.totalorder %s70, 1
    %p313 = por %p311, %p312
    %p314 = scmp.ne.s32.totalorder %s305, %s306
    %p315 = scmp.eq.s32.totalorder %s70, 0
    %p316 = por %p314, %p315
    %p317 = scmp.ne.s32.totalorder %s305, %s306
    %p318 = scmp.eq.s32.totalorder %s71, 1
    %p319 = por %p317, %p318
    %p321 = scmp.ne.s32.totalorder %s306, %s320
    %p322 = scmp.eq.s32.totalorder %s71, 0
    %p323 = por %p321, %p322
    %s325 = sadd.s32 %s324, 1
    %p328 = scmp.eq.s32.totalorder %s65, 1
    %p329 = scmp.ne.s32.totalorder %s324, %s326
    %p330 = scmp.eq.s32.totalorder %s65, 0
    %p331 = por %p329, %p330
    %p332 = scmp.ne.s32.totalorder %s324, %s326
    %p333 = scmp.eq.s32.totalorder %s70, 1
    %p334 = por %p332, %p333
    %p335 = scmp.ne.s32.totalorder %s326, %s327
    %p336 = scmp.eq.s32.totalorder %s70, 0
    %p337 = por %p335, %p336
    %p338 = scmp.ne.s32.totalorder %s326, %s327
    %p339 = scmp.eq.s32.totalorder %s71, 1
    %p340 = por %p338, %p339
    %p342 = scmp.ne.s32.totalorder %s327, %s341
    %p343 = scmp.eq.s32.totalorder %s71, 0
    %p344 = por %p342, %p343
    %s346 = sadd.s32 %s345, 1
    %p349 = scmp.eq.s32.totalorder %s65, 1
    %p350 = scmp.ne.s32.totalorder %s345, %s347
    %p351 = scmp.eq.s32.totalorder %s65, 0
    %p352 = por %p350, %p351
    %p353 = scmp.ne.s32.totalorder %s345, %s347
    %p354 = scmp.eq.s32.totalorder %s70, 1
    %p355 = por %p353, %p354
    %p356 = scmp.ne.s32.totalorder %s347, %s348
    %p357 = scmp.eq.s32.totalorder %s70, 0
    %p358 = por %p356, %p357
    %p359 = scmp.ne.s32.totalorder %s347, %s348
    %p360 = scmp.eq.s32.totalorder %s71, 1
    %p361 = por %p359, %p360
    %p363 = scmp.ne.s32.totalorder %s348, %s362
    %p364 = scmp.eq.s32.totalorder %s71, 0
    %p365 = por %p363, %p364
    %s367 = sadd.s32 %s366, 1
    %p370 = scmp.eq.s32.totalorder %s65, 1
    %p371 = scmp.ne.s32.totalorder %s366, %s368
    %p372 = scmp.eq.s32.totalorder %s65, 0
    %p373 = por %p371, %p372
    %p374 = scmp.ne.s32.totalorder %s366, %s368
    %p375 = scmp.eq.s32.totalorder %s70, 1
    %p376 = por %p374, %p375
    %p377 = scmp.ne.s32.totalorder %s368, %s369
    %p378 = scmp.eq.s32.totalorder %s70, 0
    %p379 = por %p377, %p378
    %p380 = scmp.ne.s32.totalorder %s368, %s369
    %p381 = scmp.eq.s32.totalorder %s71, 1
    %p382 = por %p380, %p381
    %p384 = scmp.ne.s32.totalorder %s369, %s383
    %p385 = scmp.eq.s32.totalorder %s71, 0
    %p386 = por %p384, %p385
    %s388 = sadd.s32 %s387, 1
    %p391 = scmp.eq.s32.totalorder %s65, 1
    %p392 = scmp.ne.s32.totalorder %s387, %s389
    %p393 = scmp.eq.s32.totalorder %s65, 0
    %p394 = por %p392, %p393
    %p395 = scmp.ne.s32.totalorder %s387, %s389
    %p396 = scmp.eq.s32.totalorder %s70, 1
    %p397 = por %p395, %p396
    %p398 = scmp.ne.s32.totalorder %s389, %s390
    %p399 = scmp.eq.s32.totalorder %s70, 0
    %p400 = por %p398, %p399
    %p401 = scmp.ne.s32.totalorder %s389, %s390
    %p402 = scmp.eq.s32.totalorder %s71, 1
    %p403 = por %p401, %p402
    %p405 = scmp.ne.s32.totalorder %s390, %s404
    %p406 = scmp.eq.s32.totalorder %s71, 0
    %p407 = por %p405, %p406
    %s409 = sadd.s32 %s408, 1
    %p412 = scmp.eq.s32.totalorder %s65, 1
    %p413 = scmp.ne.s32.totalorder %s408, %s410
    %p414 = scmp.eq.s32.totalorder %s65, 0
    %p415 = por %p413, %p414
    %p416 = scmp.ne.s32.totalorder %s408, %s410
    %p417 = scmp.eq.s32.totalorder %s70, 1
    %p418 = por %p416, %p417
    %p419 = scmp.ne.s32.totalorder %s410, %s411
    %p420 = scmp.eq.s32.totalorder %s70, 0
    %p421 = por %p419, %p420
    %p422 = scmp.ne.s32.totalorder %s410, %s411
    %p423 = scmp.eq.s32.totalorder %s71, 1
    %p424 = por %p422, %p423
    %p426 = scmp.ne.s32.totalorder %s411, %s425
    %p427 = scmp.eq.s32.totalorder %s71, 0
    %p428 = por %p426, %p427
    %s430 = sadd.s32 %s429, 1
    %p433 = scmp.eq.s32.totalorder %s65, 1
    %p434 = scmp.ne.s32.totalorder %s429, %s431
    %p435 = scmp.eq.s32.totalorder %s65, 0
    %p436 = por %p434, %p435
    %p437 = scmp.ne.s32.totalorder %s429, %s431
    %p438 = scmp.eq.s32.totalorder %s70, 1
    %p439 = por %p437, %p438
    %p440 = scmp.ne.s32.totalorder %s431, %s432
    %p441 = scmp.eq.s32.totalorder %s70, 0
    %p442 = por %p440, %p441
    %p443 = scmp.ne.s32.totalorder %s431, %s432
    %p444 = scmp.eq.s32.totalorder %s71, 1
    %p445 = por %p443, %p444
    %p447 = scmp.ne.s32.totalorder %s432, %s446
    %p448 = scmp.eq.s32.totalorder %s71, 0
    %p449 = por %p447, %p448
    %s451 = sadd.s32 %s450, 1
    %p454 = scmp.eq.s32.totalorder %s65, 1
    %p455 = scmp.ne.s32.totalorder %s450, %s452
    %p456 = scmp.eq.s32.totalorder %s65, 0
    %p457 = por %p455, %p456
    %p458 = scmp.ne.s32.totalorder %s450, %s452
    %p459 = scmp.eq.s32.totalorder %s70, 1
    %p460 = por %p458, %p459
    %p461 = scmp.ne.s32.totalorder %s452, %s453
    %p462 = scmp.eq.s32.totalorder %s70, 0
    %p463 = por %p461, %p462
    %p464 = scmp.ne.s32.totalorder %s452, %s453
    %p465 = scmp.eq.s32.totalorder %s71, 1
    %p466 = por %p464, %p465
    %p468 = scmp.ne.s32.totalorder %s453, %s467
    %p469 = scmp.eq.s32.totalorder %s71, 0
    %p470 = por %p468, %p469
    %s472 = sadd.s32 %s471, 1
    %p475 = scmp.eq.s32.totalorder %s65, 1
    %p476 = scmp.ne.s32.totalorder %s471, %s473
    %p477 = scmp.eq.s32.totalorder %s65, 0
    %p478 = por %p476, %p477
    %p479 = scmp.ne.s32.totalorder %s471, %s473
    %p480 = scmp.eq.s32.totalorder %s70, 1
    %p481 = por %p479, %p480
    %p482 = scmp.ne.s32.totalorder %s473, %s474
    %p483 = scmp.eq.s32.totalorder %s70, 0
    %p484 = por %p482, %p483
    %p485 = scmp.ne.s32.totalorder %s473, %s474
    %p486 = scmp.eq.s32.totalorder %s71, 1
    %p487 = por %p485, %p486
    %p489 = scmp.ne.s32.totalorder %s474, %s488
    %p490 = scmp.eq.s32.totalorder %s71, 0
    %p491 = por %p489, %p490
    %s493 = sadd.s32 %s492, 1
    %p496 = scmp.eq.s32.totalorder %s65, 1
    %p497 = scmp.ne.s32.totalorder %s492, %s494
    %p498 = scmp.eq.s32.totalorder %s65, 0
    %p499 = por %p497, %p498
    %p500 = scmp.ne.s32.totalorder %s492, %s494
    %p501 = scmp.eq.s32.totalorder %s70, 1
    %p502 = por %p500, %p501
    %p503 = scmp.ne.s32.totalorder %s494, %s495
    %p504 = scmp.eq.s32.totalorder %s70, 0
    %p505 = por %p503, %p504
    %p506 = scmp.ne.s32.totalorder %s494, %s495
    %p507 = scmp.eq.s32.totalorder %s71, 1
    %p508 = por %p506, %p507
    %p510 = scmp.ne.s32.totalorder %s495, %s509
    %p511 = scmp.eq.s32.totalorder %s71, 0
    %p512 = por %p510, %p511
    %s514 = sadd.s32 %s513, 1
    %p517 = scmp.eq.s32.totalorder %s65, 1
    %p518 = scmp.ne.s32.totalorder %s513, %s515
    %p519 = scmp.eq.s32.totalorder %s65, 0
    %p520 = por %p518, %p519
    %p521 = scmp.ne.s32.totalorder %s513, %s515
    %p522 = scmp.eq.s32.totalorder %s70, 1
    %p523 = por %p521, %p522
    %p524 = scmp.ne.s32.totalorder %s515, %s516
    %p525 = scmp.eq.s32.totalorder %s70, 0
    %p526 = por %p524, %p525
    %p527 = scmp.ne.s32.totalorder %s515, %s516
    %p528 = scmp.eq.s32.totalorder %s71, 1
    %p529 = por %p527, %p528
    %p531 = scmp.ne.s32.totalorder %s516, %s530
    %p532 = scmp.eq.s32.totalorder %s71, 0
    %p533 = por %p531, %p532
    %s535 = sadd.s32 %s534, 1
    %p538 = scmp.eq.s32.totalorder %s65, 1
    %p539 = scmp.ne.s32.totalorder %s534, %s536
    %p540 = scmp.eq.s32.totalorder %s65, 0
    %p541 = por %p539, %p540
    %p542 = scmp.ne.s32.totalorder %s534, %s536
    %p543 = scmp.eq.s32.totalorder %s70, 1
    %p544 = por %p542, %p543
    %p545 = scmp.ne.s32.totalorder %s536, %s537
    %p546 = scmp.eq.s32.totalorder %s70, 0
    %p547 = por %p545, %p546
    %p548 = scmp.ne.s32.totalorder %s536, %s537
    %p549 = scmp.eq.s32.totalorder %s71, 1
    %p550 = por %p548, %p549
    %p552 = scmp.ne.s32.totalorder %s537, %s551
    %p553 = scmp.eq.s32.totalorder %s71, 0
    %p554 = por %p552, %p553
    %s556 = sadd.s32 %s555, 1
    %p559 = scmp.eq.s32.totalorder %s65, 1
    %p560 = scmp.ne.s32.totalorder %s555, %s557
    %p561 = scmp.eq.s32.totalorder %s65, 0
    %p562 = por %p560, %p561
    %p563 = scmp.ne.s32.totalorder %s555, %s557
    %p564 = scmp.eq.s32.totalorder %s70, 1
    %p565 = por %p563, %p564
    %p566 = scmp.ne.s32.totalorder %s557, %s558
    %p567 = scmp.eq.s32.totalorder %s70, 0
    %p568 = por %p566, %p567
    %p569 = scmp.ne.s32.totalorder %s557, %s558
    %p570 = scmp.eq.s32.totalorder %s71, 1
    %p571 = por %p569, %p570
    %p573 = scmp.ne.s32.totalorder %s558, %s572
    %p574 = scmp.eq.s32.totalorder %s71, 0
    %p575 = por %p573, %p574
    %s577 = sadd.s32 %s576, 1
    %p580 = scmp.eq.s32.totalorder %s65, 1
    %p581 = scmp.ne.s32.totalorder %s576, %s578
    %p582 = scmp.eq.s32.totalorder %s65, 0
    %p583 = por %p581, %p582
    %p584 = scmp.ne.s32.totalorder %s576, %s578
    %p585 = scmp.eq.s32.totalorder %s70, 1
    %p586 = por %p584, %p585
    %p587 = scmp.ne.s32.totalorder %s578, %s579
    %p588 = scmp.eq.s32.totalorder %s70, 0
    %p589 = por %p587, %p588
    %p590 = scmp.ne.s32.totalorder %s578, %s579
    %p591 = scmp.eq.s32.totalorder %s71, 1
    %p592 = por %p590, %p591
    %p594 = scmp.ne.s32.totalorder %s579, %s593
    %p595 = scmp.eq.s32.totalorder %s71, 0
    %p596 = por %p594, %p595
    %s598 = sadd.s32 %s597, 1
    %p601 = scmp.eq.s32.totalorder %s65, 1
    %p602 = scmp.ne.s32.totalorder %s597, %s599
    %p603 = scmp.eq.s32.totalorder %s65, 0
    %p604 = por %p602, %p603
    %p605 = scmp.ne.s32.totalorder %s597, %s599
    %p606 = scmp.eq.s32.totalorder %s70, 1
    %p607 = por %p605, %p606
    %p608 = scmp.ne.s32.totalorder %s599, %s600
    %p609 = scmp.eq.s32.totalorder %s70, 0
    %p610 = por %p608, %p609
    %p611 = scmp.ne.s32.totalorder %s599, %s600
    %p612 = scmp.eq.s32.totalorder %s71, 1
    %p613 = por %p611, %p612
    %p615 = scmp.ne.s32.totalorder %s600, %s614
    %p616 = scmp.eq.s32.totalorder %s71, 0
    %p617 = por %p615, %p616
    %s619 = sadd.s32 %s618, 1
    %p622 = scmp.eq.s32.totalorder %s65, 1
    %p623 = scmp.ne.s32.totalorder %s618, %s620
    %p624 = scmp.eq.s32.totalorder %s65, 0
    %p625 = por %p623, %p624
    %p626 = scmp.ne.s32.totalorder %s618, %s620
    %p627 = scmp.eq.s32.totalorder %s70, 1
    %p628 = por %p626, %p627
    %p629 = scmp.ne.s32.totalorder %s620, %s621
    %p630 = scmp.eq.s32.totalorder %s70, 0
    %p631 = por %p629, %p630
    %p632 = scmp.ne.s32.totalorder %s620, %s621
    %p633 = scmp.eq.s32.totalorder %s71, 1
    %p634 = por %p632, %p633
    %p636 = scmp.ne.s32.totalorder %s621, %s635
    %p637 = scmp.eq.s32.totalorder %s71, 0
    %p638 = por %p636, %p637
    %s640 = sadd.s32 %s639, 1
    %p643 = scmp.eq.s32.totalorder %s65, 1
    %p644 = scmp.ne.s32.totalorder %s639, %s641
    %p645 = scmp.eq.s32.totalorder %s65, 0
    %p646 = por %p644, %p645
    %p647 = scmp.ne.s32.totalorder %s639, %s641
    %p648 = scmp.eq.s32.totalorder %s70, 1
    %p649 = por %p647, %p648
    %p650 = scmp.ne.s32.totalorder %s641, %s642
    %p651 = scmp.eq.s32.totalorder %s70, 0
    %p652 = por %p650, %p651
    %p653 = scmp.ne.s32.totalorder %s641, %s642
    %p654 = scmp.eq.s32.totalorder %s71, 1
    %p655 = por %p653, %p654
    %p657 = scmp.ne.s32.totalorder %s642, %s656
    %p658 = scmp.eq.s32.totalorder %s71, 0
    %p659 = por %p657, %p658
    %s661 = sadd.s32 %s660, 1
    %p664 = scmp.eq.s32.totalorder %s65, 1
    %p665 = scmp.ne.s32.totalorder %s660, %s662
    %p666 = scmp.eq.s32.totalorder %s65, 0
    %p667 = por %p665, %p666
    %p668 = scmp.ne.s32.totalorder %s660, %s662
    %p669 = scmp.eq.s32.totalorder %s70, 1
    %p670 = por %p668, %p669
    %p671 = scmp.ne.s32.totalorder %s662, %s663
    %p672 = scmp.eq.s32.totalorder %s70, 0
    %p673 = por %p671, %p672
    %p674 = scmp.ne.s32.totalorder %s662, %s663
    %p675 = scmp.eq.s32.totalorder %s71, 1
    %p676 = por %p674, %p675
    %p678 = scmp.ne.s32.totalorder %s663, %s677
    %p679 = scmp.eq.s32.totalorder %s71, 0
    %p680 = por %p678, %p679
    %s682 = sadd.s32 %s681, 1
    %p685 = scmp.eq.s32.totalorder %s65, 1
    %p686 = scmp.ne.s32.totalorder %s681, %s683
    %p687 = scmp.eq.s32.totalorder %s65, 0
    %p688 = por %p686, %p687
    %p689 = scmp.ne.s32.totalorder %s681, %s683
    %p690 = scmp.eq.s32.totalorder %s70, 1
    %p691 = por %p689, %p690
    %p692 = scmp.ne.s32.totalorder %s683, %s684
    %p693 = scmp.eq.s32.totalorder %s70, 0
    %p694 = por %p692, %p693
    %p695 = scmp.ne.s32.totalorder %s683, %s684
    %p696 = scmp.eq.s32.totalorder %s71, 1
    %p697 = por %p695, %p696
    %p699 = scmp.ne.s32.totalorder %s684, %s698
    %p700 = scmp.eq.s32.totalorder %s71, 0
    %p701 = por %p699, %p700
    %s702 = ssub.s32 %s65, %s72
    %p703 = scmp.eq.s32.totalorder %s702, 0
    %s705 = sadd.s32 %s704, 1
    %s706 = scalar_select %p703, %s704, %s705
    %p709 = pneg %p703
    %p710 = scmp.eq.s32.totalorder %s65, 1
    %p711 = por %p709, %p710
    %p712 = scmp.ne.s32.totalorder %s704, %s707
    %p713 = scmp.eq.s32.totalorder %s65, 0
    %p714 = por %p712, %p713
    %p715 = scmp.ne.s32.totalorder %s704, %s707
    %p716 = scmp.eq.s32.totalorder %s70, 1
    %p717 = por %p715, %p716
    %p718 = scmp.ne.s32.totalorder %s707, %s708
    %p719 = scmp.eq.s32.totalorder %s70, 0
    %p720 = por %p718, %p719
    %p721 = scmp.ne.s32.totalorder %s707, %s708
    %p722 = scmp.eq.s32.totalorder %s71, 1
    %p723 = por %p721, %p722
    %p725 = scmp.ne.s32.totalorder %s708, %s724
    %p726 = scmp.eq.s32.totalorder %s71, 0
    %p727 = por %p725, %p726
    %p728 = scmp.le.s32.totalorder 1, %s65
    %p729 = scmp.lt.s32.totalorder %s65, 3
    %p730 = pnand %p728, %p729
    %p731 = pneg %p730
    // Predicated region
    $region9: #{decision_transformer_forward.1} parent=5 // pred_check
      _
    $region10: #{decision_transformer_forward.1} parent=5 // pred_check_branch
      %733 = sbr.rel (%p730) target = $region12
    $region11: #{decision_transformer_forward.1} parent=5 // pred_region
      %s734 = ssub.s32 %s65, 1
      // Predicated region
      $region13: #{decision_transformer_forward.1} parent=11 // pred_check
        %p735 = pneg %p190
      $region14: #{decision_transformer_forward.1} parent=11 // pred_check_branch
        %737 = sbr.rel (%p735) target = $region16
      $region15: #{decision_transformer_forward.1} parent=11 // pred_region
        _
      $region16: #{decision_transformer_forward.1} parent=11 // pred_fallthru
        _
      // Predicated region
      $region17: #{decision_transformer_forward.1} parent=11 // pred_check
        %p738 = pneg %p211
      $region18: #{decision_transformer_forward.1} parent=11 // pred_check_branch
        %740 = sbr.rel (%p738) target = $region20
      $region19: #{decision_transformer_forward.1} parent=11 // pred_region
        _
      $region20: #{decision_transformer_forward.1} parent=11 // pred_fallthru
        _
      // Predicated region
      $region21: #{decision_transformer_forward.1} parent=11 // pred_check
        %p741 = pneg %p232
      $region22: #{decision_transformer_forward.1} parent=11 // pred_check_branch
        %743 = sbr.rel (%p741) target = $region24
      $region23: #{decision_transformer_forward.1} parent=11 // pred_region
        _
      $region24: #{decision_transformer_forward.1} parent=11 // pred_fallthru
        _
      // Predicated region
      $region25: #{decision_transformer_forward.1} parent=11 // pred_check
        %p744 = pneg %p253
      $region26: #{decision_transformer_forward.1} parent=11 // pred_check_branch
        %746 = sbr.rel (%p744) target = $region28
      $region27: #{decision_transformer_forward.1} parent=11 // pred_region
        _
      $region28: #{decision_transformer_forward.1} parent=11 // pred_fallthru
        _
      // Predicated region
      $region29: #{decision_transformer_forward.1} parent=11 // pred_check
        %p747 = pneg %p274
      $region30: #{decision_transformer_forward.1} parent=11 // pred_check_branch
        %749 = sbr.rel (%p747) target = $region32
      $region31: #{decision_transformer_forward.1} parent=11 // pred_region
        _
      $region32: #{decision_transformer_forward.1} parent=11 // pred_fallthru
        _
      // Predicated region
      $region33: #{decision_transformer_forward.1} parent=11 // pred_check
        %p750 = pneg %p295
      $region34: #{decision_transformer_forward.1} parent=11 // pred_check_branch
        %752 = sbr.rel (%p750) target = $region36
      $region35: #{decision_transformer_forward.1} parent=11 // pred_region
        _
      $region36: #{decision_transformer_forward.1} parent=11 // pred_fallthru
        _
      // Predicated region
      $region37: #{decision_transformer_forward.1} parent=11 // pred_check
        %p753 = pneg %p316
      $region38: #{decision_transformer_forward.1} parent=11 // pred_check_branch
        %755 = sbr.rel (%p753) target = $region40
      $region39: #{decision_transformer_forward.1} parent=11 // pred_region
        _
      $region40: #{decision_transformer_forward.1} parent=11 // pred_fallthru
        _
      // Predicated region
      $region41: #{decision_transformer_forward.1} parent=11 // pred_check
        %p756 = pneg %p337
      $region42: #{decision_transformer_forward.1} parent=11 // pred_check_branch
        %758 = sbr.rel (%p756) target = $region44
      $region43: #{decision_transformer_forward.1} parent=11 // pred_region
        _
      $region44: #{decision_transformer_forward.1} parent=11 // pred_fallthru
        _
      // Predicated region
      $region45: #{decision_transformer_forward.1} parent=11 // pred_check
        %p759 = pneg %p358
      $region46: #{decision_transformer_forward.1} parent=11 // pred_check_branch
        %761 = sbr.rel (%p759) target = $region48
      $region47: #{decision_transformer_forward.1} parent=11 // pred_region
        _
      $region48: #{decision_transformer_forward.1} parent=11 // pred_fallthru
        _
      // Predicated region
      $region49: #{decision_transformer_forward.1} parent=11 // pred_check
        %p762 = pneg %p379
      $region50: #{decision_transformer_forward.1} parent=11 // pred_check_branch
        %764 = sbr.rel (%p762) target = $region52
      $region51: #{decision_transformer_forward.1} parent=11 // pred_region
        _
      $region52: #{decision_transformer_forward.1} parent=11 // pred_fallthru
        _
      // Predicated region
      $region53: #{decision_transformer_forward.1} parent=11 // pred_check
        %p765 = pneg %p400
      $region54: #{decision_transformer_forward.1} parent=11 // pred_check_branch
        %767 = sbr.rel (%p765) target = $region56
      $region55: #{decision_transformer_forward.1} parent=11 // pred_region
        _
      $region56: #{decision_transformer_forward.1} parent=11 // pred_fallthru
        _
      // Predicated region
      $region57: #{decision_transformer_forward.1} parent=11 // pred_check
        %p768 = pneg %p421
      $region58: #{decision_transformer_forward.1} parent=11 // pred_check_branch
        %770 = sbr.rel (%p768) target = $region60
      $region59: #{decision_transformer_forward.1} parent=11 // pred_region
        _
      $region60: #{decision_transformer_forward.1} parent=11 // pred_fallthru
        _
      // Predicated region
      $region61: #{decision_transformer_forward.1} parent=11 // pred_check
        %p771 = pneg %p442
      $region62: #{decision_transformer_forward.1} parent=11 // pred_check_branch
        %773 = sbr.rel (%p771) target = $region64
      $region63: #{decision_transformer_forward.1} parent=11 // pred_region
        _
      $region64: #{decision_transformer_forward.1} parent=11 // pred_fallthru
        _
      // Predicated region
      $region65: #{decision_transformer_forward.1} parent=11 // pred_check
        %p774 = pneg %p463
      $region66: #{decision_transformer_forward.1} parent=11 // pred_check_branch
        %776 = sbr.rel (%p774) target = $region68
      $region67: #{decision_transformer_forward.1} parent=11 // pred_region
        _
      $region68: #{decision_transformer_forward.1} parent=11 // pred_fallthru
        _
      // Predicated region
      $region69: #{decision_transformer_forward.1} parent=11 // pred_check
        %p777 = pneg %p484
      $region70: #{decision_transformer_forward.1} parent=11 // pred_check_branch
        %779 = sbr.rel (%p777) target = $region72
      $region71: #{decision_transformer_forward.1} parent=11 // pred_region
        _
      $region72: #{decision_transformer_forward.1} parent=11 // pred_fallthru
        _
      // Predicated region
      $region73: #{decision_transformer_forward.1} parent=11 // pred_check
        %p780 = pneg %p505
      $region74: #{decision_transformer_forward.1} parent=11 // pred_check_branch
        %782 = sbr.rel (%p780) target = $region76
      $region75: #{decision_transformer_forward.1} parent=11 // pred_region
        _
      $region76: #{decision_transformer_forward.1} parent=11 // pred_fallthru
        _
      // Predicated region
      $region77: #{decision_transformer_forward.1} parent=11 // pred_check
        %p783 = pneg %p526
      $region78: #{decision_transformer_forward.1} parent=11 // pred_check_branch
        %785 = sbr.rel (%p783) target = $region80
      $region79: #{decision_transformer_forward.1} parent=11 // pred_region
        _
      $region80: #{decision_transformer_forward.1} parent=11 // pred_fallthru
        _
      // Predicated region
      $region81: #{decision_transformer_forward.1} parent=11 // pred_check
        %p786 = pneg %p547
      $region82: #{decision_transformer_forward.1} parent=11 // pred_check_branch
        %788 = sbr.rel (%p786) target = $region84
      $region83: #{decision_transformer_forward.1} parent=11 // pred_region
        _
      $region84: #{decision_transformer_forward.1} parent=11 // pred_fallthru
        _
      // Predicated region
      $region85: #{decision_transformer_forward.1} parent=11 // pred_check
        %p789 = pneg %p568
      $region86: #{decision_transformer_forward.1} parent=11 // pred_check_branch
        %791 = sbr.rel (%p789) target = $region88
      $region87: #{decision_transformer_forward.1} parent=11 // pred_region
        _
      $region88: #{decision_transformer_forward.1} parent=11 // pred_fallthru
        _
      // Predicated region
      $region89: #{decision_transformer_forward.1} parent=11 // pred_check
        %p792 = pneg %p589
      $region90: #{decision_transformer_forward.1} parent=11 // pred_check_branch
        %794 = sbr.rel (%p792) target = $region92
      $region91: #{decision_transformer_forward.1} parent=11 // pred_region
        _
      $region92: #{decision_transformer_forward.1} parent=11 // pred_fallthru
        _
      // Predicated region
      $region93: #{decision_transformer_forward.1} parent=11 // pred_check
        %p795 = pneg %p610
      $region94: #{decision_transformer_forward.1} parent=11 // pred_check_branch
        %797 = sbr.rel (%p795) target = $region96
      $region95: #{decision_transformer_forward.1} parent=11 // pred_region
        _
      $region96: #{decision_transformer_forward.1} parent=11 // pred_fallthru
        _
      // Predicated region
      $region97: #{decision_transformer_forward.1} parent=11 // pred_check
        %p798 = pneg %p631
      $region98: #{decision_transformer_forward.1} parent=11 // pred_check_branch
        %800 = sbr.rel (%p798) target = $region100
      $region99: #{decision_transformer_forward.1} parent=11 // pred_region
        _
      $region100: #{decision_transformer_forward.1} parent=11 // pred_fallthru
        _
      // Predicated region
      $region101: #{decision_transformer_forward.1} parent=11 // pred_check
        %p801 = pneg %p652
      $region102: #{decision_transformer_forward.1} parent=11 // pred_check_branch
        %803 = sbr.rel (%p801) target = $region104
      $region103: #{decision_transformer_forward.1} parent=11 // pred_region
        _
      $region104: #{decision_transformer_forward.1} parent=11 // pred_fallthru
        _
      // Predicated region
      $region105: #{decision_transformer_forward.1} parent=11 // pred_check
        %p804 = pneg %p673
      $region106: #{decision_transformer_forward.1} parent=11 // pred_check_branch
        %806 = sbr.rel (%p804) target = $region108
      $region107: #{decision_transformer_forward.1} parent=11 // pred_region
        _
      $region108: #{decision_transformer_forward.1} parent=11 // pred_fallthru
        _
      // Predicated region
      $region109: #{decision_transformer_forward.1} parent=11 // pred_check
        %p807 = pneg %p694
      $region110: #{decision_transformer_forward.1} parent=11 // pred_check_branch
        %809 = sbr.rel (%p807) target = $region112
      $region111: #{decision_transformer_forward.1} parent=11 // pred_region
        _
      $region112: #{decision_transformer_forward.1} parent=11 // pred_fallthru
        _
    $region12: #{decision_transformer_forward.1} parent=5 // pred_fallthru
      _
    %p810 = scmp.lt.s32.totalorder %s65, 2
    // Predicated region
    $region113: #{decision_transformer_forward.1} parent=5 // pred_check
      %p811 = pneg %p810
    $region114: #{decision_transformer_forward.1} parent=5 // pred_check_branch
      %813 = sbr.rel (%p811) target = $region116
    $region115: #{decision_transformer_forward.1} parent=5 // pred_region
      // Predicated region
      $region117: #{decision_transformer_forward.1} parent=115 // pred_check
        %p814 = pneg %p85
      $region118: #{decision_transformer_forward.1} parent=115 // pred_check_branch
        %816 = sbr.rel (%p814) target = $region120
      $region119: #{decision_transformer_forward.1} parent=115 // pred_region
        %p817 = scmp.lt.s32.totalorder %s65, 1
        %s818 = scalar_select %p817, %s65, 1
        %s819 = smul.addr %s818, 4
        %s820 = scalar_lea.vmem %s1, %s819
      $region120: #{decision_transformer_forward.1} parent=115 // pred_fallthru
        _
      // Predicated region
      $region121: #{decision_transformer_forward.1} parent=115 // pred_check
        %p821 = pneg %p111
      $region122: #{decision_transformer_forward.1} parent=115 // pred_check_branch
        %823 = sbr.rel (%p821) target = $region124
      $region123: #{decision_transformer_forward.1} parent=115 // pred_region
        %p824 = scmp.lt.s32.totalorder %s65, 1
        %s825 = scalar_select %p824, %s65, 1
        %s826 = smul.addr %s825, 4
        %s827 = scalar_lea.vmem %s3, %s826
      $region124: #{decision_transformer_forward.1} parent=115 // pred_fallthru
        _
      // Predicated region
      $region125: #{decision_transformer_forward.1} parent=115 // pred_check
        %p828 = pneg %p137
      $region126: #{decision_transformer_forward.1} parent=115 // pred_check_branch
        %830 = sbr.rel (%p828) target = $region128
      $region127: #{decision_transformer_forward.1} parent=115 // pred_region
        %p831 = scmp.lt.s32.totalorder %s65, 1
        %s832 = scalar_select %p831, %s65, 1
        %s833 = smul.addr %s832, 4
        %s834 = scalar_lea.vmem %s5, %s833
      $region128: #{decision_transformer_forward.1} parent=115 // pred_fallthru
        _
      // Predicated region
      $region129: #{decision_transformer_forward.1} parent=115 // pred_check
        %p835 = pneg %p163
      $region130: #{decision_transformer_forward.1} parent=115 // pred_check_branch
        %837 = sbr.rel (%p835) target = $region132
      $region131: #{decision_transformer_forward.1} parent=115 // pred_region
        %p838 = scmp.lt.s32.totalorder %s65, 1
        %s839 = scalar_select %p838, %s65, 1
        %s840 = smul.addr %s839, 4
        %s841 = scalar_lea.vmem %s7, %s840
      $region132: #{decision_transformer_forward.1} parent=115 // pred_fallthru
        _
    $region116: #{decision_transformer_forward.1} parent=5 // pred_fallthru
      _
    %p842 = scmp.le.s32.totalorder 1, %s65
    %p843 = scmp.lt.s32.totalorder %s65, 3
    %p844 = pnand %p842, %p843
    %p845 = pneg %p844
    // Predicated region
    $region133: #{decision_transformer_forward.1} parent=5 // pred_check
      _
    $region134: #{decision_transformer_forward.1} parent=5 // pred_check_branch
      %847 = sbr.rel (%p844) target = $region136
    $region135: #{decision_transformer_forward.1} parent=5 // pred_region
      %s848 = ssub.s32 %s65, 1
      %p849 = scmp.lt.s32.totalorder %s70, 1
      %s850 = scalar_select %p849, %s70, 1
      %s851 = smul.addr %s850, 4
      %s852 = scalar_lea.vmem %s1, %s851
      %p853 = pneg %p91
      %p854 = pneg %p88
      %p855 = scmp.lt.s32.totalorder %s70, 1
      %s856 = scalar_select %p855, %s70, 1
      %s857 = smul.addr %s856, 4
      %s858 = scalar_lea.vmem %s3, %s857
      %p859 = pneg %p117
      %p860 = pneg %p114
      %p861 = scmp.lt.s32.totalorder %s70, 1
      %s862 = scalar_select %p861, %s70, 1
      %s863 = smul.addr %s862, 4
      %s864 = scalar_lea.vmem %s5, %s863
      %p865 = pneg %p143
      %p866 = pneg %p140
      %p867 = scmp.lt.s32.totalorder %s70, 1
      %s868 = scalar_select %p867, %s70, 1
      %s869 = smul.addr %s868, 4
      %s870 = scalar_lea.vmem %s7, %s869
      %p871 = pneg %p169
      %p872 = pneg %p166
      %p873 = pneg %p190
      %p874 = pneg %p187
      %p875 = pneg %p211
      %p876 = pneg %p208
      %p877 = pneg %p232
      %p878 = pneg %p229
      %p879 = pneg %p253
      %p880 = pneg %p250
      %p881 = pneg %p274
      %p882 = pneg %p271
      %p883 = pneg %p295
      %p884 = pneg %p292
      %p885 = pneg %p316
      %p886 = pneg %p313
      %p887 = pneg %p337
      %p888 = pneg %p334
      %p889 = pneg %p358
      %p890 = pneg %p355
      %p891 = pneg %p379
      %p892 = pneg %p376
      %p893 = pneg %p400
      %p894 = pneg %p397
      %p895 = pneg %p421
      %p896 = pneg %p418
      %p897 = pneg %p442
      %p898 = pneg %p439
      %p899 = pneg %p463
      %p900 = pneg %p460
      %p901 = pneg %p484
      %p902 = pneg %p481
      %p903 = pneg %p505
      %p904 = pneg %p502
      %p905 = pneg %p526
      %p906 = pneg %p523
      %p907 = pneg %p547
      %p908 = pneg %p544
      %p909 = pneg %p568
      %p910 = pneg %p565
      %p911 = pneg %p589
      %p912 = pneg %p586
      %p913 = pneg %p610
      %p914 = pneg %p607
      %p915 = pneg %p631
      %p916 = pneg %p628
      %p917 = pneg %p652
      %p918 = pneg %p649
      %p919 = pneg %p673
      %p920 = pneg %p670
      %p921 = pneg %p694
      %p922 = pneg %p691
      %p923 = pneg %p720
      %p924 = pneg %p717
      %p925 = scmp.lt.s32.totalorder %s70, 1
      %s926 = scalar_select %p925, %s70, 1
      %s927 = smul.addr %s926, 4
      %s928 = scalar_lea.vmem %s59, %s927
      %p929 = scmp.lt.s32.totalorder %s70, 1
      %s930 = scalar_select %p929, %s70, 1
      %s931 = smul.addr %s930, 4
      %s932 = scalar_lea.vmem %s1, %s931
      %p933 = scmp.lt.s32.totalorder %s70, 1
      %s934 = scalar_select %p933, %s70, 1
      %s935 = smul.addr %s934, 4
      %s936 = scalar_lea.vmem %s3, %s935
      %p937 = scmp.lt.s32.totalorder %s70, 1
      %s938 = scalar_select %p937, %s70, 1
      %s939 = smul.addr %s938, 4
      %s940 = scalar_lea.vmem %s5, %s939
      %p941 = scmp.lt.s32.totalorder %s70, 1
      %s942 = scalar_select %p941, %s70, 1
      %s943 = smul.addr %s942, 4
      %s944 = scalar_lea.vmem %s7, %s943
      %p945 = scmp.lt.s32.totalorder %s70, 1
      %s946 = scalar_select %p945, %s70, 1
      %s947 = smul.addr %s946, 4
      %s948 = scalar_lea.vmem %s59, %s947
      %v949 = vld [vmem:[%s944] sm:$0xf]
      %v950 = vld [vmem:[%s932] sm:$0xf]
      %v951 = vld [vmem:[%s11] sm:$0xff]
      %v952 = vld [vmem:[%s13] sm:$0x1]
      %v954 = vlaneseq
      %v955 = vshrl.u32 %v954, 7
      %v956 = vsub.s32 0, %v955
      %v957 = vrot.slane %v952, %v956
      %vm959 = vcmask 64512
      %v961 = vsel %vm959, %v950, 0
      %963 = vmatprep.subr.mxu0 0.0
      %964 = vmatpush1.msra.mxu0 0.0
      %965 = vmatprep.subr.mxu0 0.0
      %966 = vmatpush1.msra.mxu0 0.0
      %967 = vmatprep.subr.mxu0 0.0
      %968 = vmatpush1.msra.mxu0 0.0
      %969 = vmatprep.subr.mxu0 0.0
      %970 = vmatpush1.msra.mxu0 0.0
      %971 = vmatprep.subr.mxu0 0.0
      %972 = vmatpush1.msra.mxu0 0.0
      %973 = vmatprep.subr.mxu0 0.0
      %974 = vmatpush1.msra.mxu0 0.0
      %975 = vmatprep.subr.mxu0 0.0
      %976 = vmatpush1.msra.mxu0 0.0
      %977 = vmatprep.subr.mxu0 0.0
      %978 = vmatpush1.msra.mxu0 0.0
      %979 = vmatprep.subr.mxu0 0.0
      %980 = vmatpush1.msra.mxu0 0.0
      %981 = vmatprep.subr.mxu0 0.0
      %982 = vmatpush1.msra.mxu0 0.0
      %983 = vmatprep.subr.mxu0 0.0
      %984 = vmatpush1.msra.mxu0 0.0
      %985 = vmatprep.subr.mxu0 0.0
      %986 = vmatpush1.msra.mxu0 0.0
      %987 = vmatprep.subr.mxu0 0.0
      %988 = vmatpush1.msra.mxu0 0.0
      %989 = vmatprep.subr.mxu0 0.0
      %990 = vmatpush1.msra.mxu0 0.0
      %991 = vmatprep.subr.mxu0 0.0
      %992 = vmatpush1.msra.mxu0 0.0
      %993 = vmatprep.subr.mxu0 0.0
      %994 = vmatpush1.msra.mxu0 %v951
      %995 = vmatprep.subr.mxu0 0.0
      %996 = vmatpush2.msra.mxu0 0.0
      %997 = vmatprep.subr.mxu0 0.0
      %998 = vmatpush2.msra.mxu0 0.0
      %999 = vmatprep.subr.mxu0 0.0
      %1000 = vmatpush2.msra.mxu0 0.0
      %1001 = vmatprep.subr.mxu0 0.0
      %1002 = vmatpush2.msra.mxu0 0.0
      %1003 = vmatprep.subr.mxu0 0.0
      %1004 = vmatpush2.msra.mxu0 0.0
      %1005 = vmatprep.subr.mxu0 0.0
      %1006 = vmatpush2.msra.mxu0 0.0
      %1007 = vmatprep.subr.mxu0 0.0
      %1008 = vmatpush2.msra.mxu0 0.0
      %1009 = vmatprep.subr.mxu0 0.0
      %1010 = vmatpush2.msra.mxu0 0.0
      %1011 = vmatprep.subr.mxu0 0.0
      %1012 = vmatpush2.msra.mxu0 0.0
      %1013 = vmatprep.subr.mxu0 0.0
      %1014 = vmatpush2.msra.mxu0 0.0
      %1015 = vmatprep.subr.mxu0 0.0
      %1016 = vmatpush2.msra.mxu0 0.0
      %1017 = vmatprep.subr.mxu0 0.0
      %1018 = vmatpush2.msra.mxu0 0.0
      %1019 = vmatprep.subr.mxu0 0.0
      %1020 = vmatpush2.msra.mxu0 0.0
      %1021 = vmatprep.subr.mxu0 0.0
      %1022 = vmatpush2.msra.mxu0 0.0
      %1023 = vmatprep.subr.mxu0 0.0
      %1024 = vmatpush2.msra.mxu0 0.0
      %1025 = vmatprep.subr.mxu0 0.0
      %1026 = vmatpush2.msra.mxu0 0.0
      %1027 = vmatprep.mubr.f32.mxu0 0.0
      %1028 = vmatmul.mubr.f32.gmra.mxu0 %v961
      %v1029 = vpop.f32.mrf.mxu0
      %v1030 = vadd.f32 %v957, %v1029
      %v1031 = vpop.f32.mrf.mxu0
      %1032 = vdwg.mxu0
      %v1033 = vmax.f32 %v1030, 0.0
      %v1034 = vadd.f32 %v1033, %v949
      %v1035 = vld [vmem:[%s936] sm:$0xf]
      %v1036 = vld [vmem:[%s15] sm:$0x7]
      %v1037 = vld [vmem:[%s17] sm:$0x1]
      %v1039 = vlaneseq
      %v1040 = vshrl.u32 %v1039, 7
      %v1041 = vsub.s32 0, %v1040
      %v1042 = vrot.slane %v1037, %v1041
      %vm1044 = vcmask 23552
      %v1046 = vsel %vm1044, %v1035, 0
      %vm1048 = vcmask 1042432
      %v1050 = vsel %vm1048, %v1036, 0
      %1052 = vmatprep.subr.mxu0 0.0
      %1053 = vmatpush1.msra.mxu0 0.0
      %1054 = vmatprep.subr.mxu0 0.0
      %1055 = vmatpush1.msra.mxu0 0.0
      %1056 = vmatprep.subr.mxu0 0.0
      %1057 = vmatpush1.msra.mxu0 0.0
      %1058 = vmatprep.subr.mxu0 0.0
      %1059 = vmatpush1.msra.mxu0 0.0
      %1060 = vmatprep.subr.mxu0 0.0
      %1061 = vmatpush1.msra.mxu0 0.0
      %1062 = vmatprep.subr.mxu0 0.0
      %1063 = vmatpush1.msra.mxu0 0.0
      %1064 = vmatprep.subr.mxu0 0.0
      %1065 = vmatpush1.msra.mxu0 0.0
      %1066 = vmatprep.subr.mxu0 0.0
      %1067 = vmatpush1.msra.mxu0 0.0
      %1068 = vmatprep.subr.mxu0 0.0
      %1069 = vmatpush1.msra.mxu0 0.0
      %1070 = vmatprep.subr.mxu0 0.0
      %1071 = vmatpush1.msra.mxu0 0.0
      %1072 = vmatprep.subr.mxu0 0.0
      %1073 = vmatpush1.msra.mxu0 0.0
      %1074 = vmatprep.subr.mxu0 0.0
      %1075 = vmatpush1.msra.mxu0 0.0
      %1076 = vmatprep.subr.mxu0 0.0
      %1077 = vmatpush1.msra.mxu0 0.0
      %1078 = vmatprep.subr.mxu0 0.0
      %1079 = vmatpush1.msra.mxu0 0.0
      %1080 = vmatprep.subr.mxu0 0.0
      %1081 = vmatpush1.msra.mxu0 0.0
      %1082 = vmatprep.subr.mxu0 0.0
      %1083 = vmatpush1.msra.mxu0 %v1050
      %1084 = vmatprep.subr.mxu0 0.0
      %1085 = vmatpush2.msra.mxu0 0.0
      %1086 = vmatprep.subr.mxu0 0.0
      %1087 = vmatpush2.msra.mxu0 0.0
      %1088 = vmatprep.subr.mxu0 0.0
      %1089 = vmatpush2.msra.mxu0 0.0
      %1090 = vmatprep.subr.mxu0 0.0
      %1091 = vmatpush2.msra.mxu0 0.0
      %1092 = vmatprep.subr.mxu0 0.0
      %1093 = vmatpush2.msra.mxu0 0.0
      %1094 = vmatprep.subr.mxu0 0.0
      %1095 = vmatpush2.msra.mxu0 0.0
      %1096 = vmatprep.subr.mxu0 0.0
      %1097 = vmatpush2.msra.mxu0 0.0
      %1098 = vmatprep.subr.mxu0 0.0
      %1099 = vmatpush2.msra.mxu0 0.0
      %1100 = vmatprep.subr.mxu0 0.0
      %1101 = vmatpush2.msra.mxu0 0.0
      %1102 = vmatprep.subr.mxu0 0.0
      %1103 = vmatpush2.msra.mxu0 0.0
      %1104 = vmatprep.subr.mxu0 0.0
      %1105 = vmatpush2.msra.mxu0 0.0
      %1106 = vmatprep.subr.mxu0 0.0
      %1107 = vmatpush2.msra.mxu0 0.0
      %1108 = vmatprep.subr.mxu0 0.0
      %1109 = vmatpush2.msra.mxu0 0.0
      %1110 = vmatprep.subr.mxu0 0.0
      %1111 = vmatpush2.msra.mxu0 0.0
      %1112 = vmatprep.subr.mxu0 0.0
      %1113 = vmatpush2.msra.mxu0 0.0
      %1114 = vmatprep.subr.mxu0 0.0
      %1115 = vmatpush2.msra.mxu0 0.0
      %1116 = vmatprep.mubr.f32.mxu0 0.0
      %1117 = vmatmul.mubr.f32.gmra.mxu0 %v1046
      %v1118 = vpop.f32.mrf.mxu0
      %v1119 = vadd.f32 %v1042, %v1118
      %v1120 = vpop.f32.mrf.mxu0
      %1121 = vdwg.mxu0
      %v1122 = vadd.f32 %v1119, %v949
      %v1123 = vld [vmem:[%s940] sm:$0xf]
      %v1124 = vld [vmem:[%s19] sm:$0x1]
      %v1125 = vld [vmem:[%s21] sm:$0x1]
      %v1127 = vlaneseq
      %v1128 = vshrl.u32 %v1127, 7
      %v1129 = vsub.s32 0, %v1128
      %v1130 = vrot.slane %v1125, %v1129
      %vm1132 = vcmask 7168
      %v1134 = vsel %vm1132, %v1123, 0
      %vm1136 = vcmask 1040384
      %v1138 = vsel %vm1136, %v1124, 0
      %1140 = vmatprep.subr.mxu0 0.0
      %1141 = vmatpush1.msra.mxu0 0.0
      %1142 = vmatprep.subr.mxu0 0.0
      %1143 = vmatpush1.msra.mxu0 0.0
      %1144 = vmatprep.subr.mxu0 0.0
      %1145 = vmatpush1.msra.mxu0 0.0
      %1146 = vmatprep.subr.mxu0 0.0
      %1147 = vmatpush1.msra.mxu0 0.0
      %1148 = vmatprep.subr.mxu0 0.0
      %1149 = vmatpush1.msra.mxu0 0.0
      %1150 = vmatprep.subr.mxu0 0.0
      %1151 = vmatpush1.msra.mxu0 0.0
      %1152 = vmatprep.subr.mxu0 0.0
      %1153 = vmatpush1.msra.mxu0 0.0
      %1154 = vmatprep.subr.mxu0 0.0
      %1155 = vmatpush1.msra.mxu0 0.0
      %1156 = vmatprep.subr.mxu0 0.0
      %1157 = vmatpush1.msra.mxu0 0.0
      %1158 = vmatprep.subr.mxu0 0.0
      %1159 = vmatpush1.msra.mxu0 0.0
      %1160 = vmatprep.subr.mxu0 0.0
      %1161 = vmatpush1.msra.mxu0 0.0
      %1162 = vmatprep.subr.mxu0 0.0
      %1163 = vmatpush1.msra.mxu0 0.0
      %1164 = vmatprep.subr.mxu0 0.0
      %1165 = vmatpush1.msra.mxu0 0.0
      %1166 = vmatprep.subr.mxu0 0.0
      %1167 = vmatpush1.msra.mxu0 0.0
      %1168 = vmatprep.subr.mxu0 0.0
      %1169 = vmatpush1.msra.mxu0 0.0
      %1170 = vmatprep.subr.mxu0 0.0
      %1171 = vmatpush1.msra.mxu0 %v1138
      %1172 = vmatprep.subr.mxu0 0.0
      %1173 = vmatpush2.msra.mxu0 0.0
      %1174 = vmatprep.subr.mxu0 0.0
      %1175 = vmatpush2.msra.mxu0 0.0
      %1176 = vmatprep.subr.mxu0 0.0
      %1177 = vmatpush2.msra.mxu0 0.0
      %1178 = vmatprep.subr.mxu0 0.0
      %1179 = vmatpush2.msra.mxu0 0.0
      %1180 = vmatprep.subr.mxu0 0.0
      %1181 = vmatpush2.msra.mxu0 0.0
      %1182 = vmatprep.subr.mxu0 0.0
      %1183 = vmatpush2.msra.mxu0 0.0
      %1184 = vmatprep.subr.mxu0 0.0
      %1185 = vmatpush2.msra.mxu0 0.0
      %1186 = vmatprep.subr.mxu0 0.0
      %1187 = vmatpush2.msra.mxu0 0.0
      %1188 = vmatprep.subr.mxu0 0.0
      %1189 = vmatpush2.msra.mxu0 0.0
      %1190 = vmatprep.subr.mxu0 0.0
      %1191 = vmatpush2.msra.mxu0 0.0
      %1192 = vmatprep.subr.mxu0 0.0
      %1193 = vmatpush2.msra.mxu0 0.0
      %1194 = vmatprep.subr.mxu0 0.0
      %1195 = vmatpush2.msra.mxu0 0.0
      %1196 = vmatprep.subr.mxu0 0.0
      %1197 = vmatpush2.msra.mxu0 0.0
      %1198 = vmatprep.subr.mxu0 0.0
      %1199 = vmatpush2.msra.mxu0 0.0
      %1200 = vmatprep.subr.mxu0 0.0
      %1201 = vmatpush2.msra.mxu0 0.0
      %1202 = vmatprep.subr.mxu0 0.0
      %1203 = vmatpush2.msra.mxu0 0.0
      %1204 = vmatprep.mubr.f32.mxu0 0.0
      %1205 = vmatmul.mubr.f32.gmra.mxu0 %v1134
      %v1206 = vpop.f32.mrf.mxu0
      %v1207 = vadd.f32 %v1130, %v1206
      %v1208 = vpop.f32.mrf.mxu0
      %1209 = vdwg.mxu0
      %v1210 = vadd.f32 %v1207, %v949
      %v1212 = vrot.slane %v1034, 4
      %vm1214 = vcmask 1043456
      %v1215 = vsel %vm1214, %v1210, %v1212
      %v1216 = vld [vmem:[%s23] sm:$0x1]
      %v1217 = vld [vmem:[%s25] sm:$0x1]
      %vm1218 = vcmask 261120
      %v1219 = vsel %vm1218, %v1215, 0.0
      %1220 = vadd.xlane.f32.xlu0 %v1219
      %v1221 = vpop.xlane.xlu0 %1220
      %vm1222 = vcmask 257024
      %v1223 = vsel %vm1222, %v1122, 0.0
      %1224 = vadd.xlane.f32.xlu0 %v1223
      %v1225 = vpop.xlane.xlu0 %1224
      %v1226 = vrcp.pop 32.0
      %v1227 = vmul.f32 %v1221, %v1226
      %v1228 = vmul.f32 %v1225, %v1226
      %v1229 = vsub.f32 %v1215, %v1227
      %v1230 = vsub.f32 %v1122, %v1228
      %v1231 = vmul.f32 %v1229, %v1229
      %v1232 = vmul.f32 %v1230, %v1230
      %v1233 = vsel %vm1218, %v1231, 0.0
      %1234 = vadd.xlane.f32.xlu0 %v1233
      %v1235 = vpop.xlane.xlu0 %1234
      %v1236 = vsel %vm1222, %v1232, 0.0
      %1237 = vadd.xlane.f32.xlu0 %v1236
      %v1238 = vpop.xlane.xlu0 %1237
      %v1239 = vmul.f32 %v1235, %v1226
      %v1240 = vmul.f32 %v1238, %v1226
      %v1241 = vadd.f32 %v1239, 1e-05
      %v1242 = vadd.f32 %v1240, 1e-05
      %v1243 = vrsqrt.pop %v1241
      %v1244 = vrsqrt.pop %v1242
      %v1245 = vmul.f32 %v1229, %v1243
      %v1246 = vmul.f32 %v1230, %v1244
      %v1248 = vlaneseq
      %v1249 = vshrl.u32 %v1248, 7
      %v1250 = vsub.s32 0, %v1249
      %v1251 = vrot.slane %v1216, %v1250
      %v1253 = vmul.f32 %v1245, %v1251
      %v1254 = vmul.f32 %v1246, %v1251
      %v1256 = vlaneseq
      %v1257 = vshrl.u32 %v1256, 7
      %v1258 = vsub.s32 0, %v1257
      %v1259 = vrot.slane %v1217, %v1258
      %v1261 = vadd.f32 %v1253, %v1259
      %v1262 = vadd.f32 %v1254, %v1259
      %v1263 = vld [vmem:[%s9] sm:$0xff]
      %v1264 = vld [vmem:[%s9 + $0x8] sm:$0xf]
      %vm1265 = vcmp.gt.f32.partialorder %v1263, 0.0
      %vm1266 = vcmp.gt.f32.partialorder %v1264, 0.0
      %v1267 = vld [vmem:[%s27] sm:$0x1]
      %v1268 = vld [vmem:[%s29] sm:$0x1]
      %v1269 = vsel %vm1218, %v1261, 0.0
      %1270 = vadd.xlane.f32.xlu0 %v1269
      %v1271 = vpop.xlane.xlu0 %1270
      %v1272 = vsel %vm1222, %v1262, 0.0
      %1273 = vadd.xlane.f32.xlu0 %v1272
      %v1274 = vpop.xlane.xlu0 %1273
      %v1275 = vmul.f32 %v1271, %v1226
      %v1276 = vmul.f32 %v1274, %v1226
      %v1277 = vsub.f32 %v1261, %v1275
      %v1278 = vsub.f32 %v1262, %v1276
      %v1279 = vmul.f32 %v1277, %v1277
      %v1280 = vmul.f32 %v1278, %v1278
      %v1281 = vsel %vm1218, %v1279, 0.0
      %1282 = vadd.xlane.f32.xlu0 %v1281
      %v1283 = vpop.xlane.xlu0 %1282
      %v1284 = vsel %vm1222, %v1280, 0.0
      %1285 = vadd.xlane.f32.xlu0 %v1284
      %v1286 = vpop.xlane.xlu0 %1285
      %v1287 = vmul.f32 %v1283, %v1226
      %v1288 = vmul.f32 %v1286, %v1226
      %v1289 = vadd.f32 %v1287, 0.003
      %v1290 = vadd.f32 %v1288, 0.003
      %v1291 = vrsqrt.pop %v1289
      %v1292 = vrsqrt.pop %v1290
      %v1293 = vmul.f32 %v1277, %v1291
      %v1294 = vmul.f32 %v1278, %v1292
      %v1296 = vlaneseq
      %v1297 = vshrl.u32 %v1296, 7
      %v1298 = vsub.s32 0, %v1297
      %v1299 = vrot.slane %v1267, %v1298
      %v1301 = vmul.f32 %v1293, %v1299
      %v1302 = vmul.f32 %v1294, %v1299
      %v1304 = vlaneseq
      %v1305 = vshrl.u32 %v1304, 7
      %v1306 = vsub.s32 0, %v1305
      %v1307 = vrot.slane %v1268, %v1306
      %v1309 = vadd.f32 %v1301, %v1307
      %v1310 = vadd.f32 %v1302, %v1307
      %v1311 = vld [vmem:[%s31] sm:$0xff]
      %v1312 = vld [vmem:[%s31 + $0x8] sm:$0xff]
      %v1313 = vld [vmem:[%s31 + $0x10] sm:$0xff]
      %v1314 = vld [vmem:[%s31 + $0x18] sm:$0xff]
      %v1315 = vld [vmem:[%s33] sm:$0x1]
      %v1317 = vlaneseq
      %v1318 = vshrl.u32 %v1317, 7
      %v1319 = vsub.s32 0, %v1318
      %v1320 = vrot.slane %v1315, %v1319
      %v1323 = vsel %vm1218, %v1309, 0
      %v1326 = vsel %vm1218, %v1310, 0
      %1328 = vmatprep.subr.mxu0 0.0
      %1329 = vmatpush1.msra.mxu0 0.0
      %1330 = vmatprep.subr.mxu0 0.0
      %1331 = vmatpush1.msra.mxu0 0.0
      %1332 = vmatprep.subr.mxu0 0.0
      %1333 = vmatpush1.msra.mxu0 0.0
      %1334 = vmatprep.subr.mxu0 0.0
      %1335 = vmatpush1.msra.mxu0 0.0
      %1336 = vmatprep.subr.mxu0 0.0
      %1337 = vmatpush1.msra.mxu0 0.0
      %1338 = vmatprep.subr.mxu0 0.0
      %1339 = vmatpush1.msra.mxu0 0.0
      %1340 = vmatprep.subr.mxu0 0.0
      %1341 = vmatpush1.msra.mxu0 0.0
      %1342 = vmatprep.subr.mxu0 0.0
      %1343 = vmatpush1.msra.mxu0 0.0
      %1344 = vmatprep.subr.mxu0 0.0
      %1345 = vmatpush1.msra.mxu0 0.0
      %1346 = vmatprep.subr.mxu0 0.0
      %1347 = vmatpush1.msra.mxu0 0.0
      %1348 = vmatprep.subr.mxu0 0.0
      %1349 = vmatpush1.msra.mxu0 0.0
      %1350 = vmatprep.subr.mxu0 0.0
      %1351 = vmatpush1.msra.mxu0 0.0
      %1352 = vmatprep.subr.mxu0 0.0
      %1353 = vmatpush1.msra.mxu0 %v1314
      %1354 = vmatprep.subr.mxu0 0.0
      %1355 = vmatpush1.msra.mxu0 %v1313
      %1356 = vmatprep.subr.mxu0 0.0
      %1357 = vmatpush1.msra.mxu0 %v1312
      %1358 = vmatprep.subr.mxu0 0.0
      %1359 = vmatpush1.msra.mxu0 %v1311
      %1360 = vmatprep.subr.mxu0 0.0
      %1361 = vmatpush2.msra.mxu0 0.0
      %1362 = vmatprep.subr.mxu0 0.0
      %1363 = vmatpush2.msra.mxu0 0.0
      %1364 = vmatprep.subr.mxu0 0.0
      %1365 = vmatpush2.msra.mxu0 0.0
      %1366 = vmatprep.subr.mxu0 0.0
      %1367 = vmatpush2.msra.mxu0 0.0
      %1368 = vmatprep.subr.mxu0 0.0
      %1369 = vmatpush2.msra.mxu0 0.0
      %1370 = vmatprep.subr.mxu0 0.0
      %1371 = vmatpush2.msra.mxu0 0.0
      %1372 = vmatprep.subr.mxu0 0.0
      %1373 = vmatpush2.msra.mxu0 0.0
      %1374 = vmatprep.subr.mxu0 0.0
      %1375 = vmatpush2.msra.mxu0 0.0
      %1376 = vmatprep.subr.mxu0 0.0
      %1377 = vmatpush2.msra.mxu0 0.0
      %1378 = vmatprep.subr.mxu0 0.0
      %1379 = vmatpush2.msra.mxu0 0.0
      %1380 = vmatprep.subr.mxu0 0.0
      %1381 = vmatpush2.msra.mxu0 0.0
      %1382 = vmatprep.subr.mxu0 0.0
      %1383 = vmatpush2.msra.mxu0 0.0
      %1384 = vmatprep.subr.mxu0 0.0
      %1385 = vmatpush2.msra.mxu0 0.0
      %1386 = vmatprep.subr.mxu0 0.0
      %1387 = vmatpush2.msra.mxu0 0.0
      %1388 = vmatprep.subr.mxu0 0.0
      %1389 = vmatpush2.msra.mxu0 0.0
      %1390 = vmatprep.subr.mxu0 0.0
      %1391 = vmatpush2.msra.mxu0 0.0
      %1392 = vmatprep.mubr.f32.mxu0 0.0
      %1393 = vmatmul.mubr.f32.gmra.mxu0 %v1323
      %v1394 = vpop.f32.mrf.mxu0
      %v1395 = vadd.f32 %v1320, %v1394
      %v1396 = vpop.f32.mrf.mxu0
      %1397 = vmatprep.mubr.f32.mxu0 0.0
      %1398 = vmatmul.mubr.f32.gmra.mxu0 %v1326
      %v1399 = vpop.f32.mrf.mxu0
      %v1400 = vadd.f32 %v1320, %v1399
      %v1401 = vpop.f32.mrf.mxu0
      %1402 = vdwg.mxu0
      %v1403 = vmul.f32 %v1395, 0.25
      %v1404 = vmul.f32 %v1400, 0.25
      %1407 = vrot.lane.b32.xlu0 %v1395, 96
      %v1408 = vpop.permute.xlu0 %1407
      %1409 = vrot.lane.b32.xlu0 %v1400, 96
      %v1410 = vpop.permute.xlu0 %1409
      %vm1411 = vcmask 130048
      %v1413 = vsel %vm1411, %v1403, 0
      %v1416 = vsel %vm1411, %v1404, 0
      %v1418 = vsel %vm1411, %v1408, 0
      %v1420 = vsel %vm1411, %v1410, 0
      %1422 = vmatprep.subr.mxu0 0.0
      %1423 = vmatpush1.xpose.msra.mxu0 0.0
      %1424 = vmatprep.subr.mxu0 0.0
      %1425 = vmatpush1.xpose.msra.mxu0 0.0
      %1426 = vmatprep.subr.mxu0 0.0
      %1427 = vmatpush1.xpose.msra.mxu0 0.0
      %1428 = vmatprep.subr.mxu0 0.0
      %1429 = vmatpush1.xpose.msra.mxu0 0.0
      %1430 = vmatprep.subr.mxu0 0.0
      %1431 = vmatpush1.xpose.msra.mxu0 0.0
      %1432 = vmatprep.subr.mxu0 0.0
      %1433 = vmatpush1.xpose.msra.mxu0 0.0
      %1434 = vmatprep.subr.mxu0 0.0
      %1435 = vmatpush1.xpose.msra.mxu0 0.0
      %1436 = vmatprep.subr.mxu0 0.0
      %1437 = vmatpush1.xpose.msra.mxu0 0.0
      %1438 = vmatprep.subr.mxu0 0.0
      %1439 = vmatpush1.xpose.msra.mxu0 0.0
      %1440 = vmatprep.subr.mxu0 0.0
      %1441 = vmatpush1.xpose.msra.mxu0 0.0
      %1442 = vmatprep.subr.mxu0 0.0
      %1443 = vmatpush1.xpose.msra.mxu0 0.0
      %1444 = vmatprep.subr.mxu0 0.0
      %1445 = vmatpush1.xpose.msra.mxu0 0.0
      %1446 = vmatprep.subr.mxu0 0.0
      %1447 = vmatpush1.xpose.msra.mxu0 0.0
      %1448 = vmatprep.subr.mxu0 0.0
      %1449 = vmatpush1.xpose.msra.mxu0 0.0
      %1450 = vmatprep.subr.mxu0 0.0
      %1451 = vmatpush1.xpose.msra.mxu0 %v1420
      %1452 = vmatprep.subr.mxu0 0.0
      %1453 = vmatpush1.xpose.msra.mxu0 %v1418
      %1454 = vmatprep.subr.mxu0 0.0
      %1455 = vmatpush2.xpose.msra.mxu0 0.0
      %1456 = vmatprep.subr.mxu0 0.0
      %1457 = vmatpush2.xpose.msra.mxu0 0.0
      %1458 = vmatprep.subr.mxu0 0.0
      %1459 = vmatpush2.xpose.msra.mxu0 0.0
      %1460 = vmatprep.subr.mxu0 0.0
      %1461 = vmatpush2.xpose.msra.mxu0 0.0
      %1462 = vmatprep.subr.mxu0 0.0
      %1463 = vmatpush2.xpose.msra.mxu0 0.0
      %1464 = vmatprep.subr.mxu0 0.0
      %1465 = vmatpush2.xpose.msra.mxu0 0.0
      %1466 = vmatprep.subr.mxu0 0.0
      %1467 = vmatpush2.xpose.msra.mxu0 0.0
      %1468 = vmatprep.subr.mxu0 0.0
      %1469 = vmatpush2.xpose.msra.mxu0 0.0
      %1470 = vmatprep.subr.mxu0 0.0
      %1471 = vmatpush2.xpose.msra.mxu0 0.0
      %1472 = vmatprep.subr.mxu0 0.0
      %1473 = vmatpush2.xpose.msra.mxu0 0.0
      %1474 = vmatprep.subr.mxu0 0.0
      %1475 = vmatpush2.xpose.msra.mxu0 0.0
      %1476 = vmatprep.subr.mxu0 0.0
      %1477 = vmatpush2.xpose.msra.mxu0 0.0
      %1478 = vmatprep.subr.mxu0 0.0
      %1479 = vmatpush2.xpose.msra.mxu0 0.0
      %1480 = vmatprep.subr.mxu0 0.0
      %1481 = vmatpush2.xpose.msra.mxu0 0.0
      %1482 = vmatprep.subr.mxu0 0.0
      %1483 = vmatpush2.xpose.msra.mxu0 0.0
      %1484 = vmatprep.subr.mxu0 0.0
      %1485 = vmatpush2.xpose.msra.mxu0 0.0
      %1486 = vmatprep.mubr.f32.mxu0 0.0
      %1487 = vmatmul.mubr.f32.gmra.mxu0 %v1413
      %v1488 = vpop.f32.mrf.mxu0
      %v1489 = vadd.f32 0.0, %v1488
      %v1490 = vpop.f32.mrf.mxu0
      %1491 = vmatprep.mubr.f32.mxu0 0.0
      %1492 = vmatmul.mubr.f32.gmra.mxu0 %v1416
      %v1493 = vpop.f32.mrf.mxu0
      %v1494 = vadd.f32 0.0, %v1493
      %v1495 = vpop.f32.mrf.mxu0
      %1496 = vdwg.mxu0
      %v1497 = vsel %vm1265, %v1489, -1e+30
      %v1498 = vsel %vm1266, %v1494, -1e+30
      %vm1499 = vcmask 97280
      %v1500 = vsel %vm1499, %v1497, -inf
      %1501 = vmax.xlane.f32.xlu0 %v1500
      %v1502 = vpop.xlane.xlu0 %1501
      %vm1503 = vcmask 93184
      %v1504 = vsel %vm1503, %v1498, -inf
      %1505 = vmax.xlane.f32.xlu0 %v1504
      %v1506 = vpop.xlane.xlu0 %1505
      %v1507 = vsub.f32 %v1497, %v1502
      %v1508 = vsub.f32 %v1498, %v1506
      %v1509 = vmul.f32 %v1507, 1.442695
      %v1510 = vpow.pop %v1509
      %v1511 = vmul.f32 %v1508, 1.442695
      %v1512 = vpow.pop %v1511
      %v1513 = vsel %vm1499, %v1510, 0.0
      %1514 = vadd.xlane.f32.xlu0 %v1513
      %v1515 = vpop.xlane.xlu0 %1514
      %v1516 = vsel %vm1503, %v1512, 0.0
      %1517 = vadd.xlane.f32.xlu0 %v1516
      %v1518 = vpop.xlane.xlu0 %1517
      %v1519 = vrcp.pop %v1515
      %v1520 = vrcp.pop %v1518
      %v1521 = vmul.f32 %v1510, %v1519
      %v1522 = vmul.f32 %v1512, %v1520
      %1523 = vrot.lane.b32.xlu0 %v1395, 64
      %v1524 = vpop.permute.xlu0 %1523
      %1525 = vrot.lane.b32.xlu0 %v1400, 64
      %v1526 = vpop.permute.xlu0 %1525
      %v1529 = vsel %vm1499, %v1521, 0
      %v1532 = vsel %vm1499, %v1522, 0
      %v1534 = vsel %vm1214, %v1526, 0
      %1536 = vmatprep.subr.mxu0 0.0
      %1537 = vmatpush1.msra.mxu0 0.0
      %1538 = vmatprep.subr.mxu0 0.0
      %1539 = vmatpush1.msra.mxu0 0.0
      %1540 = vmatprep.subr.mxu0 0.0
      %1541 = vmatpush1.msra.mxu0 0.0
      %1542 = vmatprep.subr.mxu0 0.0
      %1543 = vmatpush1.msra.mxu0 0.0
      %1544 = vmatprep.subr.mxu0 0.0
      %1545 = vmatpush1.msra.mxu0 0.0
      %1546 = vmatprep.subr.mxu0 0.0
      %1547 = vmatpush1.msra.mxu0 0.0
      %1548 = vmatprep.subr.mxu0 0.0
      %1549 = vmatpush1.msra.mxu0 0.0
      %1550 = vmatprep.subr.mxu0 0.0
      %1551 = vmatpush1.msra.mxu0 0.0
      %1552 = vmatprep.subr.mxu0 0.0
      %1553 = vmatpush1.msra.mxu0 0.0
      %1554 = vmatprep.subr.mxu0 0.0
      %1555 = vmatpush1.msra.mxu0 0.0
      %1556 = vmatprep.subr.mxu0 0.0
      %1557 = vmatpush1.msra.mxu0 0.0
      %1558 = vmatprep.subr.mxu0 0.0
      %1559 = vmatpush1.msra.mxu0 0.0
      %1560 = vmatprep.subr.mxu0 0.0
      %1561 = vmatpush1.msra.mxu0 0.0
      %1562 = vmatprep.subr.mxu0 0.0
      %1563 = vmatpush1.msra.mxu0 0.0
      %1564 = vmatprep.subr.mxu0 0.0
      %1565 = vmatpush1.msra.mxu0 %v1534
      %1566 = vmatprep.subr.mxu0 0.0
      %1567 = vmatpush1.msra.mxu0 %v1524
      %1568 = vmatprep.subr.mxu0 0.0
      %1569 = vmatpush2.msra.mxu0 0.0
      %1570 = vmatprep.subr.mxu0 0.0
      %1571 = vmatpush2.msra.mxu0 0.0
      %1572 = vmatprep.subr.mxu0 0.0
      %1573 = vmatpush2.msra.mxu0 0.0
      %1574 = vmatprep.subr.mxu0 0.0
      %1575 = vmatpush2.msra.mxu0 0.0
      %1576 = vmatprep.subr.mxu0 0.0
      %1577 = vmatpush2.msra.mxu0 0.0
      %1578 = vmatprep.subr.mxu0 0.0
      %1579 = vmatpush2.msra.mxu0 0.0
      %1580 = vmatprep.subr.mxu0 0.0
      %1581 = vmatpush2.msra.mxu0 0.0
      %1582 = vmatprep.subr.mxu0 0.0
      %1583 = vmatpush2.msra.mxu0 0.0
      %1584 = vmatprep.subr.mxu0 0.0
      %1585 = vmatpush2.msra.mxu0 0.0
      %1586 = vmatprep.subr.mxu0 0.0
      %1587 = vmatpush2.msra.mxu0 0.0
      %1588 = vmatprep.subr.mxu0 0.0
      %1589 = vmatpush2.msra.mxu0 0.0
      %1590 = vmatprep.subr.mxu0 0.0
      %1591 = vmatpush2.msra.mxu0 0.0
      %1592 = vmatprep.subr.mxu0 0.0
      %1593 = vmatpush2.msra.mxu0 0.0
      %1594 = vmatprep.subr.mxu0 0.0
      %1595 = vmatpush2.msra.mxu0 0.0
      %1596 = vmatprep.subr.mxu0 0.0
      %1597 = vmatpush2.msra.mxu0 0.0
      %1598 = vmatprep.subr.mxu0 0.0
      %1599 = vmatpush2.msra.mxu0 0.0
      %1600 = vmatprep.mubr.f32.mxu0 0.0
      %1601 = vmatmul.mubr.f32.gmra.mxu0 %v1529
      %v1602 = vpop.f32.mrf.mxu0
      %v1603 = vadd.f32 0.0, %v1602
      %v1604 = vpop.f32.mrf.mxu0
      %1605 = vmatprep.mubr.f32.mxu0 0.0
      %1606 = vmatmul.mubr.f32.gmra.mxu0 %v1532
      %v1607 = vpop.f32.mrf.mxu0
      %v1608 = vadd.f32 0.0, %v1607
      %v1609 = vpop.f32.mrf.mxu0
      %1610 = vdwg.mxu0
      %1611 = vrot.lane.b32.xlu0 %v1403, 112
      %v1612 = vpop.permute.xlu0 %1611
      %1613 = vrot.lane.b32.xlu0 %v1404, 112
      %v1614 = vpop.permute.xlu0 %1613
      %1615 = vrot.lane.b32.xlu0 %v1395, 80
      %v1616 = vpop.permute.xlu0 %1615
      %1617 = vrot.lane.b32.xlu0 %v1400, 80
      %v1618 = vpop.permute.xlu0 %1617
      %v1619 = vsel %vm1411, %v1612, 0
      %v1621 = vsel %vm1411, %v1614, 0
      %v1623 = vsel %vm1411, %v1616, 0
      %v1625 = vsel %vm1411, %v1618, 0
      %1627 = vmatprep.subr.mxu0 0.0
      %1628 = vmatpush1.xpose.msra.mxu0 0.0
      %1629 = vmatprep.subr.mxu0 0.0
      %1630 = vmatpush1.xpose.msra.mxu0 0.0
      %1631 = vmatprep.subr.mxu0 0.0
      %1632 = vmatpush1.xpose.msra.mxu0 0.0
      %1633 = vmatprep.subr.mxu0 0.0
      %1634 = vmatpush1.xpose.msra.mxu0 0.0
      %1635 = vmatprep.subr.mxu0 0.0
      %1636 = vmatpush1.xpose.msra.mxu0 0.0
      %1637 = vmatprep.subr.mxu0 0.0
      %1638 = vmatpush1.xpose.msra.mxu0 0.0
      %1639 = vmatprep.subr.mxu0 0.0
      %1640 = vmatpush1.xpose.msra.mxu0 0.0
      %1641 = vmatprep.subr.mxu0 0.0
      %1642 = vmatpush1.xpose.msra.mxu0 0.0
      %1643 = vmatprep.subr.mxu0 0.0
      %1644 = vmatpush1.xpose.msra.mxu0 0.0
      %1645 = vmatprep.subr.mxu0 0.0
      %1646 = vmatpush1.xpose.msra.mxu0 0.0
      %1647 = vmatprep.subr.mxu0 0.0
      %1648 = vmatpush1.xpose.msra.mxu0 0.0
      %1649 = vmatprep.subr.mxu0 0.0
      %1650 = vmatpush1.xpose.msra.mxu0 0.0
      %1651 = vmatprep.subr.mxu0 0.0
      %1652 = vmatpush1.xpose.msra.mxu0 0.0
      %1653 = vmatprep.subr.mxu0 0.0
      %1654 = vmatpush1.xpose.msra.mxu0 0.0
      %1655 = vmatprep.subr.mxu0 0.0
      %1656 = vmatpush1.xpose.msra.mxu0 %v1625
      %1657 = vmatprep.subr.mxu0 0.0
      %1658 = vmatpush1.xpose.msra.mxu0 %v1623
      %1659 = vmatprep.subr.mxu0 0.0
      %1660 = vmatpush2.xpose.msra.mxu0 0.0
      %1661 = vmatprep.subr.mxu0 0.0
      %1662 = vmatpush2.xpose.msra.mxu0 0.0
      %1663 = vmatprep.subr.mxu0 0.0
      %1664 = vmatpush2.xpose.msra.mxu0 0.0
      %1665 = vmatprep.subr.mxu0 0.0
      %1666 = vmatpush2.xpose.msra.mxu0 0.0
      %1667 = vmatprep.subr.mxu0 0.0
      %1668 = vmatpush2.xpose.msra.mxu0 0.0
      %1669 = vmatprep.subr.mxu0 0.0
      %1670 = vmatpush2.xpose.msra.mxu0 0.0
      %1671 = vmatprep.subr.mxu0 0.0
      %1672 = vmatpush2.xpose.msra.mxu0 0.0
      %1673 = vmatprep.subr.mxu0 0.0
      %1674 = vmatpush2.xpose.msra.mxu0 0.0
      %1675 = vmatprep.subr.mxu0 0.0
      %1676 = vmatpush2.xpose.msra.mxu0 0.0
      %1677 = vmatprep.subr.mxu0 0.0
      %1678 = vmatpush2.xpose.msra.mxu0 0.0
      %1679 = vmatprep.subr.mxu0 0.0
      %1680 = vmatpush2.xpose.msra.mxu0 0.0
      %1681 = vmatprep.subr.mxu0 0.0
      %1682 = vmatpush2.xpose.msra.mxu0 0.0
      %1683 = vmatprep.subr.mxu0 0.0
      %1684 = vmatpush2.xpose.msra.mxu0 0.0
      %1685 = vmatprep.subr.mxu0 0.0
      %1686 = vmatpush2.xpose.msra.mxu0 0.0
      %1687 = vmatprep.subr.mxu0 0.0
      %1688 = vmatpush2.xpose.msra.mxu0 0.0
      %1689 = vmatprep.subr.mxu0 0.0
      %1690 = vmatpush2.xpose.msra.mxu0 0.0
      %1691 = vmatprep.mubr.f32.mxu0 0.0
      %1692 = vmatmul.mubr.f32.gmra.mxu0 %v1619
      %v1693 = vpop.f32.mrf.mxu0
      %v1694 = vadd.f32 0.0, %v1693
      %v1695 = vpop.f32.mrf.mxu0
      %1696 = vmatprep.mubr.f32.mxu0 0.0
      %1697 = vmatmul.mubr.f32.gmra.mxu0 %v1621
      %v1698 = vpop.f32.mrf.mxu0
      %v1699 = vadd.f32 0.0, %v1698
      %v1700 = vpop.f32.mrf.mxu0
      %1701 = vdwg.mxu0
      %v1702 = vsel %vm1265, %v1694, -1e+30
      %v1703 = vsel %vm1266, %v1699, -1e+30
      %v1704 = vsel %vm1499, %v1702, -inf
      %1705 = vmax.xlane.f32.xlu0 %v1704
      %v1706 = vpop.xlane.xlu0 %1705
      %v1707 = vsel %vm1503, %v1703, -inf
      %1708 = vmax.xlane.f32.xlu0 %v1707
      %v1709 = vpop.xlane.xlu0 %1708
      %v1710 = vsub.f32 %v1702, %v1706
      %v1711 = vsub.f32 %v1703, %v1709
      %v1712 = vmul.f32 %v1710, 1.442695
      %v1713 = vpow.pop %v1712
      %v1714 = vmul.f32 %v1711, 1.442695
      %v1715 = vpow.pop %v1714
      %v1716 = vsel %vm1499, %v1713, 0.0
      %1717 = vadd.xlane.f32.xlu0 %v1716
      %v1718 = vpop.xlane.xlu0 %1717
      %v1719 = vsel %vm1503, %v1715, 0.0
      %1720 = vadd.xlane.f32.xlu0 %v1719
      %v1721 = vpop.xlane.xlu0 %1720
      %v1722 = vrcp.pop %v1718
      %v1723 = vrcp.pop %v1721
      %v1724 = vmul.f32 %v1713, %v1722
      %v1725 = vmul.f32 %v1715, %v1723
      %1726 = vrot.lane.b32.xlu0 %v1395, 48
      %v1727 = vpop.permute.xlu0 %1726
      %1728 = vrot.lane.b32.xlu0 %v1400, 48
      %v1729 = vpop.permute.xlu0 %1728
      %v1732 = vsel %vm1499, %v1724, 0
      %v1735 = vsel %vm1499, %v1725, 0
      %v1737 = vsel %vm1214, %v1729, 0
      %1739 = vmatprep.subr.mxu0 0.0
      %1740 = vmatpush1.msra.mxu0 0.0
      %1741 = vmatprep.subr.mxu0 0.0
      %1742 = vmatpush1.msra.mxu0 0.0
      %1743 = vmatprep.subr.mxu0 0.0
      %1744 = vmatpush1.msra.mxu0 0.0
      %1745 = vmatprep.subr.mxu0 0.0
      %1746 = vmatpush1.msra.mxu0 0.0
      %1747 = vmatprep.subr.mxu0 0.0
      %1748 = vmatpush1.msra.mxu0 0.0
      %1749 = vmatprep.subr.mxu0 0.0
      %1750 = vmatpush1.msra.mxu0 0.0
      %1751 = vmatprep.subr.mxu0 0.0
      %1752 = vmatpush1.msra.mxu0 0.0
      %1753 = vmatprep.subr.mxu0 0.0
      %1754 = vmatpush1.msra.mxu0 0.0
      %1755 = vmatprep.subr.mxu0 0.0
      %1756 = vmatpush1.msra.mxu0 0.0
      %1757 = vmatprep.subr.mxu0 0.0
      %1758 = vmatpush1.msra.mxu0 0.0
      %1759 = vmatprep.subr.mxu0 0.0
      %1760 = vmatpush1.msra.mxu0 0.0
      %1761 = vmatprep.subr.mxu0 0.0
      %1762 = vmatpush1.msra.mxu0 0.0
      %1763 = vmatprep.subr.mxu0 0.0
      %1764 = vmatpush1.msra.mxu0 0.0
      %1765 = vmatprep.subr.mxu0 0.0
      %1766 = vmatpush1.msra.mxu0 0.0
      %1767 = vmatprep.subr.mxu0 0.0
      %1768 = vmatpush1.msra.mxu0 %v1737
      %1769 = vmatprep.subr.mxu0 0.0
      %1770 = vmatpush1.msra.mxu0 %v1727
      %1771 = vmatprep.subr.mxu0 0.0
      %1772 = vmatpush2.msra.mxu0 0.0
      %1773 = vmatprep.subr.mxu0 0.0
      %1774 = vmatpush2.msra.mxu0 0.0
      %1775 = vmatprep.subr.mxu0 0.0
      %1776 = vmatpush2.msra.mxu0 0.0
      %1777 = vmatprep.subr.mxu0 0.0
      %1778 = vmatpush2.msra.mxu0 0.0
      %1779 = vmatprep.subr.mxu0 0.0
      %1780 = vmatpush2.msra.mxu0 0.0
      %1781 = vmatprep.subr.mxu0 0.0
      %1782 = vmatpush2.msra.mxu0 0.0
      %1783 = vmatprep.subr.mxu0 0.0
      %1784 = vmatpush2.msra.mxu0 0.0
      %1785 = vmatprep.subr.mxu0 0.0
      %1786 = vmatpush2.msra.mxu0 0.0
      %1787 = vmatprep.subr.mxu0 0.0
      %1788 = vmatpush2.msra.mxu0 0.0
      %1789 = vmatprep.subr.mxu0 0.0
      %1790 = vmatpush2.msra.mxu0 0.0
      %1791 = vmatprep.subr.mxu0 0.0
      %1792 = vmatpush2.msra.mxu0 0.0
      %1793 = vmatprep.subr.mxu0 0.0
      %1794 = vmatpush2.msra.mxu0 0.0
      %1795 = vmatprep.subr.mxu0 0.0
      %1796 = vmatpush2.msra.mxu0 0.0
      %1797 = vmatprep.subr.mxu0 0.0
      %1798 = vmatpush2.msra.mxu0 0.0
      %1799 = vmatprep.subr.mxu0 0.0
      %1800 = vmatpush2.msra.mxu0 0.0
      %1801 = vmatprep.subr.mxu0 0.0
      %1802 = vmatpush2.msra.mxu0 0.0
      %1803 = vmatprep.mubr.f32.mxu0 0.0
      %1804 = vmatmul.mubr.f32.gmra.mxu0 %v1732
      %v1805 = vpop.f32.mrf.mxu0
      %v1806 = vadd.f32 0.0, %v1805
      %v1807 = vpop.f32.mrf.mxu0
      %1808 = vmatprep.mubr.f32.mxu0 0.0
      %1809 = vmatmul.mubr.f32.gmra.mxu0 %v1735
      %v1810 = vpop.f32.mrf.mxu0
      %v1811 = vadd.f32 0.0, %v1810
      %v1812 = vpop.f32.mrf.mxu0
      %1813 = vdwg.mxu0
      %1816 = vrot.lane.b32.xlu0 %v1806, 16
      %v1817 = vpop.permute.xlu0 %1816
      %1818 = vrot.lane.b32.xlu0 %v1811, 16
      %v1819 = vpop.permute.xlu0 %1818
      %v1822 = vsel %vm1411, %v1603, %v1817
      %v1823 = vsel %vm1411, %v1608, %v1819
      %v1824 = vld [vmem:[%s35] sm:$0xff]
      %v1825 = vld [vmem:[%s35 + $0x8] sm:$0xff]
      %v1826 = vld [vmem:[%s35 + $0x10] sm:$0xff]
      %v1827 = vld [vmem:[%s35 + $0x18] sm:$0xff]
      %v1829 = vsel %vm1218, %v1822, 0
      %v1832 = vsel %vm1218, %v1823, 0
      %1834 = vmatprep.subr.mxu0 0.0
      %1835 = vmatpush1.msra.mxu0 0.0
      %1836 = vmatprep.subr.mxu0 0.0
      %1837 = vmatpush1.msra.mxu0 0.0
      %1838 = vmatprep.subr.mxu0 0.0
      %1839 = vmatpush1.msra.mxu0 0.0
      %1840 = vmatprep.subr.mxu0 0.0
      %1841 = vmatpush1.msra.mxu0 0.0
      %1842 = vmatprep.subr.mxu0 0.0
      %1843 = vmatpush1.msra.mxu0 0.0
      %1844 = vmatprep.subr.mxu0 0.0
      %1845 = vmatpush1.msra.mxu0 0.0
      %1846 = vmatprep.subr.mxu0 0.0
      %1847 = vmatpush1.msra.mxu0 0.0
      %1848 = vmatprep.subr.mxu0 0.0
      %1849 = vmatpush1.msra.mxu0 0.0
      %1850 = vmatprep.subr.mxu0 0.0
      %1851 = vmatpush1.msra.mxu0 0.0
      %1852 = vmatprep.subr.mxu0 0.0
      %1853 = vmatpush1.msra.mxu0 0.0
      %1854 = vmatprep.subr.mxu0 0.0
      %1855 = vmatpush1.msra.mxu0 0.0
      %1856 = vmatprep.subr.mxu0 0.0
      %1857 = vmatpush1.msra.mxu0 0.0
      %1858 = vmatprep.subr.mxu0 0.0
      %1859 = vmatpush1.msra.mxu0 %v1827
      %1860 = vmatprep.subr.mxu0 0.0
      %1861 = vmatpush1.msra.mxu0 %v1826
      %1862 = vmatprep.subr.mxu0 0.0
      %1863 = vmatpush1.msra.mxu0 %v1825
      %1864 = vmatprep.subr.mxu0 0.0
      %1865 = vmatpush1.msra.mxu0 %v1824
      %1866 = vmatprep.subr.mxu0 0.0
      %1867 = vmatpush2.msra.mxu0 0.0
      %1868 = vmatprep.subr.mxu0 0.0
      %1869 = vmatpush2.msra.mxu0 0.0
      %1870 = vmatprep.subr.mxu0 0.0
      %1871 = vmatpush2.msra.mxu0 0.0
      %1872 = vmatprep.subr.mxu0 0.0
      %1873 = vmatpush2.msra.mxu0 0.0
      %1874 = vmatprep.subr.mxu0 0.0
      %1875 = vmatpush2.msra.mxu0 0.0
      %1876 = vmatprep.subr.mxu0 0.0
      %1877 = vmatpush2.msra.mxu0 0.0
      %1878 = vmatprep.subr.mxu0 0.0
      %1879 = vmatpush2.msra.mxu0 0.0
      %1880 = vmatprep.subr.mxu0 0.0
      %1881 = vmatpush2.msra.mxu0 0.0
      %1882 = vmatprep.subr.mxu0 0.0
      %1883 = vmatpush2.msra.mxu0 0.0
      %1884 = vmatprep.subr.mxu0 0.0
      %1885 = vmatpush2.msra.mxu0 0.0
      %1886 = vmatprep.subr.mxu0 0.0
      %1887 = vmatpush2.msra.mxu0 0.0
      %1888 = vmatprep.subr.mxu0 0.0
      %1889 = vmatpush2.msra.mxu0 0.0
      %1890 = vmatprep.subr.mxu0 0.0
      %1891 = vmatpush2.msra.mxu0 0.0
      %1892 = vmatprep.subr.mxu0 0.0
      %1893 = vmatpush2.msra.mxu0 0.0
      %1894 = vmatprep.subr.mxu0 0.0
      %1895 = vmatpush2.msra.mxu0 0.0
      %1896 = vmatprep.subr.mxu0 0.0
      %1897 = vmatpush2.msra.mxu0 0.0
      %1898 = vmatprep.mubr.f32.mxu0 0.0
      %1899 = vmatmul.mubr.f32.gmra.mxu0 %v1829
      %v1900 = vpop.f32.mrf.mxu0
      %v1901 = vadd.f32 0.0, %v1900
      %v1902 = vpop.f32.mrf.mxu0
      %1903 = vmatprep.mubr.f32.mxu0 0.0
      %1904 = vmatmul.mubr.f32.gmra.mxu0 %v1832
      %v1905 = vpop.f32.mrf.mxu0
      %v1906 = vadd.f32 0.0, %v1905
      %v1907 = vpop.f32.mrf.mxu0
      %1908 = vdwg.mxu0
      %v1909 = vadd.f32 %v1261, %v1901
      %v1910 = vadd.f32 %v1262, %v1906
      %v1911 = vld [vmem:[%s37] sm:$0x1]
      %v1913 = vlaneseq
      %v1914 = vshrl.u32 %v1913, 7
      %v1915 = vsub.s32 0, %v1914
      %v1916 = vrot.slane %v1911, %v1915
      %v1918 = vadd.f32 %v1909, %v1916
      %v1919 = vadd.f32 %v1910, %v1916
      %v1920 = vld [vmem:[%s39] sm:$0x1]
      %v1921 = vld [vmem:[%s41] sm:$0x1]
      %v1922 = vsel %vm1218, %v1918, 0.0
      %1923 = vadd.xlane.f32.xlu0 %v1922
      %v1924 = vpop.xlane.xlu0 %1923
      %v1925 = vsel %vm1222, %v1919, 0.0
      %1926 = vadd.xlane.f32.xlu0 %v1925
      %v1927 = vpop.xlane.xlu0 %1926
      %v1928 = vmul.f32 %v1924, %v1226
      %v1929 = vmul.f32 %v1927, %v1226
      %v1930 = vsub.f32 %v1918, %v1928
      %v1931 = vsub.f32 %v1919, %v1929
      %v1932 = vmul.f32 %v1930, %v1930
      %v1933 = vmul.f32 %v1931, %v1931
      %v1934 = vsel %vm1218, %v1932, 0.0
      %1935 = vadd.xlane.f32.xlu0 %v1934
      %v1936 = vpop.xlane.xlu0 %1935
      %v1937 = vsel %vm1222, %v1933, 0.0
      %1938 = vadd.xlane.f32.xlu0 %v1937
      %v1939 = vpop.xlane.xlu0 %1938
      %v1940 = vmul.f32 %v1936, %v1226
      %v1941 = vmul.f32 %v1939, %v1226
      %v1942 = vadd.f32 %v1940, 0.003
      %v1943 = vadd.f32 %v1941, 0.003
      %v1944 = vrsqrt.pop %v1942
      %v1945 = vrsqrt.pop %v1943
      %v1946 = vmul.f32 %v1930, %v1944
      %v1947 = vmul.f32 %v1931, %v1945
      %v1949 = vlaneseq
      %v1950 = vshrl.u32 %v1949, 7
      %v1951 = vsub.s32 0, %v1950
      %v1952 = vrot.slane %v1920, %v1951
      %v1954 = vmul.f32 %v1946, %v1952
      %v1955 = vmul.f32 %v1947, %v1952
      %v1957 = vlaneseq
      %v1958 = vshrl.u32 %v1957, 7
      %v1959 = vsub.s32 0, %v1958
      %v1960 = vrot.slane %v1921, %v1959
      %v1962 = vadd.f32 %v1954, %v1960
      %v1963 = vadd.f32 %v1955, %v1960
      %v1964 = vld [vmem:[%s43] sm:$0xff]
      %v1965 = vld [vmem:[%s43 + $0x8] sm:$0xff]
      %v1966 = vld [vmem:[%s43 + $0x10] sm:$0xff]
      %v1967 = vld [vmem:[%s43 + $0x18] sm:$0xff]
      %v1968 = vld [vmem:[%s45] sm:$0x1]
      %v1970 = vlaneseq
      %v1971 = vshrl.u32 %v1970, 7
      %v1972 = vsub.s32 0, %v1971
      %v1973 = vrot.slane %v1968, %v1972
      %v1976 = vsel %vm1218, %v1962, 0
      %v1979 = vsel %vm1218, %v1963, 0
      %1981 = vmatprep.subr.mxu0 0.0
      %1982 = vmatpush1.msra.mxu0 0.0
      %1983 = vmatprep.subr.mxu0 0.0
      %1984 = vmatpush1.msra.mxu0 0.0
      %1985 = vmatprep.subr.mxu0 0.0
      %1986 = vmatpush1.msra.mxu0 0.0
      %1987 = vmatprep.subr.mxu0 0.0
      %1988 = vmatpush1.msra.mxu0 0.0
      %1989 = vmatprep.subr.mxu0 0.0
      %1990 = vmatpush1.msra.mxu0 0.0
      %1991 = vmatprep.subr.mxu0 0.0
      %1992 = vmatpush1.msra.mxu0 0.0
      %1993 = vmatprep.subr.mxu0 0.0
      %1994 = vmatpush1.msra.mxu0 0.0
      %1995 = vmatprep.subr.mxu0 0.0
      %1996 = vmatpush1.msra.mxu0 0.0
      %1997 = vmatprep.subr.mxu0 0.0
      %1998 = vmatpush1.msra.mxu0 0.0
      %1999 = vmatprep.subr.mxu0 0.0
      %2000 = vmatpush1.msra.mxu0 0.0
      %2001 = vmatprep.subr.mxu0 0.0
      %2002 = vmatpush1.msra.mxu0 0.0
      %2003 = vmatprep.subr.mxu0 0.0
      %2004 = vmatpush1.msra.mxu0 0.0
      %2005 = vmatprep.subr.mxu0 0.0
      %2006 = vmatpush1.msra.mxu0 %v1967
      %2007 = vmatprep.subr.mxu0 0.0
      %2008 = vmatpush1.msra.mxu0 %v1966
      %2009 = vmatprep.subr.mxu0 0.0
      %2010 = vmatpush1.msra.mxu0 %v1965
      %2011 = vmatprep.subr.mxu0 0.0
      %2012 = vmatpush1.msra.mxu0 %v1964
      %2013 = vmatprep.subr.mxu0 0.0
      %2014 = vmatpush2.msra.mxu0 0.0
      %2015 = vmatprep.subr.mxu0 0.0
      %2016 = vmatpush2.msra.mxu0 0.0
      %2017 = vmatprep.subr.mxu0 0.0
      %2018 = vmatpush2.msra.mxu0 0.0
      %2019 = vmatprep.subr.mxu0 0.0
      %2020 = vmatpush2.msra.mxu0 0.0
      %2021 = vmatprep.subr.mxu0 0.0
      %2022 = vmatpush2.msra.mxu0 0.0
      %2023 = vmatprep.subr.mxu0 0.0
      %2024 = vmatpush2.msra.mxu0 0.0
      %2025 = vmatprep.subr.mxu0 0.0
      %2026 = vmatpush2.msra.mxu0 0.0
      %2027 = vmatprep.subr.mxu0 0.0
      %2028 = vmatpush2.msra.mxu0 0.0
      %2029 = vmatprep.subr.mxu0 0.0
      %2030 = vmatpush2.msra.mxu0 0.0
      %2031 = vmatprep.subr.mxu0 0.0
      %2032 = vmatpush2.msra.mxu0 0.0
      %2033 = vmatprep.subr.mxu0 0.0
      %2034 = vmatpush2.msra.mxu0 0.0
      %2035 = vmatprep.subr.mxu0 0.0
      %2036 = vmatpush2.msra.mxu0 0.0
      %2037 = vmatprep.subr.mxu0 0.0
      %2038 = vmatpush2.msra.mxu0 0.0
      %2039 = vmatprep.subr.mxu0 0.0
      %2040 = vmatpush2.msra.mxu0 0.0
      %2041 = vmatprep.subr.mxu0 0.0
      %2042 = vmatpush2.msra.mxu0 0.0
      %2043 = vmatprep.subr.mxu0 0.0
      %2044 = vmatpush2.msra.mxu0 0.0
      %2045 = vmatprep.mubr.f32.mxu0 0.0
      %2046 = vmatmul.mubr.f32.gmra.mxu0 %v1976
      %v2047 = vpop.f32.mrf.mxu0
      %v2048 = vadd.f32 %v1973, %v2047
      %v2049 = vpop.f32.mrf.mxu0
      %2050 = vmatprep.mubr.f32.mxu0 0.0
      %2051 = vmatmul.mubr.f32.gmra.mxu0 %v1979
      %v2052 = vpop.f32.mrf.mxu0
      %v2053 = vadd.f32 %v1973, %v2052
      %v2054 = vpop.f32.mrf.mxu0
      %2055 = vdwg.mxu0
      %v2056 = vmul.f32 %v2048, %v2048
      %v2057 = vmul.f32 %v2053, %v2053
      %v2058 = vmul.f32 %v2048, %v2056
      %v2059 = vmul.f32 %v2053, %v2057
      %v2060 = vmul.f32 %v2058, 0.044715
      %v2061 = vmul.f32 %v2059, 0.044715
      %v2062 = vadd.f32 %v2048, %v2060
      %v2063 = vadd.f32 %v2053, %v2061
      %v2064 = vmul.f32 %v2062, 0.7978846
      %v2065 = vmul.f32 %v2063, 0.7978846
      %v2066 = vtanh.pop %v2064
      %v2067 = vtanh.pop %v2065
      %v2068 = vadd.f32 %v2066, 1.0
      %v2069 = vadd.f32 %v2067, 1.0
      %v2070 = vmul.f32 %v2068, 0.5
      %v2071 = vmul.f32 %v2069, 0.5
      %v2072 = vmul.f32 %v2048, %v2070
      %v2073 = vmul.f32 %v2053, %v2071
      %v2074 = vld [vmem:[%s47] sm:$0xff]
      %v2075 = vld [vmem:[%s47 + $0x8] sm:$0xff]
      %v2076 = vld [vmem:[%s47 + $0x10] sm:$0xff]
      %v2077 = vld [vmem:[%s47 + $0x18] sm:$0xff]
      %v2078 = vld [vmem:[%s47 + $0x20] sm:$0xff]
      %v2079 = vld [vmem:[%s47 + $0x28] sm:$0xff]
      %v2080 = vld [vmem:[%s47 + $0x30] sm:$0xff]
      %v2081 = vld [vmem:[%s47 + $0x38] sm:$0xff]
      %v2082 = vld [vmem:[%s47 + $0x40] sm:$0xff]
      %v2083 = vld [vmem:[%s47 + $0x48] sm:$0xff]
      %v2084 = vld [vmem:[%s47 + $0x50] sm:$0xff]
      %v2085 = vld [vmem:[%s47 + $0x58] sm:$0xff]
      %v2086 = vld [vmem:[%s47 + $0x60] sm:$0xff]
      %v2087 = vld [vmem:[%s47 + $0x68] sm:$0xff]
      %v2088 = vld [vmem:[%s47 + $0x70] sm:$0xff]
      %v2089 = vld [vmem:[%s47 + $0x78] sm:$0xff]
      %2090 = vmatprep.subr.mxu0 0.0
      %2091 = vmatpush1.msra.mxu0 %v2089
      %2092 = vmatprep.subr.mxu0 0.0
      %2093 = vmatpush1.msra.mxu0 %v2088
      %2094 = vmatprep.subr.mxu0 0.0
      %2095 = vmatpush1.msra.mxu0 %v2087
      %2096 = vmatprep.subr.mxu0 0.0
      %2097 = vmatpush1.msra.mxu0 %v2086
      %2098 = vmatprep.subr.mxu0 0.0
      %2099 = vmatpush1.msra.mxu0 %v2085
      %2100 = vmatprep.subr.mxu0 0.0
      %2101 = vmatpush1.msra.mxu0 %v2084
      %2102 = vmatprep.subr.mxu0 0.0
      %2103 = vmatpush1.msra.mxu0 %v2083
      %2104 = vmatprep.subr.mxu0 0.0
      %2105 = vmatpush1.msra.mxu0 %v2082
      %2106 = vmatprep.subr.mxu0 0.0
      %2107 = vmatpush1.msra.mxu0 %v2081
      %2108 = vmatprep.subr.mxu0 0.0
      %2109 = vmatpush1.msra.mxu0 %v2080
      %2110 = vmatprep.subr.mxu0 0.0
      %2111 = vmatpush1.msra.mxu0 %v2079
      %2112 = vmatprep.subr.mxu0 0.0
      %2113 = vmatpush1.msra.mxu0 %v2078
      %2114 = vmatprep.subr.mxu0 0.0
      %2115 = vmatpush1.msra.mxu0 %v2077
      %2116 = vmatprep.subr.mxu0 0.0
      %2117 = vmatpush1.msra.mxu0 %v2076
      %2118 = vmatprep.subr.mxu0 0.0
      %2119 = vmatpush1.msra.mxu0 %v2075
      %2120 = vmatprep.subr.mxu0 0.0
      %2121 = vmatpush1.msra.mxu0 %v2074
      %2122 = vmatprep.subr.mxu0 0.0
      %2123 = vmatpush2.msra.mxu0 0.0
      %2124 = vmatprep.subr.mxu0 0.0
      %2125 = vmatpush2.msra.mxu0 0.0
      %2126 = vmatprep.subr.mxu0 0.0
      %2127 = vmatpush2.msra.mxu0 0.0
      %2128 = vmatprep.subr.mxu0 0.0
      %2129 = vmatpush2.msra.mxu0 0.0
      %2130 = vmatprep.subr.mxu0 0.0
      %2131 = vmatpush2.msra.mxu0 0.0
      %2132 = vmatprep.subr.mxu0 0.0
      %2133 = vmatpush2.msra.mxu0 0.0
      %2134 = vmatprep.subr.mxu0 0.0
      %2135 = vmatpush2.msra.mxu0 0.0
      %2136 = vmatprep.subr.mxu0 0.0
      %2137 = vmatpush2.msra.mxu0 0.0
      %2138 = vmatprep.subr.mxu0 0.0
      %2139 = vmatpush2.msra.mxu0 0.0
      %2140 = vmatprep.subr.mxu0 0.0
      %2141 = vmatpush2.msra.mxu0 0.0
      %2142 = vmatprep.subr.mxu0 0.0
      %2143 = vmatpush2.msra.mxu0 0.0
      %2144 = vmatprep.subr.mxu0 0.0
      %2145 = vmatpush2.msra.mxu0 0.0
      %2146 = vmatprep.subr.mxu0 0.0
      %2147 = vmatpush2.msra.mxu0 0.0
      %2148 = vmatprep.subr.mxu0 0.0
      %2149 = vmatpush2.msra.mxu0 0.0
      %2150 = vmatprep.subr.mxu0 0.0
      %2151 = vmatpush2.msra.mxu0 0.0
      %2152 = vmatprep.subr.mxu0 0.0
      %2153 = vmatpush2.msra.mxu0 0.0
      %2154 = vmatprep.mubr.f32.mxu0 0.0
      %2155 = vmatmul.mubr.f32.gmra.mxu0 %v2072
      %v2156 = vpop.f32.mrf.mxu0
      %v2157 = vadd.f32 0.0, %v2156
      %v2158 = vpop.f32.mrf.mxu0
      %2159 = vmatprep.mubr.f32.mxu0 0.0
      %2160 = vmatmul.mubr.f32.gmra.mxu0 %v2073
      %v2161 = vpop.f32.mrf.mxu0
      %v2162 = vadd.f32 0.0, %v2161
      %v2163 = vpop.f32.mrf.mxu0
      %2164 = vdwg.mxu0
      %v2165 = vadd.f32 %v1918, %v2157
      %v2166 = vadd.f32 %v1919, %v2162
      %v2167 = vld [vmem:[%s49] sm:$0x1]
      %v2169 = vlaneseq
      %v2170 = vshrl.u32 %v2169, 7
      %v2171 = vsub.s32 0, %v2170
      %v2172 = vrot.slane %v2167, %v2171
      %v2174 = vadd.f32 %v2165, %v2172
      %v2175 = vadd.f32 %v2166, %v2172
      %s2176 = scalar_lea.vmem %s27, 1
      %v2177 = vld [vmem:[%s2176] sm:$0x1]
      %s2178 = scalar_lea.vmem %s29, 1
      %v2179 = vld [vmem:[%s2178] sm:$0x1]
      %v2180 = vsel %vm1218, %v2174, 0.0
      %2181 = vadd.xlane.f32.xlu0 %v2180
      %v2182 = vpop.xlane.xlu0 %2181
      %v2183 = vsel %vm1222, %v2175, 0.0
      %2184 = vadd.xlane.f32.xlu0 %v2183
      %v2185 = vpop.xlane.xlu0 %2184
      %v2186 = vmul.f32 %v2182, %v1226
      %v2187 = vmul.f32 %v2185, %v1226
      %v2188 = vsub.f32 %v2174, %v2186
      %v2189 = vsub.f32 %v2175, %v2187
      %v2190 = vmul.f32 %v2188, %v2188
      %v2191 = vmul.f32 %v2189, %v2189
      %v2192 = vsel %vm1218, %v2190, 0.0
      %2193 = vadd.xlane.f32.xlu0 %v2192
      %v2194 = vpop.xlane.xlu0 %2193
      %v2195 = vsel %vm1222, %v2191, 0.0
      %2196 = vadd.xlane.f32.xlu0 %v2195
      %v2197 = vpop.xlane.xlu0 %2196
      %v2198 = vmul.f32 %v2194, %v1226
      %v2199 = vmul.f32 %v2197, %v1226
      %v2200 = vadd.f32 %v2198, 0.003
      %v2201 = vadd.f32 %v2199, 0.003
      %v2202 = vrsqrt.pop %v2200
      %v2203 = vrsqrt.pop %v2201
      %v2204 = vmul.f32 %v2188, %v2202
      %v2205 = vmul.f32 %v2189, %v2203
      %v2207 = vlaneseq
      %v2208 = vshrl.u32 %v2207, 7
      %v2209 = vsub.s32 0, %v2208
      %v2210 = vrot.slane %v2177, %v2209
      %v2212 = vmul.f32 %v2204, %v2210
      %v2213 = vmul.f32 %v2205, %v2210
      %v2215 = vlaneseq
      %v2216 = vshrl.u32 %v2215, 7
      %v2217 = vsub.s32 0, %v2216
      %v2218 = vrot.slane %v2179, %v2217
      %v2220 = vadd.f32 %v2212, %v2218
      %v2221 = vadd.f32 %v2213, %v2218
      %s2222 = scalar_lea.vmem %s31, 32
      %v2223 = vld [vmem:[%s2222] sm:$0xff]
      %v2224 = vld [vmem:[%s2222 + $0x8] sm:$0xff]
      %v2225 = vld [vmem:[%s2222 + $0x10] sm:$0xff]
      %v2226 = vld [vmem:[%s2222 + $0x18] sm:$0xff]
      %s2227 = scalar_lea.vmem %s33, 1
      %v2228 = vld [vmem:[%s2227] sm:$0x1]
      %v2230 = vlaneseq
      %v2231 = vshrl.u32 %v2230, 7
      %v2232 = vsub.s32 0, %v2231
      %v2233 = vrot.slane %v2228, %v2232
      %v2236 = vsel %vm1218, %v2220, 0
      %v2239 = vsel %vm1218, %v2221, 0
      %2241 = vmatprep.subr.mxu0 0.0
      %2242 = vmatpush1.msra.mxu0 0.0
      %2243 = vmatprep.subr.mxu0 0.0
      %2244 = vmatpush1.msra.mxu0 0.0
      %2245 = vmatprep.subr.mxu0 0.0
      %2246 = vmatpush1.msra.mxu0 0.0
      %2247 = vmatprep.subr.mxu0 0.0
      %2248 = vmatpush1.msra.mxu0 0.0
      %2249 = vmatprep.subr.mxu0 0.0
      %2250 = vmatpush1.msra.mxu0 0.0
      %2251 = vmatprep.subr.mxu0 0.0
      %2252 = vmatpush1.msra.mxu0 0.0
      %2253 = vmatprep.subr.mxu0 0.0
      %2254 = vmatpush1.msra.mxu0 0.0
      %2255 = vmatprep.subr.mxu0 0.0
      %2256 = vmatpush1.msra.mxu0 0.0
      %2257 = vmatprep.subr.mxu0 0.0
      %2258 = vmatpush1.msra.mxu0 0.0
      %2259 = vmatprep.subr.mxu0 0.0
      %2260 = vmatpush1.msra.mxu0 0.0
      %2261 = vmatprep.subr.mxu0 0.0
      %2262 = vmatpush1.msra.mxu0 0.0
      %2263 = vmatprep.subr.mxu0 0.0
      %2264 = vmatpush1.msra.mxu0 0.0
      %2265 = vmatprep.subr.mxu0 0.0
      %2266 = vmatpush1.msra.mxu0 %v2226
      %2267 = vmatprep.subr.mxu0 0.0
      %2268 = vmatpush1.msra.mxu0 %v2225
      %2269 = vmatprep.subr.mxu0 0.0
      %2270 = vmatpush1.msra.mxu0 %v2224
      %2271 = vmatprep.subr.mxu0 0.0
      %2272 = vmatpush1.msra.mxu0 %v2223
      %2273 = vmatprep.subr.mxu0 0.0
      %2274 = vmatpush2.msra.mxu0 0.0
      %2275 = vmatprep.subr.mxu0 0.0
      %2276 = vmatpush2.msra.mxu0 0.0
      %2277 = vmatprep.subr.mxu0 0.0
      %2278 = vmatpush2.msra.mxu0 0.0
      %2279 = vmatprep.subr.mxu0 0.0
      %2280 = vmatpush2.msra.mxu0 0.0
      %2281 = vmatprep.subr.mxu0 0.0
      %2282 = vmatpush2.msra.mxu0 0.0
      %2283 = vmatprep.subr.mxu0 0.0
      %2284 = vmatpush2.msra.mxu0 0.0
      %2285 = vmatprep.subr.mxu0 0.0
      %2286 = vmatpush2.msra.mxu0 0.0
      %2287 = vmatprep.subr.mxu0 0.0
      %2288 = vmatpush2.msra.mxu0 0.0
      %2289 = vmatprep.subr.mxu0 0.0
      %2290 = vmatpush2.msra.mxu0 0.0
      %2291 = vmatprep.subr.mxu0 0.0
      %2292 = vmatpush2.msra.mxu0 0.0
      %2293 = vmatprep.subr.mxu0 0.0
      %2294 = vmatpush2.msra.mxu0 0.0
      %2295 = vmatprep.subr.mxu0 0.0
      %2296 = vmatpush2.msra.mxu0 0.0
      %2297 = vmatprep.subr.mxu0 0.0
      %2298 = vmatpush2.msra.mxu0 0.0
      %2299 = vmatprep.subr.mxu0 0.0
      %2300 = vmatpush2.msra.mxu0 0.0
      %2301 = vmatprep.subr.mxu0 0.0
      %2302 = vmatpush2.msra.mxu0 0.0
      %2303 = vmatprep.subr.mxu0 0.0
      %2304 = vmatpush2.msra.mxu0 0.0
      %2305 = vmatprep.mubr.f32.mxu0 0.0
      %2306 = vmatmul.mubr.f32.gmra.mxu0 %v2236
      %v2307 = vpop.f32.mrf.mxu0
      %v2308 = vadd.f32 %v2233, %v2307
      %v2309 = vpop.f32.mrf.mxu0
      %2310 = vmatprep.mubr.f32.mxu0 0.0
      %2311 = vmatmul.mubr.f32.gmra.mxu0 %v2239
      %v2312 = vpop.f32.mrf.mxu0
      %v2313 = vadd.f32 %v2233, %v2312
      %v2314 = vpop.f32.mrf.mxu0
      %2315 = vdwg.mxu0
      %v2316 = vmul.f32 %v2308, 0.25
      %v2317 = vmul.f32 %v2313, 0.25
      %2320 = vrot.lane.b32.xlu0 %v2308, 96
      %v2321 = vpop.permute.xlu0 %2320
      %2322 = vrot.lane.b32.xlu0 %v2313, 96
      %v2323 = vpop.permute.xlu0 %2322
      %v2325 = vsel %vm1411, %v2316, 0
      %v2328 = vsel %vm1411, %v2317, 0
      %v2330 = vsel %vm1411, %v2321, 0
      %v2332 = vsel %vm1411, %v2323, 0
      %2334 = vmatprep.subr.mxu0 0.0
      %2335 = vmatpush1.xpose.msra.mxu0 0.0
      %2336 = vmatprep.subr.mxu0 0.0
      %2337 = vmatpush1.xpose.msra.mxu0 0.0
      %2338 = vmatprep.subr.mxu0 0.0
      %2339 = vmatpush1.xpose.msra.mxu0 0.0
      %2340 = vmatprep.subr.mxu0 0.0
      %2341 = vmatpush1.xpose.msra.mxu0 0.0
      %2342 = vmatprep.subr.mxu0 0.0
      %2343 = vmatpush1.xpose.msra.mxu0 0.0
      %2344 = vmatprep.subr.mxu0 0.0
      %2345 = vmatpush1.xpose.msra.mxu0 0.0
      %2346 = vmatprep.subr.mxu0 0.0
      %2347 = vmatpush1.xpose.msra.mxu0 0.0
      %2348 = vmatprep.subr.mxu0 0.0
      %2349 = vmatpush1.xpose.msra.mxu0 0.0
      %2350 = vmatprep.subr.mxu0 0.0
      %2351 = vmatpush1.xpose.msra.mxu0 0.0
      %2352 = vmatprep.subr.mxu0 0.0
      %2353 = vmatpush1.xpose.msra.mxu0 0.0
      %2354 = vmatprep.subr.mxu0 0.0
      %2355 = vmatpush1.xpose.msra.mxu0 0.0
      %2356 = vmatprep.subr.mxu0 0.0
      %2357 = vmatpush1.xpose.msra.mxu0 0.0
      %2358 = vmatprep.subr.mxu0 0.0
      %2359 = vmatpush1.xpose.msra.mxu0 0.0
      %2360 = vmatprep.subr.mxu0 0.0
      %2361 = vmatpush1.xpose.msra.mxu0 0.0
      %2362 = vmatprep.subr.mxu0 0.0
      %2363 = vmatpush1.xpose.msra.mxu0 %v2332
      %2364 = vmatprep.subr.mxu0 0.0
      %2365 = vmatpush1.xpose.msra.mxu0 %v2330
      %2366 = vmatprep.subr.mxu0 0.0
      %2367 = vmatpush2.xpose.msra.mxu0 0.0
      %2368 = vmatprep.subr.mxu0 0.0
      %2369 = vmatpush2.xpose.msra.mxu0 0.0
      %2370 = vmatprep.subr.mxu0 0.0
      %2371 = vmatpush2.xpose.msra.mxu0 0.0
      %2372 = vmatprep.subr.mxu0 0.0
      %2373 = vmatpush2.xpose.msra.mxu0 0.0
      %2374 = vmatprep.subr.mxu0 0.0
      %2375 = vmatpush2.xpose.msra.mxu0 0.0
      %2376 = vmatprep.subr.mxu0 0.0
      %2377 = vmatpush2.xpose.msra.mxu0 0.0
      %2378 = vmatprep.subr.mxu0 0.0
      %2379 = vmatpush2.xpose.msra.mxu0 0.0
      %2380 = vmatprep.subr.mxu0 0.0
      %2381 = vmatpush2.xpose.msra.mxu0 0.0
      %2382 = vmatprep.subr.mxu0 0.0
      %2383 = vmatpush2.xpose.msra.mxu0 0.0
      %2384 = vmatprep.subr.mxu0 0.0
      %2385 = vmatpush2.xpose.msra.mxu0 0.0
      %2386 = vmatprep.subr.mxu0 0.0
      %2387 = vmatpush2.xpose.msra.mxu0 0.0
      %2388 = vmatprep.subr.mxu0 0.0
      %2389 = vmatpush2.xpose.msra.mxu0 0.0
      %2390 = vmatprep.subr.mxu0 0.0
      %2391 = vmatpush2.xpose.msra.mxu0 0.0
      %2392 = vmatprep.subr.mxu0 0.0
      %2393 = vmatpush2.xpose.msra.mxu0 0.0
      %2394 = vmatprep.subr.mxu0 0.0
      %2395 = vmatpush2.xpose.msra.mxu0 0.0
      %2396 = vmatprep.subr.mxu0 0.0
      %2397 = vmatpush2.xpose.msra.mxu0 0.0
      %2398 = vmatprep.mubr.f32.mxu0 0.0
      %2399 = vmatmul.mubr.f32.gmra.mxu0 %v2325
      %v2400 = vpop.f32.mrf.mxu0
      %v2401 = vadd.f32 0.0, %v2400
      %v2402 = vpop.f32.mrf.mxu0
      %2403 = vmatprep.mubr.f32.mxu0 0.0
      %2404 = vmatmul.mubr.f32.gmra.mxu0 %v2328
      %v2405 = vpop.f32.mrf.mxu0
      %v2406 = vadd.f32 0.0, %v2405
      %v2407 = vpop.f32.mrf.mxu0
      %2408 = vdwg.mxu0
      %v2409 = vsel %vm1265, %v2401, -1e+30
      %v2410 = vsel %vm1266, %v2406, -1e+30
      %v2411 = vsel %vm1499, %v2409, -inf
      %2412 = vmax.xlane.f32.xlu0 %v2411
      %v2413 = vpop.xlane.xlu0 %2412
      %v2414 = vsel %vm1503, %v2410, -inf
      %2415 = vmax.xlane.f32.xlu0 %v2414
      %v2416 = vpop.xlane.xlu0 %2415
      %v2417 = vsub.f32 %v2409, %v2413
      %v2418 = vsub.f32 %v2410, %v2416
      %v2419 = vmul.f32 %v2417, 1.442695
      %v2420 = vpow.pop %v2419
      %v2421 = vmul.f32 %v2418, 1.442695
      %v2422 = vpow.pop %v2421
      %v2423 = vsel %vm1499, %v2420, 0.0
      %2424 = vadd.xlane.f32.xlu0 %v2423
      %v2425 = vpop.xlane.xlu0 %2424
      %v2426 = vsel %vm1503, %v2422, 0.0
      %2427 = vadd.xlane.f32.xlu0 %v2426
      %v2428 = vpop.xlane.xlu0 %2427
      %v2429 = vrcp.pop %v2425
      %v2430 = vrcp.pop %v2428
      %v2431 = vmul.f32 %v2420, %v2429
      %v2432 = vmul.f32 %v2422, %v2430
      %2433 = vrot.lane.b32.xlu0 %v2308, 64
      %v2434 = vpop.permute.xlu0 %2433
      %2435 = vrot.lane.b32.xlu0 %v2313, 64
      %v2436 = vpop.permute.xlu0 %2435
      %v2439 = vsel %vm1499, %v2431, 0
      %v2442 = vsel %vm1499, %v2432, 0
      %v2444 = vsel %vm1214, %v2436, 0
      %2446 = vmatprep.subr.mxu0 0.0
      %2447 = vmatpush1.msra.mxu0 0.0
      %2448 = vmatprep.subr.mxu0 0.0
      %2449 = vmatpush1.msra.mxu0 0.0
      %2450 = vmatprep.subr.mxu0 0.0
      %2451 = vmatpush1.msra.mxu0 0.0
      %2452 = vmatprep.subr.mxu0 0.0
      %2453 = vmatpush1.msra.mxu0 0.0
      %2454 = vmatprep.subr.mxu0 0.0
      %2455 = vmatpush1.msra.mxu0 0.0
      %2456 = vmatprep.subr.mxu0 0.0
      %2457 = vmatpush1.msra.mxu0 0.0
      %2458 = vmatprep.subr.mxu0 0.0
      %2459 = vmatpush1.msra.mxu0 0.0
      %2460 = vmatprep.subr.mxu0 0.0
      %2461 = vmatpush1.msra.mxu0 0.0
      %2462 = vmatprep.subr.mxu0 0.0
      %2463 = vmatpush1.msra.mxu0 0.0
      %2464 = vmatprep.subr.mxu0 0.0
      %2465 = vmatpush1.msra.mxu0 0.0
      %2466 = vmatprep.subr.mxu0 0.0
      %2467 = vmatpush1.msra.mxu0 0.0
      %2468 = vmatprep.subr.mxu0 0.0
      %2469 = vmatpush1.msra.mxu0 0.0
      %2470 = vmatprep.subr.mxu0 0.0
      %2471 = vmatpush1.msra.mxu0 0.0
      %2472 = vmatprep.subr.mxu0 0.0
      %2473 = vmatpush1.msra.mxu0 0.0
      %2474 = vmatprep.subr.mxu0 0.0
      %2475 = vmatpush1.msra.mxu0 %v2444
      %2476 = vmatprep.subr.mxu0 0.0
      %2477 = vmatpush1.msra.mxu0 %v2434
      %2478 = vmatprep.subr.mxu0 0.0
      %2479 = vmatpush2.msra.mxu0 0.0
      %2480 = vmatprep.subr.mxu0 0.0
      %2481 = vmatpush2.msra.mxu0 0.0
      %2482 = vmatprep.subr.mxu0 0.0
      %2483 = vmatpush2.msra.mxu0 0.0
      %2484 = vmatprep.subr.mxu0 0.0
      %2485 = vmatpush2.msra.mxu0 0.0
      %2486 = vmatprep.subr.mxu0 0.0
      %2487 = vmatpush2.msra.mxu0 0.0
      %2488 = vmatprep.subr.mxu0 0.0
      %2489 = vmatpush2.msra.mxu0 0.0
      %2490 = vmatprep.subr.mxu0 0.0
      %2491 = vmatpush2.msra.mxu0 0.0
      %2492 = vmatprep.subr.mxu0 0.0
      %2493 = vmatpush2.msra.mxu0 0.0
      %2494 = vmatprep.subr.mxu0 0.0
      %2495 = vmatpush2.msra.mxu0 0.0
      %2496 = vmatprep.subr.mxu0 0.0
      %2497 = vmatpush2.msra.mxu0 0.0
      %2498 = vmatprep.subr.mxu0 0.0
      %2499 = vmatpush2.msra.mxu0 0.0
      %2500 = vmatprep.subr.mxu0 0.0
      %2501 = vmatpush2.msra.mxu0 0.0
      %2502 = vmatprep.subr.mxu0 0.0
      %2503 = vmatpush2.msra.mxu0 0.0
      %2504 = vmatprep.subr.mxu0 0.0
      %2505 = vmatpush2.msra.mxu0 0.0
      %2506 = vmatprep.subr.mxu0 0.0
      %2507 = vmatpush2.msra.mxu0 0.0
      %2508 = vmatprep.subr.mxu0 0.0
      %2509 = vmatpush2.msra.mxu0 0.0
      %2510 = vmatprep.mubr.f32.mxu0 0.0
      %2511 = vmatmul.mubr.f32.gmra.mxu0 %v2439
      %v2512 = vpop.f32.mrf.mxu0
      %v2513 = vadd.f32 0.0, %v2512
      %v2514 = vpop.f32.mrf.mxu0
      %2515 = vmatprep.mubr.f32.mxu0 0.0
      %2516 = vmatmul.mubr.f32.gmra.mxu0 %v2442
      %v2517 = vpop.f32.mrf.mxu0
      %v2518 = vadd.f32 0.0, %v2517
      %v2519 = vpop.f32.mrf.mxu0
      %2520 = vdwg.mxu0
      %2521 = vrot.lane.b32.xlu0 %v2316, 112
      %v2522 = vpop.permute.xlu0 %2521
      %2523 = vrot.lane.b32.xlu0 %v2317, 112
      %v2524 = vpop.permute.xlu0 %2523
      %2525 = vrot.lane.b32.xlu0 %v2308, 80
      %v2526 = vpop.permute.xlu0 %2525
      %2527 = vrot.lane.b32.xlu0 %v2313, 80
      %v2528 = vpop.permute.xlu0 %2527
      %v2529 = vsel %vm1411, %v2522, 0
      %v2531 = vsel %vm1411, %v2524, 0
      %v2533 = vsel %vm1411, %v2526, 0
      %v2535 = vsel %vm1411, %v2528, 0
      %2537 = vmatprep.subr.mxu0 0.0
      %2538 = vmatpush1.xpose.msra.mxu0 0.0
      %2539 = vmatprep.subr.mxu0 0.0
      %2540 = vmatpush1.xpose.msra.mxu0 0.0
      %2541 = vmatprep.subr.mxu0 0.0
      %2542 = vmatpush1.xpose.msra.mxu0 0.0
      %2543 = vmatprep.subr.mxu0 0.0
      %2544 = vmatpush1.xpose.msra.mxu0 0.0
      %2545 = vmatprep.subr.mxu0 0.0
      %2546 = vmatpush1.xpose.msra.mxu0 0.0
      %2547 = vmatprep.subr.mxu0 0.0
      %2548 = vmatpush1.xpose.msra.mxu0 0.0
      %2549 = vmatprep.subr.mxu0 0.0
      %2550 = vmatpush1.xpose.msra.mxu0 0.0
      %2551 = vmatprep.subr.mxu0 0.0
      %2552 = vmatpush1.xpose.msra.mxu0 0.0
      %2553 = vmatprep.subr.mxu0 0.0
      %2554 = vmatpush1.xpose.msra.mxu0 0.0
      %2555 = vmatprep.subr.mxu0 0.0
      %2556 = vmatpush1.xpose.msra.mxu0 0.0
      %2557 = vmatprep.subr.mxu0 0.0
      %2558 = vmatpush1.xpose.msra.mxu0 0.0
      %2559 = vmatprep.subr.mxu0 0.0
      %2560 = vmatpush1.xpose.msra.mxu0 0.0
      %2561 = vmatprep.subr.mxu0 0.0
      %2562 = vmatpush1.xpose.msra.mxu0 0.0
      %2563 = vmatprep.subr.mxu0 0.0
      %2564 = vmatpush1.xpose.msra.mxu0 0.0
      %2565 = vmatprep.subr.mxu0 0.0
      %2566 = vmatpush1.xpose.msra.mxu0 %v2535
      %2567 = vmatprep.subr.mxu0 0.0
      %2568 = vmatpush1.xpose.msra.mxu0 %v2533
      %2569 = vmatprep.subr.mxu0 0.0
      %2570 = vmatpush2.xpose.msra.mxu0 0.0
      %2571 = vmatprep.subr.mxu0 0.0
      %2572 = vmatpush2.xpose.msra.mxu0 0.0
      %2573 = vmatprep.subr.mxu0 0.0
      %2574 = vmatpush2.xpose.msra.mxu0 0.0
      %2575 = vmatprep.subr.mxu0 0.0
      %2576 = vmatpush2.xpose.msra.mxu0 0.0
      %2577 = vmatprep.subr.mxu0 0.0
      %2578 = vmatpush2.xpose.msra.mxu0 0.0
      %2579 = vmatprep.subr.mxu0 0.0
      %2580 = vmatpush2.xpose.msra.mxu0 0.0
      %2581 = vmatprep.subr.mxu0 0.0
      %2582 = vmatpush2.xpose.msra.mxu0 0.0
      %2583 = vmatprep.subr.mxu0 0.0
      %2584 = vmatpush2.xpose.msra.mxu0 0.0
      %2585 = vmatprep.subr.mxu0 0.0
      %2586 = vmatpush2.xpose.msra.mxu0 0.0
      %2587 = vmatprep.subr.mxu0 0.0
      %2588 = vmatpush2.xpose.msra.mxu0 0.0
      %2589 = vmatprep.subr.mxu0 0.0
      %2590 = vmatpush2.xpose.msra.mxu0 0.0
      %2591 = vmatprep.subr.mxu0 0.0
      %2592 = vmatpush2.xpose.msra.mxu0 0.0
      %2593 = vmatprep.subr.mxu0 0.0
      %2594 = vmatpush2.xpose.msra.mxu0 0.0
      %2595 = vmatprep.subr.mxu0 0.0
      %2596 = vmatpush2.xpose.msra.mxu0 0.0
      %2597 = vmatprep.subr.mxu0 0.0
      %2598 = vmatpush2.xpose.msra.mxu0 0.0
      %2599 = vmatprep.subr.mxu0 0.0
      %2600 = vmatpush2.xpose.msra.mxu0 0.0
      %2601 = vmatprep.mubr.f32.mxu0 0.0
      %2602 = vmatmul.mubr.f32.gmra.mxu0 %v2529
      %v2603 = vpop.f32.mrf.mxu0
      %v2604 = vadd.f32 0.0, %v2603
      %v2605 = vpop.f32.mrf.mxu0
      %2606 = vmatprep.mubr.f32.mxu0 0.0
      %2607 = vmatmul.mubr.f32.gmra.mxu0 %v2531
      %v2608 = vpop.f32.mrf.mxu0
      %v2609 = vadd.f32 0.0, %v2608
      %v2610 = vpop.f32.mrf.mxu0
      %2611 = vdwg.mxu0
      %v2612 = vsel %vm1265, %v2604, -1e+30
      %v2613 = vsel %vm1266, %v2609, -1e+30
      %v2614 = vsel %vm1499, %v2612, -inf
      %2615 = vmax.xlane.f32.xlu0 %v2614
      %v2616 = vpop.xlane.xlu0 %2615
      %v2617 = vsel %vm1503, %v2613, -inf
      %2618 = vmax.xlane.f32.xlu0 %v2617
      %v2619 = vpop.xlane.xlu0 %2618
      %v2620 = vsub.f32 %v2612, %v2616
      %v2621 = vsub.f32 %v2613, %v2619
      %v2622 = vmul.f32 %v2620, 1.442695
      %v2623 = vpow.pop %v2622
      %v2624 = vmul.f32 %v2621, 1.442695
      %v2625 = vpow.pop %v2624
      %v2626 = vsel %vm1499, %v2623, 0.0
      %2627 = vadd.xlane.f32.xlu0 %v2626
      %v2628 = vpop.xlane.xlu0 %2627
      %v2629 = vsel %vm1503, %v2625, 0.0
      %2630 = vadd.xlane.f32.xlu0 %v2629
      %v2631 = vpop.xlane.xlu0 %2630
      %v2632 = vrcp.pop %v2628
      %v2633 = vrcp.pop %v2631
      %v2634 = vmul.f32 %v2623, %v2632
      %v2635 = vmul.f32 %v2625, %v2633
      %2636 = vrot.lane.b32.xlu0 %v2308, 48
      %v2637 = vpop.permute.xlu0 %2636
      %2638 = vrot.lane.b32.xlu0 %v2313, 48
      %v2639 = vpop.permute.xlu0 %2638
      %v2642 = vsel %vm1499, %v2634, 0
      %v2645 = vsel %vm1499, %v2635, 0
      %v2647 = vsel %vm1214, %v2639, 0
      %2649 = vmatprep.subr.mxu0 0.0
      %2650 = vmatpush1.msra.mxu0 0.0
      %2651 = vmatprep.subr.mxu0 0.0
      %2652 = vmatpush1.msra.mxu0 0.0
      %2653 = vmatprep.subr.mxu0 0.0
      %2654 = vmatpush1.msra.mxu0 0.0
      %2655 = vmatprep.subr.mxu0 0.0
      %2656 = vmatpush1.msra.mxu0 0.0
      %2657 = vmatprep.subr.mxu0 0.0
      %2658 = vmatpush1.msra.mxu0 0.0
      %2659 = vmatprep.subr.mxu0 0.0
      %2660 = vmatpush1.msra.mxu0 0.0
      %2661 = vmatprep.subr.mxu0 0.0
      %2662 = vmatpush1.msra.mxu0 0.0
      %2663 = vmatprep.subr.mxu0 0.0
      %2664 = vmatpush1.msra.mxu0 0.0
      %2665 = vmatprep.subr.mxu0 0.0
      %2666 = vmatpush1.msra.mxu0 0.0
      %2667 = vmatprep.subr.mxu0 0.0
      %2668 = vmatpush1.msra.mxu0 0.0
      %2669 = vmatprep.subr.mxu0 0.0
      %2670 = vmatpush1.msra.mxu0 0.0
      %2671 = vmatprep.subr.mxu0 0.0
      %2672 = vmatpush1.msra.mxu0 0.0
      %2673 = vmatprep.subr.mxu0 0.0
      %2674 = vmatpush1.msra.mxu0 0.0
      %2675 = vmatprep.subr.mxu0 0.0
      %2676 = vmatpush1.msra.mxu0 0.0
      %2677 = vmatprep.subr.mxu0 0.0
      %2678 = vmatpush1.msra.mxu0 %v2647
      %2679 = vmatprep.subr.mxu0 0.0
      %2680 = vmatpush1.msra.mxu0 %v2637
      %2681 = vmatprep.subr.mxu0 0.0
      %2682 = vmatpush2.msra.mxu0 0.0
      %2683 = vmatprep.subr.mxu0 0.0
      %2684 = vmatpush2.msra.mxu0 0.0
      %2685 = vmatprep.subr.mxu0 0.0
      %2686 = vmatpush2.msra.mxu0 0.0
      %2687 = vmatprep.subr.mxu0 0.0
      %2688 = vmatpush2.msra.mxu0 0.0
      %2689 = vmatprep.subr.mxu0 0.0
      %2690 = vmatpush2.msra.mxu0 0.0
      %2691 = vmatprep.subr.mxu0 0.0
      %2692 = vmatpush2.msra.mxu0 0.0
      %2693 = vmatprep.subr.mxu0 0.0
      %2694 = vmatpush2.msra.mxu0 0.0
      %2695 = vmatprep.subr.mxu0 0.0
      %2696 = vmatpush2.msra.mxu0 0.0
      %2697 = vmatprep.subr.mxu0 0.0
      %2698 = vmatpush2.msra.mxu0 0.0
      %2699 = vmatprep.subr.mxu0 0.0
      %2700 = vmatpush2.msra.mxu0 0.0
      %2701 = vmatprep.subr.mxu0 0.0
      %2702 = vmatpush2.msra.mxu0 0.0
      %2703 = vmatprep.subr.mxu0 0.0
      %2704 = vmatpush2.msra.mxu0 0.0
      %2705 = vmatprep.subr.mxu0 0.0
      %2706 = vmatpush2.msra.mxu0 0.0
      %2707 = vmatprep.subr.mxu0 0.0
      %2708 = vmatpush2.msra.mxu0 0.0
      %2709 = vmatprep.subr.mxu0 0.0
      %2710 = vmatpush2.msra.mxu0 0.0
      %2711 = vmatprep.subr.mxu0 0.0
      %2712 = vmatpush2.msra.mxu0 0.0
      %2713 = vmatprep.mubr.f32.mxu0 0.0
      %2714 = vmatmul.mubr.f32.gmra.mxu0 %v2642
      %v2715 = vpop.f32.mrf.mxu0
      %v2716 = vadd.f32 0.0, %v2715
      %v2717 = vpop.f32.mrf.mxu0
      %2718 = vmatprep.mubr.f32.mxu0 0.0
      %2719 = vmatmul.mubr.f32.gmra.mxu0 %v2645
      %v2720 = vpop.f32.mrf.mxu0
      %v2721 = vadd.f32 0.0, %v2720
      %v2722 = vpop.f32.mrf.mxu0
      %2723 = vdwg.mxu0
      %2726 = vrot.lane.b32.xlu0 %v2716, 16
      %v2727 = vpop.permute.xlu0 %2726
      %2728 = vrot.lane.b32.xlu0 %v2721, 16
      %v2729 = vpop.permute.xlu0 %2728
      %v2732 = vsel %vm1411, %v2513, %v2727
      %v2733 = vsel %vm1411, %v2518, %v2729
      %s2734 = scalar_lea.vmem %s35, 32
      %v2735 = vld [vmem:[%s2734] sm:$0xff]
      %v2736 = vld [vmem:[%s2734 + $0x8] sm:$0xff]
      %v2737 = vld [vmem:[%s2734 + $0x10] sm:$0xff]
      %v2738 = vld [vmem:[%s2734 + $0x18] sm:$0xff]
      %v2740 = vsel %vm1218, %v2732, 0
      %v2743 = vsel %vm1218, %v2733, 0
      %2745 = vmatprep.subr.mxu0 0.0
      %2746 = vmatpush1.msra.mxu0 0.0
      %2747 = vmatprep.subr.mxu0 0.0
      %2748 = vmatpush1.msra.mxu0 0.0
      %2749 = vmatprep.subr.mxu0 0.0
      %2750 = vmatpush1.msra.mxu0 0.0
      %2751 = vmatprep.subr.mxu0 0.0
      %2752 = vmatpush1.msra.mxu0 0.0
      %2753 = vmatprep.subr.mxu0 0.0
      %2754 = vmatpush1.msra.mxu0 0.0
      %2755 = vmatprep.subr.mxu0 0.0
      %2756 = vmatpush1.msra.mxu0 0.0
      %2757 = vmatprep.subr.mxu0 0.0
      %2758 = vmatpush1.msra.mxu0 0.0
      %2759 = vmatprep.subr.mxu0 0.0
      %2760 = vmatpush1.msra.mxu0 0.0
      %2761 = vmatprep.subr.mxu0 0.0
      %2762 = vmatpush1.msra.mxu0 0.0
      %2763 = vmatprep.subr.mxu0 0.0
      %2764 = vmatpush1.msra.mxu0 0.0
      %2765 = vmatprep.subr.mxu0 0.0
      %2766 = vmatpush1.msra.mxu0 0.0
      %2767 = vmatprep.subr.mxu0 0.0
      %2768 = vmatpush1.msra.mxu0 0.0
      %2769 = vmatprep.subr.mxu0 0.0
      %2770 = vmatpush1.msra.mxu0 %v2738
      %2771 = vmatprep.subr.mxu0 0.0
      %2772 = vmatpush1.msra.mxu0 %v2737
      %2773 = vmatprep.subr.mxu0 0.0
      %2774 = vmatpush1.msra.mxu0 %v2736
      %2775 = vmatprep.subr.mxu0 0.0
      %2776 = vmatpush1.msra.mxu0 %v2735
      %2777 = vmatprep.subr.mxu0 0.0
      %2778 = vmatpush2.msra.mxu0 0.0
      %2779 = vmatprep.subr.mxu0 0.0
      %2780 = vmatpush2.msra.mxu0 0.0
      %2781 = vmatprep.subr.mxu0 0.0
      %2782 = vmatpush2.msra.mxu0 0.0
      %2783 = vmatprep.subr.mxu0 0.0
      %2784 = vmatpush2.msra.mxu0 0.0
      %2785 = vmatprep.subr.mxu0 0.0
      %2786 = vmatpush2.msra.mxu0 0.0
      %2787 = vmatprep.subr.mxu0 0.0
      %2788 = vmatpush2.msra.mxu0 0.0
      %2789 = vmatprep.subr.mxu0 0.0
      %2790 = vmatpush2.msra.mxu0 0.0
      %2791 = vmatprep.subr.mxu0 0.0
      %2792 = vmatpush2.msra.mxu0 0.0
      %2793 = vmatprep.subr.mxu0 0.0
      %2794 = vmatpush2.msra.mxu0 0.0
      %2795 = vmatprep.subr.mxu0 0.0
      %2796 = vmatpush2.msra.mxu0 0.0
      %2797 = vmatprep.subr.mxu0 0.0
      %2798 = vmatpush2.msra.mxu0 0.0
      %2799 = vmatprep.subr.mxu0 0.0
      %2800 = vmatpush2.msra.mxu0 0.0
      %2801 = vmatprep.subr.mxu0 0.0
      %2802 = vmatpush2.msra.mxu0 0.0
      %2803 = vmatprep.subr.mxu0 0.0
      %2804 = vmatpush2.msra.mxu0 0.0
      %2805 = vmatprep.subr.mxu0 0.0
      %2806 = vmatpush2.msra.mxu0 0.0
      %2807 = vmatprep.subr.mxu0 0.0
      %2808 = vmatpush2.msra.mxu0 0.0
      %2809 = vmatprep.mubr.f32.mxu0 0.0
      %2810 = vmatmul.mubr.f32.gmra.mxu0 %v2740
      %v2811 = vpop.f32.mrf.mxu0
      %v2812 = vadd.f32 0.0, %v2811
      %v2813 = vpop.f32.mrf.mxu0
      %2814 = vmatprep.mubr.f32.mxu0 0.0
      %2815 = vmatmul.mubr.f32.gmra.mxu0 %v2743
      %v2816 = vpop.f32.mrf.mxu0
      %v2817 = vadd.f32 0.0, %v2816
      %v2818 = vpop.f32.mrf.mxu0
      %2819 = vdwg.mxu0
      %v2820 = vadd.f32 %v2174, %v2812
      %v2821 = vadd.f32 %v2175, %v2817
      %s2822 = scalar_lea.vmem %s37, 1
      %v2823 = vld [vmem:[%s2822] sm:$0x1]
      %v2825 = vlaneseq
      %v2826 = vshrl.u32 %v2825, 7
      %v2827 = vsub.s32 0, %v2826
      %v2828 = vrot.slane %v2823, %v2827
      %v2830 = vadd.f32 %v2820, %v2828
      %v2831 = vadd.f32 %v2821, %v2828
      %s2832 = scalar_lea.vmem %s39, 1
      %v2833 = vld [vmem:[%s2832] sm:$0x1]
      %s2834 = scalar_lea.vmem %s41, 1
      %v2835 = vld [vmem:[%s2834] sm:$0x1]
      %v2836 = vsel %vm1218, %v2830, 0.0
      %2837 = vadd.xlane.f32.xlu0 %v2836
      %v2838 = vpop.xlane.xlu0 %2837
      %v2839 = vsel %vm1222, %v2831, 0.0
      %2840 = vadd.xlane.f32.xlu0 %v2839
      %v2841 = vpop.xlane.xlu0 %2840
      %v2842 = vmul.f32 %v2838, %v1226
      %v2843 = vmul.f32 %v2841, %v1226
      %v2844 = vsub.f32 %v2830, %v2842
      %v2845 = vsub.f32 %v2831, %v2843
      %v2846 = vmul.f32 %v2844, %v2844
      %v2847 = vmul.f32 %v2845, %v2845
      %v2848 = vsel %vm1218, %v2846, 0.0
      %2849 = vadd.xlane.f32.xlu0 %v2848
      %v2850 = vpop.xlane.xlu0 %2849
      %v2851 = vsel %vm1222, %v2847, 0.0
      %2852 = vadd.xlane.f32.xlu0 %v2851
      %v2853 = vpop.xlane.xlu0 %2852
      %v2854 = vmul.f32 %v2850, %v1226
      %v2855 = vmul.f32 %v2853, %v1226
      %v2856 = vadd.f32 %v2854, 0.003
      %v2857 = vadd.f32 %v2855, 0.003
      %v2858 = vrsqrt.pop %v2856
      %v2859 = vrsqrt.pop %v2857
      %v2860 = vmul.f32 %v2844, %v2858
      %v2861 = vmul.f32 %v2845, %v2859
      %v2863 = vlaneseq
      %v2864 = vshrl.u32 %v2863, 7
      %v2865 = vsub.s32 0, %v2864
      %v2866 = vrot.slane %v2833, %v2865
      %v2868 = vmul.f32 %v2860, %v2866
      %v2869 = vmul.f32 %v2861, %v2866
      %v2871 = vlaneseq
      %v2872 = vshrl.u32 %v2871, 7
      %v2873 = vsub.s32 0, %v2872
      %v2874 = vrot.slane %v2835, %v2873
      %v2876 = vadd.f32 %v2868, %v2874
      %v2877 = vadd.f32 %v2869, %v2874
      %s2878 = scalar_lea.vmem %s43, 32
      %v2879 = vld [vmem:[%s2878] sm:$0xff]
      %v2880 = vld [vmem:[%s2878 + $0x8] sm:$0xff]
      %v2881 = vld [vmem:[%s2878 + $0x10] sm:$0xff]
      %v2882 = vld [vmem:[%s2878 + $0x18] sm:$0xff]
      %s2883 = scalar_lea.vmem %s45, 1
      %v2884 = vld [vmem:[%s2883] sm:$0x1]
      %v2886 = vlaneseq
      %v2887 = vshrl.u32 %v2886, 7
      %v2888 = vsub.s32 0, %v2887
      %v2889 = vrot.slane %v2884, %v2888
      %v2892 = vsel %vm1218, %v2876, 0
      %v2895 = vsel %vm1218, %v2877, 0
      %2897 = vmatprep.subr.mxu0 0.0
      %2898 = vmatpush1.msra.mxu0 0.0
      %2899 = vmatprep.subr.mxu0 0.0
      %2900 = vmatpush1.msra.mxu0 0.0
      %2901 = vmatprep.subr.mxu0 0.0
      %2902 = vmatpush1.msra.mxu0 0.0
      %2903 = vmatprep.subr.mxu0 0.0
      %2904 = vmatpush1.msra.mxu0 0.0
      %2905 = vmatprep.subr.mxu0 0.0
      %2906 = vmatpush1.msra.mxu0 0.0
      %2907 = vmatprep.subr.mxu0 0.0
      %2908 = vmatpush1.msra.mxu0 0.0
      %2909 = vmatprep.subr.mxu0 0.0
      %2910 = vmatpush1.msra.mxu0 0.0
      %2911 = vmatprep.subr.mxu0 0.0
      %2912 = vmatpush1.msra.mxu0 0.0
      %2913 = vmatprep.subr.mxu0 0.0
      %2914 = vmatpush1.msra.mxu0 0.0
      %2915 = vmatprep.subr.mxu0 0.0
      %2916 = vmatpush1.msra.mxu0 0.0
      %2917 = vmatprep.subr.mxu0 0.0
      %2918 = vmatpush1.msra.mxu0 0.0
      %2919 = vmatprep.subr.mxu0 0.0
      %2920 = vmatpush1.msra.mxu0 0.0
      %2921 = vmatprep.subr.mxu0 0.0
      %2922 = vmatpush1.msra.mxu0 %v2882
      %2923 = vmatprep.subr.mxu0 0.0
      %2924 = vmatpush1.msra.mxu0 %v2881
      %2925 = vmatprep.subr.mxu0 0.0
      %2926 = vmatpush1.msra.mxu0 %v2880
      %2927 = vmatprep.subr.mxu0 0.0
      %2928 = vmatpush1.msra.mxu0 %v2879
      %2929 = vmatprep.subr.mxu0 0.0
      %2930 = vmatpush2.msra.mxu0 0.0
      %2931 = vmatprep.subr.mxu0 0.0
      %2932 = vmatpush2.msra.mxu0 0.0
      %2933 = vmatprep.subr.mxu0 0.0
      %2934 = vmatpush2.msra.mxu0 0.0
      %2935 = vmatprep.subr.mxu0 0.0
      %2936 = vmatpush2.msra.mxu0 0.0
      %2937 = vmatprep.subr.mxu0 0.0
      %2938 = vmatpush2.msra.mxu0 0.0
      %2939 = vmatprep.subr.mxu0 0.0
      %2940 = vmatpush2.msra.mxu0 0.0
      %2941 = vmatprep.subr.mxu0 0.0
      %2942 = vmatpush2.msra.mxu0 0.0
      %2943 = vmatprep.subr.mxu0 0.0
      %2944 = vmatpush2.msra.mxu0 0.0
      %2945 = vmatprep.subr.mxu0 0.0
      %2946 = vmatpush2.msra.mxu0 0.0
      %2947 = vmatprep.subr.mxu0 0.0
      %2948 = vmatpush2.msra.mxu0 0.0
      %2949 = vmatprep.subr.mxu0 0.0
      %2950 = vmatpush2.msra.mxu0 0.0
      %2951 = vmatprep.subr.mxu0 0.0
      %2952 = vmatpush2.msra.mxu0 0.0
      %2953 = vmatprep.subr.mxu0 0.0
      %2954 = vmatpush2.msra.mxu0 0.0
      %2955 = vmatprep.subr.mxu0 0.0
      %2956 = vmatpush2.msra.mxu0 0.0
      %2957 = vmatprep.subr.mxu0 0.0
      %2958 = vmatpush2.msra.mxu0 0.0
      %2959 = vmatprep.subr.mxu0 0.0
      %2960 = vmatpush2.msra.mxu0 0.0
      %2961 = vmatprep.mubr.f32.mxu0 0.0
      %2962 = vmatmul.mubr.f32.gmra.mxu0 %v2892
      %v2963 = vpop.f32.mrf.mxu0
      %v2964 = vadd.f32 %v2889, %v2963
      %v2965 = vpop.f32.mrf.mxu0
      %2966 = vmatprep.mubr.f32.mxu0 0.0
      %2967 = vmatmul.mubr.f32.gmra.mxu0 %v2895
      %v2968 = vpop.f32.mrf.mxu0
      %v2969 = vadd.f32 %v2889, %v2968
      %v2970 = vpop.f32.mrf.mxu0
      %2971 = vdwg.mxu0
      %v2972 = vmul.f32 %v2964, %v2964
      %v2973 = vmul.f32 %v2969, %v2969
      %v2974 = vmul.f32 %v2964, %v2972
      %v2975 = vmul.f32 %v2969, %v2973
      %v2976 = vmul.f32 %v2974, 0.044715
      %v2977 = vmul.f32 %v2975, 0.044715
      %v2978 = vadd.f32 %v2964, %v2976
      %v2979 = vadd.f32 %v2969, %v2977
      %v2980 = vmul.f32 %v2978, 0.7978846
      %v2981 = vmul.f32 %v2979, 0.7978846
      %v2982 = vtanh.pop %v2980
      %v2983 = vtanh.pop %v2981
      %v2984 = vadd.f32 %v2982, 1.0
      %v2985 = vadd.f32 %v2983, 1.0
      %v2986 = vmul.f32 %v2984, 0.5
      %v2987 = vmul.f32 %v2985, 0.5
      %v2988 = vmul.f32 %v2964, %v2986
      %v2989 = vmul.f32 %v2969, %v2987
      %s2990 = scalar_lea.vmem %s47, 128
      %v2991 = vld [vmem:[%s2990] sm:$0xff]
      %v2992 = vld [vmem:[%s2990 + $0x8] sm:$0xff]
      %v2993 = vld [vmem:[%s2990 + $0x10] sm:$0xff]
      %v2994 = vld [vmem:[%s2990 + $0x18] sm:$0xff]
      %v2995 = vld [vmem:[%s2990 + $0x20] sm:$0xff]
      %v2996 = vld [vmem:[%s2990 + $0x28] sm:$0xff]
      %v2997 = vld [vmem:[%s2990 + $0x30] sm:$0xff]
      %v2998 = vld [vmem:[%s2990 + $0x38] sm:$0xff]
      %v2999 = vld [vmem:[%s2990 + $0x40] sm:$0xff]
      %v3000 = vld [vmem:[%s2990 + $0x48] sm:$0xff]
      %v3001 = vld [vmem:[%s2990 + $0x50] sm:$0xff]
      %v3002 = vld [vmem:[%s2990 + $0x58] sm:$0xff]
      %v3003 = vld [vmem:[%s2990 + $0x60] sm:$0xff]
      %v3004 = vld [vmem:[%s2990 + $0x68] sm:$0xff]
      %v3005 = vld [vmem:[%s2990 + $0x70] sm:$0xff]
      %v3006 = vld [vmem:[%s2990 + $0x78] sm:$0xff]
      %3007 = vmatprep.subr.mxu0 0.0
      %3008 = vmatpush1.msra.mxu0 %v3006
      %3009 = vmatprep.subr.mxu0 0.0
      %3010 = vmatpush1.msra.mxu0 %v3005
      %3011 = vmatprep.subr.mxu0 0.0
      %3012 = vmatpush1.msra.mxu0 %v3004
      %3013 = vmatprep.subr.mxu0 0.0
      %3014 = vmatpush1.msra.mxu0 %v3003
      %3015 = vmatprep.subr.mxu0 0.0
      %3016 = vmatpush1.msra.mxu0 %v3002
      %3017 = vmatprep.subr.mxu0 0.0
      %3018 = vmatpush1.msra.mxu0 %v3001
      %3019 = vmatprep.subr.mxu0 0.0
      %3020 = vmatpush1.msra.mxu0 %v3000
      %3021 = vmatprep.subr.mxu0 0.0
      %3022 = vmatpush1.msra.mxu0 %v2999
      %3023 = vmatprep.subr.mxu0 0.0
      %3024 = vmatpush1.msra.mxu0 %v2998
      %3025 = vmatprep.subr.mxu0 0.0
      %3026 = vmatpush1.msra.mxu0 %v2997
      %3027 = vmatprep.subr.mxu0 0.0
      %3028 = vmatpush1.msra.mxu0 %v2996
      %3029 = vmatprep.subr.mxu0 0.0
      %3030 = vmatpush1.msra.mxu0 %v2995
      %3031 = vmatprep.subr.mxu0 0.0
      %3032 = vmatpush1.msra.mxu0 %v2994
      %3033 = vmatprep.subr.mxu0 0.0
      %3034 = vmatpush1.msra.mxu0 %v2993
      %3035 = vmatprep.subr.mxu0 0.0
      %3036 = vmatpush1.msra.mxu0 %v2992
      %3037 = vmatprep.subr.mxu0 0.0
      %3038 = vmatpush1.msra.mxu0 %v2991
      %3039 = vmatprep.subr.mxu0 0.0
      %3040 = vmatpush2.msra.mxu0 0.0
      %3041 = vmatprep.subr.mxu0 0.0
      %3042 = vmatpush2.msra.mxu0 0.0
      %3043 = vmatprep.subr.mxu0 0.0
      %3044 = vmatpush2.msra.mxu0 0.0
      %3045 = vmatprep.subr.mxu0 0.0
      %3046 = vmatpush2.msra.mxu0 0.0
      %3047 = vmatprep.subr.mxu0 0.0
      %3048 = vmatpush2.msra.mxu0 0.0
      %3049 = vmatprep.subr.mxu0 0.0
      %3050 = vmatpush2.msra.mxu0 0.0
      %3051 = vmatprep.subr.mxu0 0.0
      %3052 = vmatpush2.msra.mxu0 0.0
      %3053 = vmatprep.subr.mxu0 0.0
      %3054 = vmatpush2.msra.mxu0 0.0
      %3055 = vmatprep.subr.mxu0 0.0
      %3056 = vmatpush2.msra.mxu0 0.0
      %3057 = vmatprep.subr.mxu0 0.0
      %3058 = vmatpush2.msra.mxu0 0.0
      %3059 = vmatprep.subr.mxu0 0.0
      %3060 = vmatpush2.msra.mxu0 0.0
      %3061 = vmatprep.subr.mxu0 0.0
      %3062 = vmatpush2.msra.mxu0 0.0
      %3063 = vmatprep.subr.mxu0 0.0
      %3064 = vmatpush2.msra.mxu0 0.0
      %3065 = vmatprep.subr.mxu0 0.0
      %3066 = vmatpush2.msra.mxu0 0.0
      %3067 = vmatprep.subr.mxu0 0.0
      %3068 = vmatpush2.msra.mxu0 0.0
      %3069 = vmatprep.subr.mxu0 0.0
      %3070 = vmatpush2.msra.mxu0 0.0
      %3071 = vmatprep.mubr.f32.mxu0 0.0
      %3072 = vmatmul.mubr.f32.gmra.mxu0 %v2988
      %v3073 = vpop.f32.mrf.mxu0
      %v3074 = vadd.f32 0.0, %v3073
      %v3075 = vpop.f32.mrf.mxu0
      %3076 = vmatprep.mubr.f32.mxu0 0.0
      %3077 = vmatmul.mubr.f32.gmra.mxu0 %v2989
      %v3078 = vpop.f32.mrf.mxu0
      %v3079 = vpop.f32.mrf.mxu0
      %3080 = vdwg.mxu0
      %v3081 = vadd.f32 %v2830, %v3074
      %s3082 = scalar_lea.vmem %s49, 1
      %v3083 = vld [vmem:[%s3082] sm:$0x1]
      %v3085 = vlaneseq
      %v3086 = vshrl.u32 %v3085, 7
      %v3087 = vsub.s32 0, %v3086
      %v3088 = vrot.slane %v3083, %v3087
      %v3090 = vadd.f32 %v3081, %v3088
      %v3091 = vld [vmem:[%s51] sm:$0x1]
      %v3092 = vld [vmem:[%s53] sm:$0x1]
      %v3093 = vsel %vm1218, %v3090, 0.0
      %3094 = vadd.xlane.f32.xlu0 %v3093
      %v3095 = vpop.xlane.xlu0 %3094
      %v3096 = vmul.f32 %v3095, %v1226
      %v3097 = vsub.f32 %v3090, %v3096
      %v3098 = vmul.f32 %v3097, %v3097
      %v3099 = vsel %vm1218, %v3098, 0.0
      %3100 = vadd.xlane.f32.xlu0 %v3099
      %v3101 = vpop.xlane.xlu0 %3100
      %v3102 = vmul.f32 %v3101, %v1226
      %v3103 = vadd.f32 %v3102, 0.003
      %v3104 = vrsqrt.pop %v3103
      %v3105 = vmul.f32 %v3097, %v3104
      %v3107 = vlaneseq
      %v3108 = vshrl.u32 %v3107, 7
      %v3109 = vsub.s32 0, %v3108
      %v3110 = vrot.slane %v3091, %v3109
      %v3112 = vmul.f32 %v3105, %v3110
      %v3114 = vlaneseq
      %v3115 = vshrl.u32 %v3114, 7
      %v3116 = vsub.s32 0, %v3115
      %v3117 = vrot.slane %v3092, %v3116
      %v3119 = vadd.f32 %v3112, %v3117
      %v3120 = vld [vmem:[%s55] sm:$0xff]
      %v3121 = vld [vmem:[%s55 + $0x8] sm:$0xff]
      %v3122 = vld [vmem:[%s55 + $0x10] sm:$0xff]
      %v3123 = vld [vmem:[%s55 + $0x18] sm:$0xff]
      %v3124 = vld [vmem:[%s57] sm:$0x1]
      %v3126 = vlaneseq
      %v3127 = vshrl.u32 %v3126, 7
      %v3128 = vsub.s32 0, %v3127
      %v3129 = vrot.slane %v3124, %v3128
      %v3132 = vrot.slane %v3119, 4
      %v3133 = vsel %vm1218, %v3132, 0
      %3135 = vmatprep.subr.mxu0 0.0
      %3136 = vmatpush1.msra.mxu0 0.0
      %3137 = vmatprep.subr.mxu0 0.0
      %3138 = vmatpush1.msra.mxu0 0.0
      %3139 = vmatprep.subr.mxu0 0.0
      %3140 = vmatpush1.msra.mxu0 0.0
      %3141 = vmatprep.subr.mxu0 0.0
      %3142 = vmatpush1.msra.mxu0 0.0
      %3143 = vmatprep.subr.mxu0 0.0
      %3144 = vmatpush1.msra.mxu0 0.0
      %3145 = vmatprep.subr.mxu0 0.0
      %3146 = vmatpush1.msra.mxu0 0.0
      %3147 = vmatprep.subr.mxu0 0.0
      %3148 = vmatpush1.msra.mxu0 0.0
      %3149 = vmatprep.subr.mxu0 0.0
      %3150 = vmatpush1.msra.mxu0 0.0
      %3151 = vmatprep.subr.mxu0 0.0
      %3152 = vmatpush1.msra.mxu0 0.0
      %3153 = vmatprep.subr.mxu0 0.0
      %3154 = vmatpush1.msra.mxu0 0.0
      %3155 = vmatprep.subr.mxu0 0.0
      %3156 = vmatpush1.msra.mxu0 0.0
      %3157 = vmatprep.subr.mxu0 0.0
      %3158 = vmatpush1.msra.mxu0 0.0
      %3159 = vmatprep.subr.mxu0 0.0
      %3160 = vmatpush1.msra.mxu0 %v3123
      %3161 = vmatprep.subr.mxu0 0.0
      %3162 = vmatpush1.msra.mxu0 %v3122
      %3163 = vmatprep.subr.mxu0 0.0
      %3164 = vmatpush1.msra.mxu0 %v3121
      %3165 = vmatprep.subr.mxu0 0.0
      %3166 = vmatpush1.msra.mxu0 %v3120
      %3167 = vmatprep.subr.mxu0 0.0
      %3168 = vmatpush2.msra.mxu0 0.0
      %3169 = vmatprep.subr.mxu0 0.0
      %3170 = vmatpush2.msra.mxu0 0.0
      %3171 = vmatprep.subr.mxu0 0.0
      %3172 = vmatpush2.msra.mxu0 0.0
      %3173 = vmatprep.subr.mxu0 0.0
      %3174 = vmatpush2.msra.mxu0 0.0
      %3175 = vmatprep.subr.mxu0 0.0
      %3176 = vmatpush2.msra.mxu0 0.0
      %3177 = vmatprep.subr.mxu0 0.0
      %3178 = vmatpush2.msra.mxu0 0.0
      %3179 = vmatprep.subr.mxu0 0.0
      %3180 = vmatpush2.msra.mxu0 0.0
      %3181 = vmatprep.subr.mxu0 0.0
      %3182 = vmatpush2.msra.mxu0 0.0
      %3183 = vmatprep.subr.mxu0 0.0
      %3184 = vmatpush2.msra.mxu0 0.0
      %3185 = vmatprep.subr.mxu0 0.0
      %3186 = vmatpush2.msra.mxu0 0.0
      %3187 = vmatprep.subr.mxu0 0.0
      %3188 = vmatpush2.msra.mxu0 0.0
      %3189 = vmatprep.subr.mxu0 0.0
      %3190 = vmatpush2.msra.mxu0 0.0
      %3191 = vmatprep.subr.mxu0 0.0
      %3192 = vmatpush2.msra.mxu0 0.0
      %3193 = vmatprep.subr.mxu0 0.0
      %3194 = vmatpush2.msra.mxu0 0.0
      %3195 = vmatprep.subr.mxu0 0.0
      %3196 = vmatpush2.msra.mxu0 0.0
      %3197 = vmatprep.subr.mxu0 0.0
      %3198 = vmatpush2.msra.mxu0 0.0
      %3199 = vmatprep.mubr.f32.mxu0 0.0
      %3200 = vmatmul.mubr.f32.gmra.mxu0 %v3133
      %v3201 = vpop.f32.mrf.mxu0
      %v3202 = vadd.f32 %v3129, %v3201
      %v3203 = vpop.f32.mrf.mxu0
      %3204 = vdwg.mxu0
      %v3205 = vtanh.pop %v3202
      %3206 = vst [vmem:[%s948] sm:$0xf] %v3205
      %p3207 = scmp.lt.s32.totalorder %s70, 1
      %s3208 = scalar_select %p3207, %s70, 1
      %s3209 = smul.addr %s3208, 4
      %s3210 = scalar_lea.vmem %s59, %s3209
      // Predicated region
      $region137: #{decision_transformer_forward.1} parent=135 // pred_check
        %p3211 = pneg %p717
      $region138: #{decision_transformer_forward.1} parent=135 // pred_check_branch
        %3213 = sbr.rel (%p3211) target = $region140
      $region139: #{decision_transformer_forward.1} parent=135 // pred_region
        _
      $region140: #{decision_transformer_forward.1} parent=135 // pred_fallthru
        _
    $region136: #{decision_transformer_forward.1} parent=5 // pred_fallthru
      _
    %p3214 = scmp.le.s32.totalorder 2, %s65
    // Predicated region
    $region141: #{decision_transformer_forward.1} parent=5 // pred_check
      %p3215 = pneg %p3214
    $region142: #{decision_transformer_forward.1} parent=5 // pred_check_branch
      %3217 = sbr.rel (%p3215) target = $region144
    $region143: #{decision_transformer_forward.1} parent=5 // pred_region
      %s3218 = ssub.s32 %s65, 2
      // Predicated region
      $region145: #{decision_transformer_forward.1} parent=143 // pred_check
        %p3219 = pneg %p723
      $region146: #{decision_transformer_forward.1} parent=143 // pred_check_branch
        %3221 = sbr.rel (%p3219) target = $region148
      $region147: #{decision_transformer_forward.1} parent=143 // pred_region
        %p3222 = scmp.lt.s32.totalorder %s71, 1
        %s3223 = scalar_select %p3222, %s71, 1
        %s3224 = smul.addr %s3223, 4
        %s3225 = scalar_lea.vmem %s59, %s3224
      $region148: #{decision_transformer_forward.1} parent=143 // pred_fallthru
        _
    $region144: #{decision_transformer_forward.1} parent=5 // pred_fallthru
      _
  $region6: #{decision_transformer_forward.1} parent=0 // loop_footer
    %s69 = sadd.s32 1, %s65
  $region7: #{decision_transformer_forward.1} parent=0 // loop_footer_branch
    %64 = sbr.rel target = $region3
  $region8: #{decision_transformer_forward.1} parent=0 // loop_exit
    _

</llo_original>
